<compile_context>
chip_gen: v6e
topology: v6e:2x2x1
jax: 0.10.0
libtpu: 0.0.40
codegen_flags: <defaults>
</compile_context>

<pallas_src>
import jax
import jax.numpy as jnp
from jax import lax
from jax.experimental import pallas as pl
from jax.experimental.pallas import tpu as pltpu


def classifier_kernel(seq_ref, text_ref, len_ref,
                      w_ih_ref, b_gi_ref,
                      w_hh_fw_ref, w_hh_bw_ref,
                      b_hh_n_fw_ref, b_hh_n_bw_ref,
                      w1_ref, b1_ref, w2_ref, b2_ref,
                      gamma_ref, beta_ref, wfc_ref, bfc_ref,
                      out_ref,
                      gi_fw_ref, gi_bw_ref, comb_ref):
    _, TB, _ = seq_ref.shape
    Bt = out_ref.shape[0]
    H = w_hh_fw_ref.shape[0]
    G = 3 * H
    T = TB // Bt

    lengths = len_ref[...]                                   # (Bt, 1) int32

    # ---- Input-gate precompute: one big MXU matmul, off the serial path ----
    # gi = x @ [W_ih_fw | W_ih_bw] + folded biases   -> (T*Bt, 6H) f32
    x2 = seq_ref[0]                                          # (T*Bt, D) bf16
    gi = (jnp.dot(x2, w_ih_ref[...], preferred_element_type=jnp.float32)
          + b_gi_ref[...])
    gi_fw_ref[...] = gi[:, :G]
    gi_bw_ref[...] = gi[:, G:]

    # Hoist recurrent weights out of the loop.
    w_hh_fw = w_hh_fw_ref[...]
    w_hh_bw = w_hh_bw_ref[...]
    b_hh_n_fw = b_hh_n_fw_ref[...]
    b_hh_n_bw = b_hh_n_bw_ref[...]

    h0 = jnp.zeros((Bt, H), jnp.float32)

    def gru_step(gi_t, h, w_hh, b_hh_n):
        # Single gate-stacked hidden matmul per step (bf16 operands, f32 acc).
        gh = jnp.dot(h.astype(jnp.bfloat16), w_hh,
                     preferred_element_type=jnp.float32)     # (Bt, 3H)
        r = jax.nn.sigmoid(gi_t[:, :H] + gh[:, :H])
        z = jax.nn.sigmoid(gi_t[:, H:2 * H] + gh[:, H:2 * H])
        n = jnp.tanh(gi_t[:, 2 * H:] + r * (gh[:, 2 * H:] + b_hh_n))
        return (1.0 - z) * n + z * h

    # Fused fw/bw recurrence: two independent dependency chains per iteration.
    # Steps with t >= lengths[b] are masked, matching pack_padded_sequence +
    # bidirectional GRU final hidden states.
    def body(i, carry):
        h_fw, h_bw = carry
        t_bw = T - 1 - i
        off_fw = pl.multiple_of(i * Bt, Bt)
        off_bw = pl.multiple_of(t_bw * Bt, Bt)
        gi_f = gi_fw_ref[pl.ds(off_fw, Bt), :]
        gi_b = gi_bw_ref[pl.ds(off_bw, Bt), :]
        h_fw_new = gru_step(gi_f, h_fw, w_hh_fw, b_hh_n_fw)
        h_bw_new = gru_step(gi_b, h_bw, w_hh_bw, b_hh_n_bw)
        h_fw = jnp.where(i < lengths, h_fw_new, h_fw)
        h_bw = jnp.where(t_bw < lengths, h_bw_new, h_bw)
        return h_fw, h_bw

    h_fw, h_bw = lax.fori_loop(0, T, body, (h0, h0), unroll=True)

    # ---- text_proj: Linear -> ReLU -> Dropout(identity) -> Linear ----
    t1 = jnp.maximum(
        jnp.dot(text_ref[...], w1_ref[...],
                preferred_element_type=jnp.float32) + b1_ref[...], 0.0)
    t2 = (jnp.dot(t1.astype(jnp.bfloat16), w2_ref[...],
                  preferred_element_type=jnp.float32) + b2_ref[...])

    # ---- concat -> LayerNorm(3H) -> Dropout(identity) -> Linear(3H, 1) ----
    # Write into lane-aligned slices of a scratch instead of jnp.concatenate.
    comb_ref[:, :H] = h_fw
    comb_ref[:, H:2 * H] = h_bw
    comb_ref[:, 2 * H:] = t2
    combined = comb_ref[...]

    mu = jnp.mean(combined, axis=-1, keepdims=True)
    var = jnp.mean(jnp.square(combined - mu), axis=-1, keepdims=True)
    normed = (combined - mu) * lax.rsqrt(var + 1e-5)
    normed = normed * gamma_ref[...] + beta_ref[...]

    out_ref[...] = (jnp.dot(normed, wfc_ref[...],
                            preferred_element_type=jnp.float32) + bfc_ref[...])


def init_params(key, input_dim, text_dim, hidden_dim):
    H = hidden_dim
    bound = 1.0 / float(H) ** 0.5
    keys = jax.random.split(key, 14)

    def u(k, shape):
        return jax.random.uniform(k, shape, jnp.float32, -bound, bound)

    return dict(
        # GRU weights, pre-transposed for x @ W, PyTorch gate order [r, z, n]
        w_ih_fw=u(keys[0], (3, input_dim, H)),
        w_hh_fw=u(keys[1], (3, H, H)),
        b_ih_fw=u(keys[2], (3, H)),
        b_hh_fw=u(keys[3], (3, H)),
        w_ih_bw=u(keys[4], (3, input_dim, H)),
        w_hh_bw=u(keys[5], (3, H, H)),
        b_ih_bw=u(keys[6], (3, H)),
        b_hh_bw=u(keys[7], (3, H)),
        # text_proj
        w1=u(keys[8], (text_dim, H)),
        b1=u(keys[9], (H,)),
        w2=u(keys[10], (H, H)),
        b2=u(keys[11], (H,)),
        # LayerNorm(3H)
        gamma=jnp.ones((3 * H,), jnp.float32),
        beta=jnp.zeros((3 * H,), jnp.float32),
        # final_fc
        wfc=u(keys[12], (3 * H, 1)),
        bfc=u(keys[13], (1,)),
    )


def pack_params(p):
    """Repack gate-wise parameters into the MXU-friendly layouts the kernel uses."""
    bf16 = jnp.bfloat16
    # Input weights: columns [fw_r | fw_z | fw_n | bw_r | bw_z | bw_n], each H wide.
    w_ih_both = jnp.concatenate(
        [p["w_ih_fw"][0], p["w_ih_fw"][1], p["w_ih_fw"][2],
         p["w_ih_bw"][0], p["w_ih_bw"][1], p["w_ih_bw"][2]], axis=1).astype(bf16)
    # Fold b_ih + b_hh for r,z gates; keep only b_ih for n (b_hh_n stays inside r*(...)).
    b_gi_both = jnp.concatenate(
        [p["b_ih_fw"][0] + p["b_hh_fw"][0],
         p["b_ih_fw"][1] + p["b_hh_fw"][1],
         p["b_ih_fw"][2],
         p["b_ih_bw"][0] + p["b_hh_bw"][0],
         p["b_ih_bw"][1] + p["b_hh_bw"][1],
         p["b_ih_bw"][2]])[None, :]
    w_hh_fw = jnp.concatenate(
        [p["w_hh_fw"][0], p["w_hh_fw"][1], p["w_hh_fw"][2]], axis=1).astype(bf16)
    w_hh_bw = jnp.concatenate(
        [p["w_hh_bw"][0], p["w_hh_bw"][1], p["w_hh_bw"][2]], axis=1).astype(bf16)
    return dict(
        w_ih_both=w_ih_both, b_gi_both=b_gi_both,
        w_hh_fw=w_hh_fw, w_hh_bw=w_hh_bw,
        b_hh_n_fw=p["b_hh_fw"][2][None, :], b_hh_n_bw=p["b_hh_bw"][2][None, :],
        w1=p["w1"].astype(bf16), b1=p["b1"][None, :],
        w2=p["w2"].astype(bf16), b2=p["b2"][None, :],
        gamma=p["gamma"][None, :], beta=p["beta"][None, :],
        wfc=p["wfc"], bfc=p["bfc"][None, :],
    )


def sequence_sarcasm_classifier(seq, text, lengths, packed, *, batch_tile=8):
    """seq: (B,T,D) f32, text: (B,text_dim) f32, lengths: (B,) int -> (B,) f32."""
    B, T, D = seq.shape
    TD = text.shape[1]
    H = packed["w_hh_fw"].shape[0]
    G3 = 3 * H

    Bt = batch_tile
    nb = -(-B // Bt)
    Bp = nb * Bt
    pad = Bp - B

    # Pad batch to a sublane multiple; padded rows get length 0 so their GRU
    # state stays 0, and they are sliced off at the end.
    seq_p = jnp.pad(seq, ((0, pad), (0, 0), (0, 0)))
    text_p = jnp.pad(text, ((0, pad), (0, 0))).astype(jnp.bfloat16)
    len_p = jnp.pad(lengths.astype(jnp.int32), (0, pad)).reshape(Bp, 1)

    # (Bp,T,D) -> (nb, T*Bt, D), rows within a block ordered time-major
    # (row = t*Bt + b_local) so each timestep of a batch tile is one sublane tile.
    seq_b = (seq_p.reshape(nb, Bt, T, D)
                  .transpose(0, 2, 1, 3)
                  .reshape(nb, T * Bt, D)
                  .astype(jnp.bfloat16))

    weights = (packed["w_ih_both"], packed["b_gi_both"],
               packed["w_hh_fw"], packed["w_hh_bw"],
               packed["b_hh_n_fw"], packed["b_hh_n_bw"],
               packed["w1"], packed["b1"], packed["w2"], packed["b2"],
               packed["gamma"], packed["beta"], packed["wfc"], packed["bfc"])

    def replicated(arr):
        nd = arr.ndim
        return pl.BlockSpec(arr.shape, lambda b, nd=nd: (0,) * nd)

    grid_spec = pltpu.PrefetchScalarGridSpec(
        num_scalar_prefetch=0,
        grid=(nb,),
        in_specs=[
            pl.BlockSpec((1, T * Bt, D), lambda b: (b, 0, 0)),   # seq batch tile
            pl.BlockSpec((Bt, TD), lambda b: (b, 0)),            # text batch tile
            pl.BlockSpec((Bt, 1), lambda b: (b, 0)),             # lengths batch tile
        ] + [replicated(w) for w in weights],
        out_specs=pl.BlockSpec((Bt, 1), lambda b: (b, 0)),
        scratch_shapes=[
            pltpu.VMEM((T * Bt, G3), jnp.float32),               # precomputed gi (fw)
            pltpu.VMEM((T * Bt, G3), jnp.float32),               # precomputed gi (bw)
            pltpu.VMEM((Bt, G3), jnp.float32),                   # concat buffer
        ],
    )

    args = (seq_b, text_p, len_p) + weights
    flops = 2 * nb * (T * Bt * D * 6 * H            # input-gate matmul
                      + 2 * T * Bt * H * 3 * H      # recurrent matmuls
                      + Bt * (TD * H + H * H + 3 * H))
    transcendentals = nb * T * Bt * 6 * H
    bytes_accessed = sum(int(a.size) * a.dtype.itemsize for a in args) + Bp * 4

    out = pl.pallas_call(
        classifier_kernel,
        out_shape=jax.ShapeDtypeStruct((Bp, 1), jnp.float32),
        grid_spec=grid_spec,
        compiler_params=pltpu.CompilerParams(
            dimension_semantics=("parallel",)),      # batch tiles are independent
        cost_estimate=pl.CostEstimate(flops=flops,
                                      transcendentals=transcendentals,
                                      bytes_accessed=bytes_accessed),
    )(*args)
    return out[:B, 0]                                # matches output.squeeze(1)


if __name__ == "__main__":
    B, T = 2, 8
    input_dim, text_dim, hidden_dim = 16, 16, 128    # hidden_dim matches the module

    key = jax.random.PRNGKey(0)
    k_seq, k_text, k_params = jax.random.split(key, 3)

    lengths = jnp.array([8, 5], dtype=jnp.int32)
    seq = jax.random.normal(k_seq, (B, T, input_dim), jnp.float32)
    # zero out padded timesteps (as a padding DataLoader would)
    time_ids = jnp.arange(T)[None, :, None]
    seq = jnp.where(time_ids < lengths[:, None, None], seq, 0.0)
    text = jax.random.normal(k_text, (B, text_dim), jnp.float32)

    params = init_params(k_params, input_dim, text_dim, hidden_dim)
    packed = pack_params(params)

    out = sequence_sarcasm_classifier(seq, text, lengths, packed)
    jax.block_until_ready(out)
    assert out.shape == (B,)
    print("KERNEL_OK")
</pallas_src>

<mosaic_0001>
module attributes {stable_mosaic.version = 11 : i64} {
  func.func @classifier_kernel(%arg0: i32, %arg1: memref<1x64x16xbf16, #tpu.memory_space<vmem>>, %arg2: memref<8x16xbf16, #tpu.memory_space<vmem>>, %arg3: memref<8x1xi32, #tpu.memory_space<vmem>>, %arg4: memref<16x768xbf16, #tpu.memory_space<vmem>>, %arg5: memref<1x768xf32, #tpu.memory_space<vmem>>, %arg6: memref<128x384xbf16, #tpu.memory_space<vmem>>, %arg7: memref<128x384xbf16, #tpu.memory_space<vmem>>, %arg8: memref<1x128xf32, #tpu.memory_space<vmem>>, %arg9: memref<1x128xf32, #tpu.memory_space<vmem>>, %arg10: memref<16x128xbf16, #tpu.memory_space<vmem>>, %arg11: memref<1x128xf32, #tpu.memory_space<vmem>>, %arg12: memref<128x128xbf16, #tpu.memory_space<vmem>>, %arg13: memref<1x128xf32, #tpu.memory_space<vmem>>, %arg14: memref<1x384xf32, #tpu.memory_space<vmem>>, %arg15: memref<1x384xf32, #tpu.memory_space<vmem>>, %arg16: memref<384x1xf32, #tpu.memory_space<vmem>>, %arg17: memref<1x1xf32, #tpu.memory_space<vmem>>, %arg18: memref<8x1xf32, #tpu.memory_space<vmem>>, %arg19: memref<64x384xf32, #tpu.memory_space<vmem>>, %arg20: memref<64x384xf32, #tpu.memory_space<vmem>>, %arg21: memref<8x384xf32, #tpu.memory_space<vmem>>) attributes {dimension_semantics = [#tpu.dimension_semantics<parallel>], iteration_bounds = array<i64: 1>, scalar_prefetch = 0 : i64, scratch_operands = 3 : i64, tpu.core_type = #tpu.core_type<tc>, window_params = [{transform_indices = @transform_0, window_bounds = array<i64: 1, 64, 16>}, {transform_indices = @transform_1, window_bounds = array<i64: 8, 16>}, {transform_indices = @transform_2, window_bounds = array<i64: 8, 1>}, {pipeline_mode = #tpu.pipeline_mode<synchronous>, transform_indices = @transform_3, window_bounds = array<i64: 16, 768>}, {pipeline_mode = #tpu.pipeline_mode<synchronous>, transform_indices = @transform_4, window_bounds = array<i64: 1, 768>}, {pipeline_mode = #tpu.pipeline_mode<synchronous>, transform_indices = @transform_5, window_bounds = array<i64: 128, 384>}, {pipeline_mode = #tpu.pipeline_mode<synchronous>, transform_indices = @transform_6, window_bounds = array<i64: 128, 384>}, {pipeline_mode = #tpu.pipeline_mode<synchronous>, transform_indices = @transform_7, window_bounds = array<i64: 1, 128>}, {pipeline_mode = #tpu.pipeline_mode<synchronous>, transform_indices = @transform_8, window_bounds = array<i64: 1, 128>}, {pipeline_mode = #tpu.pipeline_mode<synchronous>, transform_indices = @transform_9, window_bounds = array<i64: 16, 128>}, {pipeline_mode = #tpu.pipeline_mode<synchronous>, transform_indices = @transform_10, window_bounds = array<i64: 1, 128>}, {pipeline_mode = #tpu.pipeline_mode<synchronous>, transform_indices = @transform_11, window_bounds = array<i64: 128, 128>}, {pipeline_mode = #tpu.pipeline_mode<synchronous>, transform_indices = @transform_12, window_bounds = array<i64: 1, 128>}, {pipeline_mode = #tpu.pipeline_mode<synchronous>, transform_indices = @transform_13, window_bounds = array<i64: 1, 384>}, {pipeline_mode = #tpu.pipeline_mode<synchronous>, transform_indices = @transform_14, window_bounds = array<i64: 1, 384>}, {pipeline_mode = #tpu.pipeline_mode<synchronous>, transform_indices = @transform_15, window_bounds = array<i64: 384, 1>}, {pipeline_mode = #tpu.pipeline_mode<synchronous>, transform_indices = @transform_16, window_bounds = array<i64: 1, 1>}, {transform_indices = @transform_17, window_bounds = array<i64: 8, 1>}]} {
    %c0 = arith.constant 0 : index
    %c0_0 = arith.constant 0 : index
    %0 = vector.load %arg3[%c0, %c0_0] : memref<8x1xi32, #tpu.memory_space<vmem>>, vector<8x1xi32>
    %c0_1 = arith.constant 0 : index
    %c0_2 = arith.constant 0 : index
    %c0_3 = arith.constant 0 : index
    %1 = vector.load %arg1[%c0_1, %c0_2, %c0_3] : memref<1x64x16xbf16, #tpu.memory_space<vmem>>, vector<1x64x16xbf16>
    %2 = vector.shape_cast %1 : vector<1x64x16xbf16> to vector<64x16xbf16>
    %c0_4 = arith.constant 0 : index
    %c0_5 = arith.constant 0 : index
    %3 = vector.load %arg4[%c0_4, %c0_5] : memref<16x768xbf16, #tpu.memory_space<vmem>>, vector<16x768xbf16>
    %cst = arith.constant dense<0.000000e+00> : vector<64x768xf32>
    %4 = tpu.matmul %2, %3, %cst {dimension_numbers = #tpu.dot_dimension_numbers<[1], [0], [0], [1], [0, 0, 1, 1], [], []>} : vector<64x16xbf16>, vector<16x768xbf16>, vector<64x768xf32> -> vector<64x768xf32>
    %c0_6 = arith.constant 0 : index
    %c0_7 = arith.constant 0 : index
    %5 = vector.load %arg5[%c0_6, %c0_7] : memref<1x768xf32, #tpu.memory_space<vmem>>, vector<1x768xf32>
    %6 = vector.broadcast %5 : vector<1x768xf32> to vector<64x768xf32>
    %7 = arith.addf %4, %6 : vector<64x768xf32>
    %8 = vector.extract_strided_slice %7 {offsets = [0, 0], sizes = [64, 384], strides = [1, 1]} : vector<64x768xf32> to vector<64x384xf32>
    %c0_8 = arith.constant 0 : index
    %c0_9 = arith.constant 0 : index
    %9 = vector.load %arg19[%c0_8, %c0_9] : memref<64x384xf32, #tpu.memory_space<vmem>>, vector<64x384xf32>
    tpu.vector_store %arg19[%c0_8, %c0_9], %8 {strides = array<i32>} : memref<64x384xf32, #tpu.memory_space<vmem>>, vector<64x384xf32>,
    %10 = vector.extract_strided_slice %7 {offsets = [0, 384], sizes = [64, 384], strides = [1, 1]} : vector<64x768xf32> to vector<64x384xf32>
    %c0_10 = arith.constant 0 : index
    %c0_11 = arith.constant 0 : index
    %11 = vector.load %arg20[%c0_10, %c0_11] : memref<64x384xf32, #tpu.memory_space<vmem>>, vector<64x384xf32>
    tpu.vector_store %arg20[%c0_10, %c0_11], %10 {strides = array<i32>} : memref<64x384xf32, #tpu.memory_space<vmem>>, vector<64x384xf32>,
    %c0_12 = arith.constant 0 : index
    %c0_13 = arith.constant 0 : index
    %12 = vector.load %arg6[%c0_12, %c0_13] : memref<128x384xbf16, #tpu.memory_space<vmem>>, vector<128x384xbf16>
    %c0_14 = arith.constant 0 : index
    %c0_15 = arith.constant 0 : index
    %13 = vector.load %arg7[%c0_14, %c0_15] : memref<128x384xbf16, #tpu.memory_space<vmem>>, vector<128x384xbf16>
    %c0_16 = arith.constant 0 : index
    %c0_17 = arith.constant 0 : index
    %14 = vector.load %arg8[%c0_16, %c0_17] : memref<1x128xf32, #tpu.memory_space<vmem>>, vector<1x128xf32>
    %c0_18 = arith.constant 0 : index
    %c0_19 = arith.constant 0 : index
    %15 = vector.load %arg9[%c0_18, %c0_19] : memref<1x128xf32, #tpu.memory_space<vmem>>, vector<1x128xf32>
    %cst_20 = arith.constant 0.000000e+00 : f32
    %16 = vector.broadcast %cst_20 : f32 to vector<8x128xf32>
    %c0_i32 = arith.constant 0 : i32
    %c7_i32 = arith.constant 7 : i32
    %17 = arith.subi %c7_i32, %c0_i32 : i32
    %c8_i32 = arith.constant 8 : i32
    %18 = arith.muli %c0_i32, %c8_i32 : i32
    %19 = tpu.assume_multiple %18, 8 : i32
    %c8_i32_21 = arith.constant 8 : i32
    %20 = arith.muli %17, %c8_i32_21 : i32
    %21 = tpu.assume_multiple %20, 8 : i32
    %22 = arith.index_cast %19 : i32 to index
    %c0_22 = arith.constant 0 : index
    %23 = vector.load %arg19[%22, %c0_22] : memref<64x384xf32, #tpu.memory_space<vmem>>, vector<8x384xf32>
    %24 = arith.index_cast %21 : i32 to index
    %c0_23 = arith.constant 0 : index
    %25 = vector.load %arg20[%24, %c0_23] : memref<64x384xf32, #tpu.memory_space<vmem>>, vector<8x384xf32>
    %26 = arith.truncf %16 : vector<8x128xf32> to vector<8x128xbf16>
    %cst_24 = arith.constant dense<0.000000e+00> : vector<8x384xf32>
    %27 = tpu.matmul %26, %12, %cst_24 {dimension_numbers = #tpu.dot_dimension_numbers<[1], [0], [0], [1], [0, 0, 1, 1], [], []>} : vector<8x128xbf16>, vector<128x384xbf16>, vector<8x384xf32> -> vector<8x384xf32>
    %28 = vector.extract_strided_slice %23 {offsets = [0, 0], sizes = [8, 128], strides = [1, 1]} : vector<8x384xf32> to vector<8x128xf32>
    %29 = vector.extract_strided_slice %27 {offsets = [0, 0], sizes = [8, 128], strides = [1, 1]} : vector<8x384xf32> to vector<8x128xf32>
    %30 = arith.addf %28, %29 : vector<8x128xf32>
    %31 = arith.negf %30 : vector<8x128xf32>
    %32 = math.exp %31 : vector<8x128xf32>
    %cst_25 = arith.constant 1.000000e+00 : f32
    %33 = vector.broadcast %cst_25 : f32 to vector<8x128xf32>
    %34 = arith.addf %33, %32 : vector<8x128xf32>
    %35 = arith.divf %33, %34 : vector<8x128xf32>
    %36 = vector.extract_strided_slice %23 {offsets = [0, 128], sizes = [8, 128], strides = [1, 1]} : vector<8x384xf32> to vector<8x128xf32>
    %37 = vector.extract_strided_slice %27 {offsets = [0, 128], sizes = [8, 128], strides = [1, 1]} : vector<8x384xf32> to vector<8x128xf32>
    %38 = arith.addf %36, %37 : vector<8x128xf32>
    %39 = arith.negf %38 : vector<8x128xf32>
    %40 = math.exp %39 : vector<8x128xf32>
    %cst_26 = arith.constant 1.000000e+00 : f32
    %41 = vector.broadcast %cst_26 : f32 to vector<8x128xf32>
    %42 = arith.addf %41, %40 : vector<8x128xf32>
    %43 = arith.divf %41, %42 : vector<8x128xf32>
    %44 = vector.extract_strided_slice %23 {offsets = [0, 256], sizes = [8, 128], strides = [1, 1]} : vector<8x384xf32> to vector<8x128xf32>
    %45 = vector.extract_strided_slice %27 {offsets = [0, 256], sizes = [8, 128], strides = [1, 1]} : vector<8x384xf32> to vector<8x128xf32>
    %46 = vector.broadcast %14 : vector<1x128xf32> to vector<8x128xf32>
    %47 = arith.addf %45, %46 : vector<8x128xf32>
    %48 = arith.mulf %35, %47 : vector<8x128xf32>
    %49 = arith.addf %44, %48 : vector<8x128xf32>
    %50 = math.tanh %49 : vector<8x128xf32>
    %cst_27 = arith.constant 1.000000e+00 : f32
    %51 = vector.broadcast %cst_27 : f32 to vector<8x128xf32>
    %52 = arith.subf %51, %43 : vector<8x128xf32>
    %53 = arith.mulf %52, %50 : vector<8x128xf32>
    %54 = arith.mulf %43, %16 : vector<8x128xf32>
    %55 = arith.addf %53, %54 : vector<8x128xf32>
    %56 = arith.truncf %16 : vector<8x128xf32> to vector<8x128xbf16>
    %cst_28 = arith.constant dense<0.000000e+00> : vector<8x384xf32>
    %57 = tpu.matmul %56, %13, %cst_28 {dimension_numbers = #tpu.dot_dimension_numbers<[1], [0], [0], [1], [0, 0, 1, 1], [], []>} : vector<8x128xbf16>, vector<128x384xbf16>, vector<8x384xf32> -> vector<8x384xf32>
    %58 = vector.extract_strided_slice %25 {offsets = [0, 0], sizes = [8, 128], strides = [1, 1]} : vector<8x384xf32> to vector<8x128xf32>
    %59 = vector.extract_strided_slice %57 {offsets = [0, 0], sizes = [8, 128], strides = [1, 1]} : vector<8x384xf32> to vector<8x128xf32>
    %60 = arith.addf %58, %59 : vector<8x128xf32>
    %61 = arith.negf %60 : vector<8x128xf32>
    %62 = math.exp %61 : vector<8x128xf32>
    %cst_29 = arith.constant 1.000000e+00 : f32
    %63 = vector.broadcast %cst_29 : f32 to vector<8x128xf32>
    %64 = arith.addf %63, %62 : vector<8x128xf32>
    %65 = arith.divf %63, %64 : vector<8x128xf32>
    %66 = vector.extract_strided_slice %25 {offsets = [0, 128], sizes = [8, 128], strides = [1, 1]} : vector<8x384xf32> to vector<8x128xf32>
    %67 = vector.extract_strided_slice %57 {offsets = [0, 128], sizes = [8, 128], strides = [1, 1]} : vector<8x384xf32> to vector<8x128xf32>
    %68 = arith.addf %66, %67 : vector<8x128xf32>
    %69 = arith.negf %68 : vector<8x128xf32>
    %70 = math.exp %69 : vector<8x128xf32>
    %cst_30 = arith.constant 1.000000e+00 : f32
    %71 = vector.broadcast %cst_30 : f32 to vector<8x128xf32>
    %72 = arith.addf %71, %70 : vector<8x128xf32>
    %73 = arith.divf %71, %72 : vector<8x128xf32>
    %74 = vector.extract_strided_slice %25 {offsets = [0, 256], sizes = [8, 128], strides = [1, 1]} : vector<8x384xf32> to vector<8x128xf32>
    %75 = vector.extract_strided_slice %57 {offsets = [0, 256], sizes = [8, 128], strides = [1, 1]} : vector<8x384xf32> to vector<8x128xf32>
    %76 = vector.broadcast %15 : vector<1x128xf32> to vector<8x128xf32>
    %77 = arith.addf %75, %76 : vector<8x128xf32>
    %78 = arith.mulf %65, %77 : vector<8x128xf32>
    %79 = arith.addf %74, %78 : vector<8x128xf32>
    %80 = math.tanh %79 : vector<8x128xf32>
    %cst_31 = arith.constant 1.000000e+00 : f32
    %81 = vector.broadcast %cst_31 : f32 to vector<8x128xf32>
    %82 = arith.subf %81, %73 : vector<8x128xf32>
    %83 = arith.mulf %82, %80 : vector<8x128xf32>
    %84 = arith.mulf %73, %16 : vector<8x128xf32>
    %85 = arith.addf %83, %84 : vector<8x128xf32>
    %86 = vector.broadcast %c0_i32 : i32 to vector<8x1xi32>
    %87 = arith.cmpi slt, %86, %0 : vector<8x1xi32>
    %88 = vector.shape_cast %87 : vector<8x1xi1> to vector<8x1xi1>
    %89 = vector.broadcast %88 : vector<8x1xi1> to vector<8x128xi1>
    %90 = arith.select %89, %55, %16 : vector<8x128xi1>, vector<8x128xf32>
    %91 = vector.broadcast %17 : i32 to vector<8x1xi32>
    %92 = arith.cmpi slt, %91, %0 : vector<8x1xi32>
    %93 = vector.shape_cast %92 : vector<8x1xi1> to vector<8x1xi1>
    %94 = vector.broadcast %93 : vector<8x1xi1> to vector<8x128xi1>
    %95 = arith.select %94, %85, %16 : vector<8x128xi1>, vector<8x128xf32>
    %c1_i32 = arith.constant 1 : i32
    %c7_i32_32 = arith.constant 7 : i32
    %96 = arith.subi %c7_i32_32, %c1_i32 : i32
    %c8_i32_33 = arith.constant 8 : i32
    %97 = arith.muli %c1_i32, %c8_i32_33 : i32
    %98 = tpu.assume_multiple %97, 8 : i32
    %c8_i32_34 = arith.constant 8 : i32
    %99 = arith.muli %96, %c8_i32_34 : i32
    %100 = tpu.assume_multiple %99, 8 : i32
    %101 = arith.index_cast %98 : i32 to index
    %c0_35 = arith.constant 0 : index
    %102 = vector.load %arg19[%101, %c0_35] : memref<64x384xf32, #tpu.memory_space<vmem>>, vector<8x384xf32>
    %103 = arith.index_cast %100 : i32 to index
    %c0_36 = arith.constant 0 : index
    %104 = vector.load %arg20[%103, %c0_36] : memref<64x384xf32, #tpu.memory_space<vmem>>, vector<8x384xf32>
    %105 = arith.truncf %90 : vector<8x128xf32> to vector<8x128xbf16>
    %cst_37 = arith.constant dense<0.000000e+00> : vector<8x384xf32>
    %106 = tpu.matmul %105, %12, %cst_37 {dimension_numbers = #tpu.dot_dimension_numbers<[1], [0], [0], [1], [0, 0, 1, 1], [], []>} : vector<8x128xbf16>, vector<128x384xbf16>, vector<8x384xf32> -> vector<8x384xf32>
    %107 = vector.extract_strided_slice %102 {offsets = [0, 0], sizes = [8, 128], strides = [1, 1]} : vector<8x384xf32> to vector<8x128xf32>
    %108 = vector.extract_strided_slice %106 {offsets = [0, 0], sizes = [8, 128], strides = [1, 1]} : vector<8x384xf32> to vector<8x128xf32>
    %109 = arith.addf %107, %108 : vector<8x128xf32>
    %110 = arith.negf %109 : vector<8x128xf32>
    %111 = math.exp %110 : vector<8x128xf32>
    %cst_38 = arith.constant 1.000000e+00 : f32
    %112 = vector.broadcast %cst_38 : f32 to vector<8x128xf32>
    %113 = arith.addf %112, %111 : vector<8x128xf32>
    %114 = arith.divf %112, %113 : vector<8x128xf32>
    %115 = vector.extract_strided_slice %102 {offsets = [0, 128], sizes = [8, 128], strides = [1, 1]} : vector<8x384xf32> to vector<8x128xf32>
    %116 = vector.extract_strided_slice %106 {offsets = [0, 128], sizes = [8, 128], strides = [1, 1]} : vector<8x384xf32> to vector<8x128xf32>
    %117 = arith.addf %115, %116 : vector<8x128xf32>
    %118 = arith.negf %117 : vector<8x128xf32>
    %119 = math.exp %118 : vector<8x128xf32>
    %cst_39 = arith.constant 1.000000e+00 : f32
    %120 = vector.broadcast %cst_39 : f32 to vector<8x128xf32>
    %121 = arith.addf %120, %119 : vector<8x128xf32>
    %122 = arith.divf %120, %121 : vector<8x128xf32>
    %123 = vector.extract_strided_slice %102 {offsets = [0, 256], sizes = [8, 128], strides = [1, 1]} : vector<8x384xf32> to vector<8x128xf32>
    %124 = vector.extract_strided_slice %106 {offsets = [0, 256], sizes = [8, 128], strides = [1, 1]} : vector<8x384xf32> to vector<8x128xf32>
    %125 = vector.broadcast %14 : vector<1x128xf32> to vector<8x128xf32>
    %126 = arith.addf %124, %125 : vector<8x128xf32>
    %127 = arith.mulf %114, %126 : vector<8x128xf32>
    %128 = arith.addf %123, %127 : vector<8x128xf32>
    %129 = math.tanh %128 : vector<8x128xf32>
    %cst_40 = arith.constant 1.000000e+00 : f32
    %130 = vector.broadcast %cst_40 : f32 to vector<8x128xf32>
    %131 = arith.subf %130, %122 : vector<8x128xf32>
    %132 = arith.mulf %131, %129 : vector<8x128xf32>
    %133 = arith.mulf %122, %90 : vector<8x128xf32>
    %134 = arith.addf %132, %133 : vector<8x128xf32>
    %135 = arith.truncf %95 : vector<8x128xf32> to vector<8x128xbf16>
    %cst_41 = arith.constant dense<0.000000e+00> : vector<8x384xf32>
    %136 = tpu.matmul %135, %13, %cst_41 {dimension_numbers = #tpu.dot_dimension_numbers<[1], [0], [0], [1], [0, 0, 1, 1], [], []>} : vector<8x128xbf16>, vector<128x384xbf16>, vector<8x384xf32> -> vector<8x384xf32>
    %137 = vector.extract_strided_slice %104 {offsets = [0, 0], sizes = [8, 128], strides = [1, 1]} : vector<8x384xf32> to vector<8x128xf32>
    %138 = vector.extract_strided_slice %136 {offsets = [0, 0], sizes = [8, 128], strides = [1, 1]} : vector<8x384xf32> to vector<8x128xf32>
    %139 = arith.addf %137, %138 : vector<8x128xf32>
    %140 = arith.negf %139 : vector<8x128xf32>
    %141 = math.exp %140 : vector<8x128xf32>
    %cst_42 = arith.constant 1.000000e+00 : f32
    %142 = vector.broadcast %cst_42 : f32 to vector<8x128xf32>
    %143 = arith.addf %142, %141 : vector<8x128xf32>
    %144 = arith.divf %142, %143 : vector<8x128xf32>
    %145 = vector.extract_strided_slice %104 {offsets = [0, 128], sizes = [8, 128], strides = [1, 1]} : vector<8x384xf32> to vector<8x128xf32>
    %146 = vector.extract_strided_slice %136 {offsets = [0, 128], sizes = [8, 128], strides = [1, 1]} : vector<8x384xf32> to vector<8x128xf32>
    %147 = arith.addf %145, %146 : vector<8x128xf32>
    %148 = arith.negf %147 : vector<8x128xf32>
    %149 = math.exp %148 : vector<8x128xf32>
    %cst_43 = arith.constant 1.000000e+00 : f32
    %150 = vector.broadcast %cst_43 : f32 to vector<8x128xf32>
    %151 = arith.addf %150, %149 : vector<8x128xf32>
    %152 = arith.divf %150, %151 : vector<8x128xf32>
    %153 = vector.extract_strided_slice %104 {offsets = [0, 256], sizes = [8, 128], strides = [1, 1]} : vector<8x384xf32> to vector<8x128xf32>
    %154 = vector.extract_strided_slice %136 {offsets = [0, 256], sizes = [8, 128], strides = [1, 1]} : vector<8x384xf32> to vector<8x128xf32>
    %155 = vector.broadcast %15 : vector<1x128xf32> to vector<8x128xf32>
    %156 = arith.addf %154, %155 : vector<8x128xf32>
    %157 = arith.mulf %144, %156 : vector<8x128xf32>
    %158 = arith.addf %153, %157 : vector<8x128xf32>
    %159 = math.tanh %158 : vector<8x128xf32>
    %cst_44 = arith.constant 1.000000e+00 : f32
    %160 = vector.broadcast %cst_44 : f32 to vector<8x128xf32>
    %161 = arith.subf %160, %152 : vector<8x128xf32>
    %162 = arith.mulf %161, %159 : vector<8x128xf32>
    %163 = arith.mulf %152, %95 : vector<8x128xf32>
    %164 = arith.addf %162, %163 : vector<8x128xf32>
    %165 = vector.broadcast %c1_i32 : i32 to vector<8x1xi32>
    %166 = arith.cmpi slt, %165, %0 : vector<8x1xi32>
    %167 = vector.shape_cast %166 : vector<8x1xi1> to vector<8x1xi1>
    %168 = vector.broadcast %167 : vector<8x1xi1> to vector<8x128xi1>
    %169 = arith.select %168, %134, %90 : vector<8x128xi1>, vector<8x128xf32>
    %170 = vector.broadcast %96 : i32 to vector<8x1xi32>
    %171 = arith.cmpi slt, %170, %0 : vector<8x1xi32>
    %172 = vector.shape_cast %171 : vector<8x1xi1> to vector<8x1xi1>
    %173 = vector.broadcast %172 : vector<8x1xi1> to vector<8x128xi1>
    %174 = arith.select %173, %164, %95 : vector<8x128xi1>, vector<8x128xf32>
    %c2_i32 = arith.constant 2 : i32
    %c7_i32_45 = arith.constant 7 : i32
    %175 = arith.subi %c7_i32_45, %c2_i32 : i32
    %c8_i32_46 = arith.constant 8 : i32
    %176 = arith.muli %c2_i32, %c8_i32_46 : i32
    %177 = tpu.assume_multiple %176, 8 : i32
    %c8_i32_47 = arith.constant 8 : i32
    %178 = arith.muli %175, %c8_i32_47 : i32
    %179 = tpu.assume_multiple %178, 8 : i32
    %180 = arith.index_cast %177 : i32 to index
    %c0_48 = arith.constant 0 : index
    %181 = vector.load %arg19[%180, %c0_48] : memref<64x384xf32, #tpu.memory_space<vmem>>, vector<8x384xf32>
    %182 = arith.index_cast %179 : i32 to index
    %c0_49 = arith.constant 0 : index
    %183 = vector.load %arg20[%182, %c0_49] : memref<64x384xf32, #tpu.memory_space<vmem>>, vector<8x384xf32>
    %184 = arith.truncf %169 : vector<8x128xf32> to vector<8x128xbf16>
    %cst_50 = arith.constant dense<0.000000e+00> : vector<8x384xf32>
    %185 = tpu.matmul %184, %12, %cst_50 {dimension_numbers = #tpu.dot_dimension_numbers<[1], [0], [0], [1], [0, 0, 1, 1], [], []>} : vector<8x128xbf16>, vector<128x384xbf16>, vector<8x384xf32> -> vector<8x384xf32>
    %186 = vector.extract_strided_slice %181 {offsets = [0, 0], sizes = [8, 128], strides = [1, 1]} : vector<8x384xf32> to vector<8x128xf32>
    %187 = vector.extract_strided_slice %185 {offsets = [0, 0], sizes = [8, 128], strides = [1, 1]} : vector<8x384xf32> to vector<8x128xf32>
    %188 = arith.addf %186, %187 : vector<8x128xf32>
    %189 = arith.negf %188 : vector<8x128xf32>
    %190 = math.exp %189 : vector<8x128xf32>
    %cst_51 = arith.constant 1.000000e+00 : f32
    %191 = vector.broadcast %cst_51 : f32 to vector<8x128xf32>
    %192 = arith.addf %191, %190 : vector<8x128xf32>
    %193 = arith.divf %191, %192 : vector<8x128xf32>
    %194 = vector.extract_strided_slice %181 {offsets = [0, 128], sizes = [8, 128], strides = [1, 1]} : vector<8x384xf32> to vector<8x128xf32>
    %195 = vector.extract_strided_slice %185 {offsets = [0, 128], sizes = [8, 128], strides = [1, 1]} : vector<8x384xf32> to vector<8x128xf32>
    %196 = arith.addf %194, %195 : vector<8x128xf32>
    %197 = arith.negf %196 : vector<8x128xf32>
    %198 = math.exp %197 : vector<8x128xf32>
    %cst_52 = arith.constant 1.000000e+00 : f32
    %199 = vector.broadcast %cst_52 : f32 to vector<8x128xf32>
    %200 = arith.addf %199, %198 : vector<8x128xf32>
    %201 = arith.divf %199, %200 : vector<8x128xf32>
    %202 = vector.extract_strided_slice %181 {offsets = [0, 256], sizes = [8, 128], strides = [1, 1]} : vector<8x384xf32> to vector<8x128xf32>
    %203 = vector.extract_strided_slice %185 {offsets = [0, 256], sizes = [8, 128], strides = [1, 1]} : vector<8x384xf32> to vector<8x128xf32>
    %204 = vector.broadcast %14 : vector<1x128xf32> to vector<8x128xf32>
    %205 = arith.addf %203, %204 : vector<8x128xf32>
    %206 = arith.mulf %193, %205 : vector<8x128xf32>
    %207 = arith.addf %202, %206 : vector<8x128xf32>
    %208 = math.tanh %207 : vector<8x128xf32>
    %cst_53 = arith.constant 1.000000e+00 : f32
    %209 = vector.broadcast %cst_53 : f32 to vector<8x128xf32>
    %210 = arith.subf %209, %201 : vector<8x128xf32>
    %211 = arith.mulf %210, %208 : vector<8x128xf32>
    %212 = arith.mulf %201, %169 : vector<8x128xf32>
    %213 = arith.addf %211, %212 : vector<8x128xf32>
    %214 = arith.truncf %174 : vector<8x128xf32> to vector<8x128xbf16>
    %cst_54 = arith.constant dense<0.000000e+00> : vector<8x384xf32>
    %215 = tpu.matmul %214, %13, %cst_54 {dimension_numbers = #tpu.dot_dimension_numbers<[1], [0], [0], [1], [0, 0, 1, 1], [], []>} : vector<8x128xbf16>, vector<128x384xbf16>, vector<8x384xf32> -> vector<8x384xf32>
    %216 = vector.extract_strided_slice %183 {offsets = [0, 0], sizes = [8, 128], strides = [1, 1]} : vector<8x384xf32> to vector<8x128xf32>
    %217 = vector.extract_strided_slice %215 {offsets = [0, 0], sizes = [8, 128], strides = [1, 1]} : vector<8x384xf32> to vector<8x128xf32>
    %218 = arith.addf %216, %217 : vector<8x128xf32>
    %219 = arith.negf %218 : vector<8x128xf32>
    %220 = math.exp %219 : vector<8x128xf32>
    %cst_55 = arith.constant 1.000000e+00 : f32
    %221 = vector.broadcast %cst_55 : f32 to vector<8x128xf32>
    %222 = arith.addf %221, %220 : vector<8x128xf32>
    %223 = arith.divf %221, %222 : vector<8x128xf32>
    %224 = vector.extract_strided_slice %183 {offsets = [0, 128], sizes = [8, 128], strides = [1, 1]} : vector<8x384xf32> to vector<8x128xf32>
    %225 = vector.extract_strided_slice %215 {offsets = [0, 128], sizes = [8, 128], strides = [1, 1]} : vector<8x384xf32> to vector<8x128xf32>
    %226 = arith.addf %224, %225 : vector<8x128xf32>
    %227 = arith.negf %226 : vector<8x128xf32>
    %228 = math.exp %227 : vector<8x128xf32>
    %cst_56 = arith.constant 1.000000e+00 : f32
    %229 = vector.broadcast %cst_56 : f32 to vector<8x128xf32>
    %230 = arith.addf %229, %228 : vector<8x128xf32>
    %231 = arith.divf %229, %230 : vector<8x128xf32>
    %232 = vector.extract_strided_slice %183 {offsets = [0, 256], sizes = [8, 128], strides = [1, 1]} : vector<8x384xf32> to vector<8x128xf32>
    %233 = vector.extract_strided_slice %215 {offsets = [0, 256], sizes = [8, 128], strides = [1, 1]} : vector<8x384xf32> to vector<8x128xf32>
    %234 = vector.broadcast %15 : vector<1x128xf32> to vector<8x128xf32>
    %235 = arith.addf %233, %234 : vector<8x128xf32>
    %236 = arith.mulf %223, %235 : vector<8x128xf32>
    %237 = arith.addf %232, %236 : vector<8x128xf32>
    %238 = math.tanh %237 : vector<8x128xf32>
    %cst_57 = arith.constant 1.000000e+00 : f32
    %239 = vector.broadcast %cst_57 : f32 to vector<8x128xf32>
    %240 = arith.subf %239, %231 : vector<8x128xf32>
    %241 = arith.mulf %240, %238 : vector<8x128xf32>
    %242 = arith.mulf %231, %174 : vector<8x128xf32>
    %243 = arith.addf %241, %242 : vector<8x128xf32>
    %244 = vector.broadcast %c2_i32 : i32 to vector<8x1xi32>
    %245 = arith.cmpi slt, %244, %0 : vector<8x1xi32>
    %246 = vector.shape_cast %245 : vector<8x1xi1> to vector<8x1xi1>
    %247 = vector.broadcast %246 : vector<8x1xi1> to vector<8x128xi1>
    %248 = arith.select %247, %213, %169 : vector<8x128xi1>, vector<8x128xf32>
    %249 = vector.broadcast %175 : i32 to vector<8x1xi32>
    %250 = arith.cmpi slt, %249, %0 : vector<8x1xi32>
    %251 = vector.shape_cast %250 : vector<8x1xi1> to vector<8x1xi1>
    %252 = vector.broadcast %251 : vector<8x1xi1> to vector<8x128xi1>
    %253 = arith.select %252, %243, %174 : vector<8x128xi1>, vector<8x128xf32>
    %c3_i32 = arith.constant 3 : i32
    %c7_i32_58 = arith.constant 7 : i32
    %254 = arith.subi %c7_i32_58, %c3_i32 : i32
    %c8_i32_59 = arith.constant 8 : i32
    %255 = arith.muli %c3_i32, %c8_i32_59 : i32
    %256 = tpu.assume_multiple %255, 8 : i32
    %c8_i32_60 = arith.constant 8 : i32
    %257 = arith.muli %254, %c8_i32_60 : i32
    %258 = tpu.assume_multiple %257, 8 : i32
    %259 = arith.index_cast %256 : i32 to index
    %c0_61 = arith.constant 0 : index
    %260 = vector.load %arg19[%259, %c0_61] : memref<64x384xf32, #tpu.memory_space<vmem>>, vector<8x384xf32>
    %261 = arith.index_cast %258 : i32 to index
    %c0_62 = arith.constant 0 : index
    %262 = vector.load %arg20[%261, %c0_62] : memref<64x384xf32, #tpu.memory_space<vmem>>, vector<8x384xf32>
    %263 = arith.truncf %248 : vector<8x128xf32> to vector<8x128xbf16>
    %cst_63 = arith.constant dense<0.000000e+00> : vector<8x384xf32>
    %264 = tpu.matmul %263, %12, %cst_63 {dimension_numbers = #tpu.dot_dimension_numbers<[1], [0], [0], [1], [0, 0, 1, 1], [], []>} : vector<8x128xbf16>, vector<128x384xbf16>, vector<8x384xf32> -> vector<8x384xf32>
    %265 = vector.extract_strided_slice %260 {offsets = [0, 0], sizes = [8, 128], strides = [1, 1]} : vector<8x384xf32> to vector<8x128xf32>
    %266 = vector.extract_strided_slice %264 {offsets = [0, 0], sizes = [8, 128], strides = [1, 1]} : vector<8x384xf32> to vector<8x128xf32>
    %267 = arith.addf %265, %266 : vector<8x128xf32>
    %268 = arith.negf %267 : vector<8x128xf32>
    %269 = math.exp %268 : vector<8x128xf32>
    %cst_64 = arith.constant 1.000000e+00 : f32
    %270 = vector.broadcast %cst_64 : f32 to vector<8x128xf32>
    %271 = arith.addf %270, %269 : vector<8x128xf32>
    %272 = arith.divf %270, %271 : vector<8x128xf32>
    %273 = vector.extract_strided_slice %260 {offsets = [0, 128], sizes = [8, 128], strides = [1, 1]} : vector<8x384xf32> to vector<8x128xf32>
    %274 = vector.extract_strided_slice %264 {offsets = [0, 128], sizes = [8, 128], strides = [1, 1]} : vector<8x384xf32> to vector<8x128xf32>
    %275 = arith.addf %273, %274 : vector<8x128xf32>
    %276 = arith.negf %275 : vector<8x128xf32>
    %277 = math.exp %276 : vector<8x128xf32>
    %cst_65 = arith.constant 1.000000e+00 : f32
    %278 = vector.broadcast %cst_65 : f32 to vector<8x128xf32>
    %279 = arith.addf %278, %277 : vector<8x128xf32>
    %280 = arith.divf %278, %279 : vector<8x128xf32>
    %281 = vector.extract_strided_slice %260 {offsets = [0, 256], sizes = [8, 128], strides = [1, 1]} : vector<8x384xf32> to vector<8x128xf32>
    %282 = vector.extract_strided_slice %264 {offsets = [0, 256], sizes = [8, 128], strides = [1, 1]} : vector<8x384xf32> to vector<8x128xf32>
    %283 = vector.broadcast %14 : vector<1x128xf32> to vector<8x128xf32>
    %284 = arith.addf %282, %283 : vector<8x128xf32>
    %285 = arith.mulf %272, %284 : vector<8x128xf32>
    %286 = arith.addf %281, %285 : vector<8x128xf32>
    %287 = math.tanh %286 : vector<8x128xf32>
    %cst_66 = arith.constant 1.000000e+00 : f32
    %288 = vector.broadcast %cst_66 : f32 to vector<8x128xf32>
    %289 = arith.subf %288, %280 : vector<8x128xf32>
    %290 = arith.mulf %289, %287 : vector<8x128xf32>
    %291 = arith.mulf %280, %248 : vector<8x128xf32>
    %292 = arith.addf %290, %291 : vector<8x128xf32>
    %293 = arith.truncf %253 : vector<8x128xf32> to vector<8x128xbf16>
    %cst_67 = arith.constant dense<0.000000e+00> : vector<8x384xf32>
    %294 = tpu.matmul %293, %13, %cst_67 {dimension_numbers = #tpu.dot_dimension_numbers<[1], [0], [0], [1], [0, 0, 1, 1], [], []>} : vector<8x128xbf16>, vector<128x384xbf16>, vector<8x384xf32> -> vector<8x384xf32>
    %295 = vector.extract_strided_slice %262 {offsets = [0, 0], sizes = [8, 128], strides = [1, 1]} : vector<8x384xf32> to vector<8x128xf32>
    %296 = vector.extract_strided_slice %294 {offsets = [0, 0], sizes = [8, 128], strides = [1, 1]} : vector<8x384xf32> to vector<8x128xf32>
    %297 = arith.addf %295, %296 : vector<8x128xf32>
    %298 = arith.negf %297 : vector<8x128xf32>
    %299 = math.exp %298 : vector<8x128xf32>
    %cst_68 = arith.constant 1.000000e+00 : f32
    %300 = vector.broadcast %cst_68 : f32 to vector<8x128xf32>
    %301 = arith.addf %300, %299 : vector<8x128xf32>
    %302 = arith.divf %300, %301 : vector<8x128xf32>
    %303 = vector.extract_strided_slice %262 {offsets = [0, 128], sizes = [8, 128], strides = [1, 1]} : vector<8x384xf32> to vector<8x128xf32>
    %304 = vector.extract_strided_slice %294 {offsets = [0, 128], sizes = [8, 128], strides = [1, 1]} : vector<8x384xf32> to vector<8x128xf32>
    %305 = arith.addf %303, %304 : vector<8x128xf32>
    %306 = arith.negf %305 : vector<8x128xf32>
    %307 = math.exp %306 : vector<8x128xf32>
    %cst_69 = arith.constant 1.000000e+00 : f32
    %308 = vector.broadcast %cst_69 : f32 to vector<8x128xf32>
    %309 = arith.addf %308, %307 : vector<8x128xf32>
    %310 = arith.divf %308, %309 : vector<8x128xf32>
    %311 = vector.extract_strided_slice %262 {offsets = [0, 256], sizes = [8, 128], strides = [1, 1]} : vector<8x384xf32> to vector<8x128xf32>
    %312 = vector.extract_strided_slice %294 {offsets = [0, 256], sizes = [8, 128], strides = [1, 1]} : vector<8x384xf32> to vector<8x128xf32>
    %313 = vector.broadcast %15 : vector<1x128xf32> to vector<8x128xf32>
    %314 = arith.addf %312, %313 : vector<8x128xf32>
    %315 = arith.mulf %302, %314 : vector<8x128xf32>
    %316 = arith.addf %311, %315 : vector<8x128xf32>
    %317 = math.tanh %316 : vector<8x128xf32>
    %cst_70 = arith.constant 1.000000e+00 : f32
    %318 = vector.broadcast %cst_70 : f32 to vector<8x128xf32>
    %319 = arith.subf %318, %310 : vector<8x128xf32>
    %320 = arith.mulf %319, %317 : vector<8x128xf32>
    %321 = arith.mulf %310, %253 : vector<8x128xf32>
    %322 = arith.addf %320, %321 : vector<8x128xf32>
    %323 = vector.broadcast %c3_i32 : i32 to vector<8x1xi32>
    %324 = arith.cmpi slt, %323, %0 : vector<8x1xi32>
    %325 = vector.shape_cast %324 : vector<8x1xi1> to vector<8x1xi1>
    %326 = vector.broadcast %325 : vector<8x1xi1> to vector<8x128xi1>
    %327 = arith.select %326, %292, %248 : vector<8x128xi1>, vector<8x128xf32>
    %328 = vector.broadcast %254 : i32 to vector<8x1xi32>
    %329 = arith.cmpi slt, %328, %0 : vector<8x1xi32>
    %330 = vector.shape_cast %329 : vector<8x1xi1> to vector<8x1xi1>
    %331 = vector.broadcast %330 : vector<8x1xi1> to vector<8x128xi1>
    %332 = arith.select %331, %322, %253 : vector<8x128xi1>, vector<8x128xf32>
    %c4_i32 = arith.constant 4 : i32
    %c7_i32_71 = arith.constant 7 : i32
    %333 = arith.subi %c7_i32_71, %c4_i32 : i32
    %c8_i32_72 = arith.constant 8 : i32
    %334 = arith.muli %c4_i32, %c8_i32_72 : i32
    %335 = tpu.assume_multiple %334, 8 : i32
    %c8_i32_73 = arith.constant 8 : i32
    %336 = arith.muli %333, %c8_i32_73 : i32
    %337 = tpu.assume_multiple %336, 8 : i32
    %338 = arith.index_cast %335 : i32 to index
    %c0_74 = arith.constant 0 : index
    %339 = vector.load %arg19[%338, %c0_74] : memref<64x384xf32, #tpu.memory_space<vmem>>, vector<8x384xf32>
    %340 = arith.index_cast %337 : i32 to index
    %c0_75 = arith.constant 0 : index
    %341 = vector.load %arg20[%340, %c0_75] : memref<64x384xf32, #tpu.memory_space<vmem>>, vector<8x384xf32>
    %342 = arith.truncf %327 : vector<8x128xf32> to vector<8x128xbf16>
    %cst_76 = arith.constant dense<0.000000e+00> : vector<8x384xf32>
    %343 = tpu.matmul %342, %12, %cst_76 {dimension_numbers = #tpu.dot_dimension_numbers<[1], [0], [0], [1], [0, 0, 1, 1], [], []>} : vector<8x128xbf16>, vector<128x384xbf16>, vector<8x384xf32> -> vector<8x384xf32>
    %344 = vector.extract_strided_slice %339 {offsets = [0, 0], sizes = [8, 128], strides = [1, 1]} : vector<8x384xf32> to vector<8x128xf32>
    %345 = vector.extract_strided_slice %343 {offsets = [0, 0], sizes = [8, 128], strides = [1, 1]} : vector<8x384xf32> to vector<8x128xf32>
    %346 = arith.addf %344, %345 : vector<8x128xf32>
    %347 = arith.negf %346 : vector<8x128xf32>
    %348 = math.exp %347 : vector<8x128xf32>
    %cst_77 = arith.constant 1.000000e+00 : f32
    %349 = vector.broadcast %cst_77 : f32 to vector<8x128xf32>
    %350 = arith.addf %349, %348 : vector<8x128xf32>
    %351 = arith.divf %349, %350 : vector<8x128xf32>
    %352 = vector.extract_strided_slice %339 {offsets = [0, 128], sizes = [8, 128], strides = [1, 1]} : vector<8x384xf32> to vector<8x128xf32>
    %353 = vector.extract_strided_slice %343 {offsets = [0, 128], sizes = [8, 128], strides = [1, 1]} : vector<8x384xf32> to vector<8x128xf32>
    %354 = arith.addf %352, %353 : vector<8x128xf32>
    %355 = arith.negf %354 : vector<8x128xf32>
    %356 = math.exp %355 : vector<8x128xf32>
    %cst_78 = arith.constant 1.000000e+00 : f32
    %357 = vector.broadcast %cst_78 : f32 to vector<8x128xf32>
    %358 = arith.addf %357, %356 : vector<8x128xf32>
    %359 = arith.divf %357, %358 : vector<8x128xf32>
    %360 = vector.extract_strided_slice %339 {offsets = [0, 256], sizes = [8, 128], strides = [1, 1]} : vector<8x384xf32> to vector<8x128xf32>
    %361 = vector.extract_strided_slice %343 {offsets = [0, 256], sizes = [8, 128], strides = [1, 1]} : vector<8x384xf32> to vector<8x128xf32>
    %362 = vector.broadcast %14 : vector<1x128xf32> to vector<8x128xf32>
    %363 = arith.addf %361, %362 : vector<8x128xf32>
    %364 = arith.mulf %351, %363 : vector<8x128xf32>
    %365 = arith.addf %360, %364 : vector<8x128xf32>
    %366 = math.tanh %365 : vector<8x128xf32>
    %cst_79 = arith.constant 1.000000e+00 : f32
    %367 = vector.broadcast %cst_79 : f32 to vector<8x128xf32>
    %368 = arith.subf %367, %359 : vector<8x128xf32>
    %369 = arith.mulf %368, %366 : vector<8x128xf32>
    %370 = arith.mulf %359, %327 : vector<8x128xf32>
    %371 = arith.addf %369, %370 : vector<8x128xf32>
    %372 = arith.truncf %332 : vector<8x128xf32> to vector<8x128xbf16>
    %cst_80 = arith.constant dense<0.000000e+00> : vector<8x384xf32>
    %373 = tpu.matmul %372, %13, %cst_80 {dimension_numbers = #tpu.dot_dimension_numbers<[1], [0], [0], [1], [0, 0, 1, 1], [], []>} : vector<8x128xbf16>, vector<128x384xbf16>, vector<8x384xf32> -> vector<8x384xf32>
    %374 = vector.extract_strided_slice %341 {offsets = [0, 0], sizes = [8, 128], strides = [1, 1]} : vector<8x384xf32> to vector<8x128xf32>
    %375 = vector.extract_strided_slice %373 {offsets = [0, 0], sizes = [8, 128], strides = [1, 1]} : vector<8x384xf32> to vector<8x128xf32>
    %376 = arith.addf %374, %375 : vector<8x128xf32>
    %377 = arith.negf %376 : vector<8x128xf32>
    %378 = math.exp %377 : vector<8x128xf32>
    %cst_81 = arith.constant 1.000000e+00 : f32
    %379 = vector.broadcast %cst_81 : f32 to vector<8x128xf32>
    %380 = arith.addf %379, %378 : vector<8x128xf32>
    %381 = arith.divf %379, %380 : vector<8x128xf32>
    %382 = vector.extract_strided_slice %341 {offsets = [0, 128], sizes = [8, 128], strides = [1, 1]} : vector<8x384xf32> to vector<8x128xf32>
    %383 = vector.extract_strided_slice %373 {offsets = [0, 128], sizes = [8, 128], strides = [1, 1]} : vector<8x384xf32> to vector<8x128xf32>
    %384 = arith.addf %382, %383 : vector<8x128xf32>
    %385 = arith.negf %384 : vector<8x128xf32>
    %386 = math.exp %385 : vector<8x128xf32>
    %cst_82 = arith.constant 1.000000e+00 : f32
    %387 = vector.broadcast %cst_82 : f32 to vector<8x128xf32>
    %388 = arith.addf %387, %386 : vector<8x128xf32>
    %389 = arith.divf %387, %388 : vector<8x128xf32>
    %390 = vector.extract_strided_slice %341 {offsets = [0, 256], sizes = [8, 128], strides = [1, 1]} : vector<8x384xf32> to vector<8x128xf32>
    %391 = vector.extract_strided_slice %373 {offsets = [0, 256], sizes = [8, 128], strides = [1, 1]} : vector<8x384xf32> to vector<8x128xf32>
    %392 = vector.broadcast %15 : vector<1x128xf32> to vector<8x128xf32>
    %393 = arith.addf %391, %392 : vector<8x128xf32>
    %394 = arith.mulf %381, %393 : vector<8x128xf32>
    %395 = arith.addf %390, %394 : vector<8x128xf32>
    %396 = math.tanh %395 : vector<8x128xf32>
    %cst_83 = arith.constant 1.000000e+00 : f32
    %397 = vector.broadcast %cst_83 : f32 to vector<8x128xf32>
    %398 = arith.subf %397, %389 : vector<8x128xf32>
    %399 = arith.mulf %398, %396 : vector<8x128xf32>
    %400 = arith.mulf %389, %332 : vector<8x128xf32>
    %401 = arith.addf %399, %400 : vector<8x128xf32>
    %402 = vector.broadcast %c4_i32 : i32 to vector<8x1xi32>
    %403 = arith.cmpi slt, %402, %0 : vector<8x1xi32>
    %404 = vector.shape_cast %403 : vector<8x1xi1> to vector<8x1xi1>
    %405 = vector.broadcast %404 : vector<8x1xi1> to vector<8x128xi1>
    %406 = arith.select %405, %371, %327 : vector<8x128xi1>, vector<8x128xf32>
    %407 = vector.broadcast %333 : i32 to vector<8x1xi32>
    %408 = arith.cmpi slt, %407, %0 : vector<8x1xi32>
    %409 = vector.shape_cast %408 : vector<8x1xi1> to vector<8x1xi1>
    %410 = vector.broadcast %409 : vector<8x1xi1> to vector<8x128xi1>
    %411 = arith.select %410, %401, %332 : vector<8x128xi1>, vector<8x128xf32>
    %c5_i32 = arith.constant 5 : i32
    %c7_i32_84 = arith.constant 7 : i32
    %412 = arith.subi %c7_i32_84, %c5_i32 : i32
    %c8_i32_85 = arith.constant 8 : i32
    %413 = arith.muli %c5_i32, %c8_i32_85 : i32
    %414 = tpu.assume_multiple %413, 8 : i32
    %c8_i32_86 = arith.constant 8 : i32
    %415 = arith.muli %412, %c8_i32_86 : i32
    %416 = tpu.assume_multiple %415, 8 : i32
    %417 = arith.index_cast %414 : i32 to index
    %c0_87 = arith.constant 0 : index
    %418 = vector.load %arg19[%417, %c0_87] : memref<64x384xf32, #tpu.memory_space<vmem>>, vector<8x384xf32>
    %419 = arith.index_cast %416 : i32 to index
    %c0_88 = arith.constant 0 : index
    %420 = vector.load %arg20[%419, %c0_88] : memref<64x384xf32, #tpu.memory_space<vmem>>, vector<8x384xf32>
    %421 = arith.truncf %406 : vector<8x128xf32> to vector<8x128xbf16>
    %cst_89 = arith.constant dense<0.000000e+00> : vector<8x384xf32>
    %422 = tpu.matmul %421, %12, %cst_89 {dimension_numbers = #tpu.dot_dimension_numbers<[1], [0], [0], [1], [0, 0, 1, 1], [], []>} : vector<8x128xbf16>, vector<128x384xbf16>, vector<8x384xf32> -> vector<8x384xf32>
    %423 = vector.extract_strided_slice %418 {offsets = [0, 0], sizes = [8, 128], strides = [1, 1]} : vector<8x384xf32> to vector<8x128xf32>
    %424 = vector.extract_strided_slice %422 {offsets = [0, 0], sizes = [8, 128], strides = [1, 1]} : vector<8x384xf32> to vector<8x128xf32>
    %425 = arith.addf %423, %424 : vector<8x128xf32>
    %426 = arith.negf %425 : vector<8x128xf32>
    %427 = math.exp %426 : vector<8x128xf32>
    %cst_90 = arith.constant 1.000000e+00 : f32
    %428 = vector.broadcast %cst_90 : f32 to vector<8x128xf32>
    %429 = arith.addf %428, %427 : vector<8x128xf32>
    %430 = arith.divf %428, %429 : vector<8x128xf32>
    %431 = vector.extract_strided_slice %418 {offsets = [0, 128], sizes = [8, 128], strides = [1, 1]} : vector<8x384xf32> to vector<8x128xf32>
    %432 = vector.extract_strided_slice %422 {offsets = [0, 128], sizes = [8, 128], strides = [1, 1]} : vector<8x384xf32> to vector<8x128xf32>
    %433 = arith.addf %431, %432 : vector<8x128xf32>
    %434 = arith.negf %433 : vector<8x128xf32>
    %435 = math.exp %434 : vector<8x128xf32>
    %cst_91 = arith.constant 1.000000e+00 : f32
    %436 = vector.broadcast %cst_91 : f32 to vector<8x128xf32>
    %437 = arith.addf %436, %435 : vector<8x128xf32>
    %438 = arith.divf %436, %437 : vector<8x128xf32>
    %439 = vector.extract_strided_slice %418 {offsets = [0, 256], sizes = [8, 128], strides = [1, 1]} : vector<8x384xf32> to vector<8x128xf32>
    %440 = vector.extract_strided_slice %422 {offsets = [0, 256], sizes = [8, 128], strides = [1, 1]} : vector<8x384xf32> to vector<8x128xf32>
    %441 = vector.broadcast %14 : vector<1x128xf32> to vector<8x128xf32>
    %442 = arith.addf %440, %441 : vector<8x128xf32>
    %443 = arith.mulf %430, %442 : vector<8x128xf32>
    %444 = arith.addf %439, %443 : vector<8x128xf32>
    %445 = math.tanh %444 : vector<8x128xf32>
    %cst_92 = arith.constant 1.000000e+00 : f32
    %446 = vector.broadcast %cst_92 : f32 to vector<8x128xf32>
    %447 = arith.subf %446, %438 : vector<8x128xf32>
    %448 = arith.mulf %447, %445 : vector<8x128xf32>
    %449 = arith.mulf %438, %406 : vector<8x128xf32>
    %450 = arith.addf %448, %449 : vector<8x128xf32>
    %451 = arith.truncf %411 : vector<8x128xf32> to vector<8x128xbf16>
    %cst_93 = arith.constant dense<0.000000e+00> : vector<8x384xf32>
    %452 = tpu.matmul %451, %13, %cst_93 {dimension_numbers = #tpu.dot_dimension_numbers<[1], [0], [0], [1], [0, 0, 1, 1], [], []>} : vector<8x128xbf16>, vector<128x384xbf16>, vector<8x384xf32> -> vector<8x384xf32>
    %453 = vector.extract_strided_slice %420 {offsets = [0, 0], sizes = [8, 128], strides = [1, 1]} : vector<8x384xf32> to vector<8x128xf32>
    %454 = vector.extract_strided_slice %452 {offsets = [0, 0], sizes = [8, 128], strides = [1, 1]} : vector<8x384xf32> to vector<8x128xf32>
    %455 = arith.addf %453, %454 : vector<8x128xf32>
    %456 = arith.negf %455 : vector<8x128xf32>
    %457 = math.exp %456 : vector<8x128xf32>
    %cst_94 = arith.constant 1.000000e+00 : f32
    %458 = vector.broadcast %cst_94 : f32 to vector<8x128xf32>
    %459 = arith.addf %458, %457 : vector<8x128xf32>
    %460 = arith.divf %458, %459 : vector<8x128xf32>
    %461 = vector.extract_strided_slice %420 {offsets = [0, 128], sizes = [8, 128], strides = [1, 1]} : vector<8x384xf32> to vector<8x128xf32>
    %462 = vector.extract_strided_slice %452 {offsets = [0, 128], sizes = [8, 128], strides = [1, 1]} : vector<8x384xf32> to vector<8x128xf32>
    %463 = arith.addf %461, %462 : vector<8x128xf32>
    %464 = arith.negf %463 : vector<8x128xf32>
    %465 = math.exp %464 : vector<8x128xf32>
    %cst_95 = arith.constant 1.000000e+00 : f32
    %466 = vector.broadcast %cst_95 : f32 to vector<8x128xf32>
    %467 = arith.addf %466, %465 : vector<8x128xf32>
    %468 = arith.divf %466, %467 : vector<8x128xf32>
    %469 = vector.extract_strided_slice %420 {offsets = [0, 256], sizes = [8, 128], strides = [1, 1]} : vector<8x384xf32> to vector<8x128xf32>
    %470 = vector.extract_strided_slice %452 {offsets = [0, 256], sizes = [8, 128], strides = [1, 1]} : vector<8x384xf32> to vector<8x128xf32>
    %471 = vector.broadcast %15 : vector<1x128xf32> to vector<8x128xf32>
    %472 = arith.addf %470, %471 : vector<8x128xf32>
    %473 = arith.mulf %460, %472 : vector<8x128xf32>
    %474 = arith.addf %469, %473 : vector<8x128xf32>
    %475 = math.tanh %474 : vector<8x128xf32>
    %cst_96 = arith.constant 1.000000e+00 : f32
    %476 = vector.broadcast %cst_96 : f32 to vector<8x128xf32>
    %477 = arith.subf %476, %468 : vector<8x128xf32>
    %478 = arith.mulf %477, %475 : vector<8x128xf32>
    %479 = arith.mulf %468, %411 : vector<8x128xf32>
    %480 = arith.addf %478, %479 : vector<8x128xf32>
    %481 = vector.broadcast %c5_i32 : i32 to vector<8x1xi32>
    %482 = arith.cmpi slt, %481, %0 : vector<8x1xi32>
    %483 = vector.shape_cast %482 : vector<8x1xi1> to vector<8x1xi1>
    %484 = vector.broadcast %483 : vector<8x1xi1> to vector<8x128xi1>
    %485 = arith.select %484, %450, %406 : vector<8x128xi1>, vector<8x128xf32>
    %486 = vector.broadcast %412 : i32 to vector<8x1xi32>
    %487 = arith.cmpi slt, %486, %0 : vector<8x1xi32>
    %488 = vector.shape_cast %487 : vector<8x1xi1> to vector<8x1xi1>
    %489 = vector.broadcast %488 : vector<8x1xi1> to vector<8x128xi1>
    %490 = arith.select %489, %480, %411 : vector<8x128xi1>, vector<8x128xf32>
    %c6_i32 = arith.constant 6 : i32
    %c7_i32_97 = arith.constant 7 : i32
    %491 = arith.subi %c7_i32_97, %c6_i32 : i32
    %c8_i32_98 = arith.constant 8 : i32
    %492 = arith.muli %c6_i32, %c8_i32_98 : i32
    %493 = tpu.assume_multiple %492, 8 : i32
    %c8_i32_99 = arith.constant 8 : i32
    %494 = arith.muli %491, %c8_i32_99 : i32
    %495 = tpu.assume_multiple %494, 8 : i32
    %496 = arith.index_cast %493 : i32 to index
    %c0_100 = arith.constant 0 : index
    %497 = vector.load %arg19[%496, %c0_100] : memref<64x384xf32, #tpu.memory_space<vmem>>, vector<8x384xf32>
    %498 = arith.index_cast %495 : i32 to index
    %c0_101 = arith.constant 0 : index
    %499 = vector.load %arg20[%498, %c0_101] : memref<64x384xf32, #tpu.memory_space<vmem>>, vector<8x384xf32>
    %500 = arith.truncf %485 : vector<8x128xf32> to vector<8x128xbf16>
    %cst_102 = arith.constant dense<0.000000e+00> : vector<8x384xf32>
    %501 = tpu.matmul %500, %12, %cst_102 {dimension_numbers = #tpu.dot_dimension_numbers<[1], [0], [0], [1], [0, 0, 1, 1], [], []>} : vector<8x128xbf16>, vector<128x384xbf16>, vector<8x384xf32> -> vector<8x384xf32>
    %502 = vector.extract_strided_slice %497 {offsets = [0, 0], sizes = [8, 128], strides = [1, 1]} : vector<8x384xf32> to vector<8x128xf32>
    %503 = vector.extract_strided_slice %501 {offsets = [0, 0], sizes = [8, 128], strides = [1, 1]} : vector<8x384xf32> to vector<8x128xf32>
    %504 = arith.addf %502, %503 : vector<8x128xf32>
    %505 = arith.negf %504 : vector<8x128xf32>
    %506 = math.exp %505 : vector<8x128xf32>
    %cst_103 = arith.constant 1.000000e+00 : f32
    %507 = vector.broadcast %cst_103 : f32 to vector<8x128xf32>
    %508 = arith.addf %507, %506 : vector<8x128xf32>
    %509 = arith.divf %507, %508 : vector<8x128xf32>
    %510 = vector.extract_strided_slice %497 {offsets = [0, 128], sizes = [8, 128], strides = [1, 1]} : vector<8x384xf32> to vector<8x128xf32>
    %511 = vector.extract_strided_slice %501 {offsets = [0, 128], sizes = [8, 128], strides = [1, 1]} : vector<8x384xf32> to vector<8x128xf32>
    %512 = arith.addf %510, %511 : vector<8x128xf32>
    %513 = arith.negf %512 : vector<8x128xf32>
    %514 = math.exp %513 : vector<8x128xf32>
    %cst_104 = arith.constant 1.000000e+00 : f32
    %515 = vector.broadcast %cst_104 : f32 to vector<8x128xf32>
    %516 = arith.addf %515, %514 : vector<8x128xf32>
    %517 = arith.divf %515, %516 : vector<8x128xf32>
    %518 = vector.extract_strided_slice %497 {offsets = [0, 256], sizes = [8, 128], strides = [1, 1]} : vector<8x384xf32> to vector<8x128xf32>
    %519 = vector.extract_strided_slice %501 {offsets = [0, 256], sizes = [8, 128], strides = [1, 1]} : vector<8x384xf32> to vector<8x128xf32>
    %520 = vector.broadcast %14 : vector<1x128xf32> to vector<8x128xf32>
    %521 = arith.addf %519, %520 : vector<8x128xf32>
    %522 = arith.mulf %509, %521 : vector<8x128xf32>
    %523 = arith.addf %518, %522 : vector<8x128xf32>
    %524 = math.tanh %523 : vector<8x128xf32>
    %cst_105 = arith.constant 1.000000e+00 : f32
    %525 = vector.broadcast %cst_105 : f32 to vector<8x128xf32>
    %526 = arith.subf %525, %517 : vector<8x128xf32>
    %527 = arith.mulf %526, %524 : vector<8x128xf32>
    %528 = arith.mulf %517, %485 : vector<8x128xf32>
    %529 = arith.addf %527, %528 : vector<8x128xf32>
    %530 = arith.truncf %490 : vector<8x128xf32> to vector<8x128xbf16>
    %cst_106 = arith.constant dense<0.000000e+00> : vector<8x384xf32>
    %531 = tpu.matmul %530, %13, %cst_106 {dimension_numbers = #tpu.dot_dimension_numbers<[1], [0], [0], [1], [0, 0, 1, 1], [], []>} : vector<8x128xbf16>, vector<128x384xbf16>, vector<8x384xf32> -> vector<8x384xf32>
    %532 = vector.extract_strided_slice %499 {offsets = [0, 0], sizes = [8, 128], strides = [1, 1]} : vector<8x384xf32> to vector<8x128xf32>
    %533 = vector.extract_strided_slice %531 {offsets = [0, 0], sizes = [8, 128], strides = [1, 1]} : vector<8x384xf32> to vector<8x128xf32>
    %534 = arith.addf %532, %533 : vector<8x128xf32>
    %535 = arith.negf %534 : vector<8x128xf32>
    %536 = math.exp %535 : vector<8x128xf32>
    %cst_107 = arith.constant 1.000000e+00 : f32
    %537 = vector.broadcast %cst_107 : f32 to vector<8x128xf32>
    %538 = arith.addf %537, %536 : vector<8x128xf32>
    %539 = arith.divf %537, %538 : vector<8x128xf32>
    %540 = vector.extract_strided_slice %499 {offsets = [0, 128], sizes = [8, 128], strides = [1, 1]} : vector<8x384xf32> to vector<8x128xf32>
    %541 = vector.extract_strided_slice %531 {offsets = [0, 128], sizes = [8, 128], strides = [1, 1]} : vector<8x384xf32> to vector<8x128xf32>
    %542 = arith.addf %540, %541 : vector<8x128xf32>
    %543 = arith.negf %542 : vector<8x128xf32>
    %544 = math.exp %543 : vector<8x128xf32>
    %cst_108 = arith.constant 1.000000e+00 : f32
    %545 = vector.broadcast %cst_108 : f32 to vector<8x128xf32>
    %546 = arith.addf %545, %544 : vector<8x128xf32>
    %547 = arith.divf %545, %546 : vector<8x128xf32>
    %548 = vector.extract_strided_slice %499 {offsets = [0, 256], sizes = [8, 128], strides = [1, 1]} : vector<8x384xf32> to vector<8x128xf32>
    %549 = vector.extract_strided_slice %531 {offsets = [0, 256], sizes = [8, 128], strides = [1, 1]} : vector<8x384xf32> to vector<8x128xf32>
    %550 = vector.broadcast %15 : vector<1x128xf32> to vector<8x128xf32>
    %551 = arith.addf %549, %550 : vector<8x128xf32>
    %552 = arith.mulf %539, %551 : vector<8x128xf32>
    %553 = arith.addf %548, %552 : vector<8x128xf32>
    %554 = math.tanh %553 : vector<8x128xf32>
    %cst_109 = arith.constant 1.000000e+00 : f32
    %555 = vector.broadcast %cst_109 : f32 to vector<8x128xf32>
    %556 = arith.subf %555, %547 : vector<8x128xf32>
    %557 = arith.mulf %556, %554 : vector<8x128xf32>
    %558 = arith.mulf %547, %490 : vector<8x128xf32>
    %559 = arith.addf %557, %558 : vector<8x128xf32>
    %560 = vector.broadcast %c6_i32 : i32 to vector<8x1xi32>
    %561 = arith.cmpi slt, %560, %0 : vector<8x1xi32>
    %562 = vector.shape_cast %561 : vector<8x1xi1> to vector<8x1xi1>
    %563 = vector.broadcast %562 : vector<8x1xi1> to vector<8x128xi1>
    %564 = arith.select %563, %529, %485 : vector<8x128xi1>, vector<8x128xf32>
    %565 = vector.broadcast %491 : i32 to vector<8x1xi32>
    %566 = arith.cmpi slt, %565, %0 : vector<8x1xi32>
    %567 = vector.shape_cast %566 : vector<8x1xi1> to vector<8x1xi1>
    %568 = vector.broadcast %567 : vector<8x1xi1> to vector<8x128xi1>
    %569 = arith.select %568, %559, %490 : vector<8x128xi1>, vector<8x128xf32>
    %c7_i32_110 = arith.constant 7 : i32
    %c7_i32_111 = arith.constant 7 : i32
    %570 = arith.subi %c7_i32_111, %c7_i32_110 : i32
    %c8_i32_112 = arith.constant 8 : i32
    %571 = arith.muli %c7_i32_110, %c8_i32_112 : i32
    %572 = tpu.assume_multiple %571, 8 : i32
    %c8_i32_113 = arith.constant 8 : i32
    %573 = arith.muli %570, %c8_i32_113 : i32
    %574 = tpu.assume_multiple %573, 8 : i32
    %575 = arith.index_cast %572 : i32 to index
    %c0_114 = arith.constant 0 : index
    %576 = vector.load %arg19[%575, %c0_114] : memref<64x384xf32, #tpu.memory_space<vmem>>, vector<8x384xf32>
    %577 = arith.index_cast %574 : i32 to index
    %c0_115 = arith.constant 0 : index
    %578 = vector.load %arg20[%577, %c0_115] : memref<64x384xf32, #tpu.memory_space<vmem>>, vector<8x384xf32>
    %579 = arith.truncf %564 : vector<8x128xf32> to vector<8x128xbf16>
    %cst_116 = arith.constant dense<0.000000e+00> : vector<8x384xf32>
    %580 = tpu.matmul %579, %12, %cst_116 {dimension_numbers = #tpu.dot_dimension_numbers<[1], [0], [0], [1], [0, 0, 1, 1], [], []>} : vector<8x128xbf16>, vector<128x384xbf16>, vector<8x384xf32> -> vector<8x384xf32>
    %581 = vector.extract_strided_slice %576 {offsets = [0, 0], sizes = [8, 128], strides = [1, 1]} : vector<8x384xf32> to vector<8x128xf32>
    %582 = vector.extract_strided_slice %580 {offsets = [0, 0], sizes = [8, 128], strides = [1, 1]} : vector<8x384xf32> to vector<8x128xf32>
    %583 = arith.addf %581, %582 : vector<8x128xf32>
    %584 = arith.negf %583 : vector<8x128xf32>
    %585 = math.exp %584 : vector<8x128xf32>
    %cst_117 = arith.constant 1.000000e+00 : f32
    %586 = vector.broadcast %cst_117 : f32 to vector<8x128xf32>
    %587 = arith.addf %586, %585 : vector<8x128xf32>
    %588 = arith.divf %586, %587 : vector<8x128xf32>
    %589 = vector.extract_strided_slice %576 {offsets = [0, 128], sizes = [8, 128], strides = [1, 1]} : vector<8x384xf32> to vector<8x128xf32>
    %590 = vector.extract_strided_slice %580 {offsets = [0, 128], sizes = [8, 128], strides = [1, 1]} : vector<8x384xf32> to vector<8x128xf32>
    %591 = arith.addf %589, %590 : vector<8x128xf32>
    %592 = arith.negf %591 : vector<8x128xf32>
    %593 = math.exp %592 : vector<8x128xf32>
    %cst_118 = arith.constant 1.000000e+00 : f32
    %594 = vector.broadcast %cst_118 : f32 to vector<8x128xf32>
    %595 = arith.addf %594, %593 : vector<8x128xf32>
    %596 = arith.divf %594, %595 : vector<8x128xf32>
    %597 = vector.extract_strided_slice %576 {offsets = [0, 256], sizes = [8, 128], strides = [1, 1]} : vector<8x384xf32> to vector<8x128xf32>
    %598 = vector.extract_strided_slice %580 {offsets = [0, 256], sizes = [8, 128], strides = [1, 1]} : vector<8x384xf32> to vector<8x128xf32>
    %599 = vector.broadcast %14 : vector<1x128xf32> to vector<8x128xf32>
    %600 = arith.addf %598, %599 : vector<8x128xf32>
    %601 = arith.mulf %588, %600 : vector<8x128xf32>
    %602 = arith.addf %597, %601 : vector<8x128xf32>
    %603 = math.tanh %602 : vector<8x128xf32>
    %cst_119 = arith.constant 1.000000e+00 : f32
    %604 = vector.broadcast %cst_119 : f32 to vector<8x128xf32>
    %605 = arith.subf %604, %596 : vector<8x128xf32>
    %606 = arith.mulf %605, %603 : vector<8x128xf32>
    %607 = arith.mulf %596, %564 : vector<8x128xf32>
    %608 = arith.addf %606, %607 : vector<8x128xf32>
    %609 = arith.truncf %569 : vector<8x128xf32> to vector<8x128xbf16>
    %cst_120 = arith.constant dense<0.000000e+00> : vector<8x384xf32>
    %610 = tpu.matmul %609, %13, %cst_120 {dimension_numbers = #tpu.dot_dimension_numbers<[1], [0], [0], [1], [0, 0, 1, 1], [], []>} : vector<8x128xbf16>, vector<128x384xbf16>, vector<8x384xf32> -> vector<8x384xf32>
    %611 = vector.extract_strided_slice %578 {offsets = [0, 0], sizes = [8, 128], strides = [1, 1]} : vector<8x384xf32> to vector<8x128xf32>
    %612 = vector.extract_strided_slice %610 {offsets = [0, 0], sizes = [8, 128], strides = [1, 1]} : vector<8x384xf32> to vector<8x128xf32>
    %613 = arith.addf %611, %612 : vector<8x128xf32>
    %614 = arith.negf %613 : vector<8x128xf32>
    %615 = math.exp %614 : vector<8x128xf32>
    %cst_121 = arith.constant 1.000000e+00 : f32
    %616 = vector.broadcast %cst_121 : f32 to vector<8x128xf32>
    %617 = arith.addf %616, %615 : vector<8x128xf32>
    %618 = arith.divf %616, %617 : vector<8x128xf32>
    %619 = vector.extract_strided_slice %578 {offsets = [0, 128], sizes = [8, 128], strides = [1, 1]} : vector<8x384xf32> to vector<8x128xf32>
    %620 = vector.extract_strided_slice %610 {offsets = [0, 128], sizes = [8, 128], strides = [1, 1]} : vector<8x384xf32> to vector<8x128xf32>
    %621 = arith.addf %619, %620 : vector<8x128xf32>
    %622 = arith.negf %621 : vector<8x128xf32>
    %623 = math.exp %622 : vector<8x128xf32>
    %cst_122 = arith.constant 1.000000e+00 : f32
    %624 = vector.broadcast %cst_122 : f32 to vector<8x128xf32>
    %625 = arith.addf %624, %623 : vector<8x128xf32>
    %626 = arith.divf %624, %625 : vector<8x128xf32>
    %627 = vector.extract_strided_slice %578 {offsets = [0, 256], sizes = [8, 128], strides = [1, 1]} : vector<8x384xf32> to vector<8x128xf32>
    %628 = vector.extract_strided_slice %610 {offsets = [0, 256], sizes = [8, 128], strides = [1, 1]} : vector<8x384xf32> to vector<8x128xf32>
    %629 = vector.broadcast %15 : vector<1x128xf32> to vector<8x128xf32>
    %630 = arith.addf %628, %629 : vector<8x128xf32>
    %631 = arith.mulf %618, %630 : vector<8x128xf32>
    %632 = arith.addf %627, %631 : vector<8x128xf32>
    %633 = math.tanh %632 : vector<8x128xf32>
    %cst_123 = arith.constant 1.000000e+00 : f32
    %634 = vector.broadcast %cst_123 : f32 to vector<8x128xf32>
    %635 = arith.subf %634, %626 : vector<8x128xf32>
    %636 = arith.mulf %635, %633 : vector<8x128xf32>
    %637 = arith.mulf %626, %569 : vector<8x128xf32>
    %638 = arith.addf %636, %637 : vector<8x128xf32>
    %639 = vector.broadcast %c7_i32_110 : i32 to vector<8x1xi32>
    %640 = arith.cmpi slt, %639, %0 : vector<8x1xi32>
    %641 = vector.shape_cast %640 : vector<8x1xi1> to vector<8x1xi1>
    %642 = vector.broadcast %641 : vector<8x1xi1> to vector<8x128xi1>
    %643 = arith.select %642, %608, %564 : vector<8x128xi1>, vector<8x128xf32>
    %644 = vector.broadcast %570 : i32 to vector<8x1xi32>
    %645 = arith.cmpi slt, %644, %0 : vector<8x1xi32>
    %646 = vector.shape_cast %645 : vector<8x1xi1> to vector<8x1xi1>
    %647 = vector.broadcast %646 : vector<8x1xi1> to vector<8x128xi1>
    %648 = arith.select %647, %638, %569 : vector<8x128xi1>, vector<8x128xf32>
    %c8_i32_124 = arith.constant 8 : i32
    %c0_125 = arith.constant 0 : index
    %c0_126 = arith.constant 0 : index
    %649 = vector.load %arg2[%c0_125, %c0_126] : memref<8x16xbf16, #tpu.memory_space<vmem>>, vector<8x16xbf16>
    %c0_127 = arith.constant 0 : index
    %c0_128 = arith.constant 0 : index
    %650 = vector.load %arg10[%c0_127, %c0_128] : memref<16x128xbf16, #tpu.memory_space<vmem>>, vector<16x128xbf16>
    %cst_129 = arith.constant dense<0.000000e+00> : vector<8x128xf32>
    %651 = tpu.matmul %649, %650, %cst_129 {dimension_numbers = #tpu.dot_dimension_numbers<[1], [0], [0], [1], [0, 0, 1, 1], [], []>} : vector<8x16xbf16>, vector<16x128xbf16>, vector<8x128xf32> -> vector<8x128xf32>
    %c0_130 = arith.constant 0 : index
    %c0_131 = arith.constant 0 : index
    %652 = vector.load %arg11[%c0_130, %c0_131] : memref<1x128xf32, #tpu.memory_space<vmem>>, vector<1x128xf32>
    %653 = vector.broadcast %652 : vector<1x128xf32> to vector<8x128xf32>
    %654 = arith.addf %651, %653 : vector<8x128xf32>
    %cst_132 = arith.constant 0.000000e+00 : f32
    %655 = vector.broadcast %cst_132 : f32 to vector<8x128xf32>
    %656 = arith.maximumf %654, %655 : vector<8x128xf32>
    %657 = arith.truncf %656 : vector<8x128xf32> to vector<8x128xbf16>
    %c0_133 = arith.constant 0 : index
    %c0_134 = arith.constant 0 : index
    %658 = vector.load %arg12[%c0_133, %c0_134] : memref<128x128xbf16, #tpu.memory_space<vmem>>, vector<128x128xbf16>
    %cst_135 = arith.constant dense<0.000000e+00> : vector<8x128xf32>
    %659 = tpu.matmul %657, %658, %cst_135 {dimension_numbers = #tpu.dot_dimension_numbers<[1], [0], [0], [1], [0, 0, 1, 1], [], []>} : vector<8x128xbf16>, vector<128x128xbf16>, vector<8x128xf32> -> vector<8x128xf32>
    %c0_136 = arith.constant 0 : index
    %c0_137 = arith.constant 0 : index
    %660 = vector.load %arg13[%c0_136, %c0_137] : memref<1x128xf32, #tpu.memory_space<vmem>>, vector<1x128xf32>
    %661 = vector.broadcast %660 : vector<1x128xf32> to vector<8x128xf32>
    %662 = arith.addf %659, %661 : vector<8x128xf32>
    %c0_138 = arith.constant 0 : index
    %c0_139 = arith.constant 0 : index
    %663 = vector.load %arg21[%c0_138, %c0_139] : memref<8x384xf32, #tpu.memory_space<vmem>>, vector<8x128xf32>
    tpu.vector_store %arg21[%c0_138, %c0_139], %643 {strides = array<i32>} : memref<8x384xf32, #tpu.memory_space<vmem>>, vector<8x128xf32>,
    %c0_140 = arith.constant 0 : index
    %c128 = arith.constant 128 : index
    %664 = vector.load %arg21[%c0_140, %c128] : memref<8x384xf32, #tpu.memory_space<vmem>>, vector<8x128xf32>
    tpu.vector_store %arg21[%c0_140, %c128], %648 {strides = array<i32>} : memref<8x384xf32, #tpu.memory_space<vmem>>, vector<8x128xf32>,
    %c0_141 = arith.constant 0 : index
    %c256 = arith.constant 256 : index
    %665 = vector.load %arg21[%c0_141, %c256] : memref<8x384xf32, #tpu.memory_space<vmem>>, vector<8x128xf32>
    tpu.vector_store %arg21[%c0_141, %c256], %662 {strides = array<i32>} : memref<8x384xf32, #tpu.memory_space<vmem>>, vector<8x128xf32>,
    %c0_142 = arith.constant 0 : index
    %c0_143 = arith.constant 0 : index
    %666 = vector.load %arg21[%c0_142, %c0_143] : memref<8x384xf32, #tpu.memory_space<vmem>>, vector<8x384xf32>
    %cst_144 = arith.constant dense<0.000000e+00> : vector<8xf32>
    %667 = vector.multi_reduction <add>, %666, %cst_144 [1] : vector<8x384xf32> to vector<8xf32>
    %668 = vector.shape_cast %667 : vector<8xf32> to vector<8x1xf32>
    %cst_145 = arith.constant 3.840000e+02 : f32
    %669 = vector.broadcast %cst_145 : f32 to vector<8x1xf32>
    %670 = arith.divf %668, %669 : vector<8x1xf32>
    %671 = vector.broadcast %670 : vector<8x1xf32> to vector<8x384xf32>
    %672 = arith.subf %666, %671 : vector<8x384xf32>
    %673 = arith.mulf %672, %672 : vector<8x384xf32>
    %cst_146 = arith.constant dense<0.000000e+00> : vector<8xf32>
    %674 = vector.multi_reduction <add>, %673, %cst_146 [1] : vector<8x384xf32> to vector<8xf32>
    %675 = vector.shape_cast %674 : vector<8xf32> to vector<8x1xf32>
    %cst_147 = arith.constant 3.840000e+02 : f32
    %676 = vector.broadcast %cst_147 : f32 to vector<8x1xf32>
    %677 = arith.divf %675, %676 : vector<8x1xf32>
    %678 = vector.broadcast %670 : vector<8x1xf32> to vector<8x384xf32>
    %679 = arith.subf %666, %678 : vector<8x384xf32>
    %cst_148 = arith.constant 9.99999974E-6 : f32
    %680 = vector.broadcast %cst_148 : f32 to vector<8x1xf32>
    %681 = arith.addf %677, %680 : vector<8x1xf32>
    %682 = math.rsqrt %681 : vector<8x1xf32>
    %683 = vector.broadcast %682 : vector<8x1xf32> to vector<8x384xf32>
    %684 = arith.mulf %679, %683 : vector<8x384xf32>
    %c0_149 = arith.constant 0 : index
    %c0_150 = arith.constant 0 : index
    %685 = vector.load %arg14[%c0_149, %c0_150] : memref<1x384xf32, #tpu.memory_space<vmem>>, vector<1x384xf32>
    %686 = vector.broadcast %685 : vector<1x384xf32> to vector<8x384xf32>
    %687 = arith.mulf %684, %686 : vector<8x384xf32>
    %c0_151 = arith.constant 0 : index
    %c0_152 = arith.constant 0 : index
    %688 = vector.load %arg15[%c0_151, %c0_152] : memref<1x384xf32, #tpu.memory_space<vmem>>, vector<1x384xf32>
    %689 = vector.broadcast %688 : vector<1x384xf32> to vector<8x384xf32>
    %690 = arith.addf %687, %689 : vector<8x384xf32>
    %c0_153 = arith.constant 0 : index
    %c0_154 = arith.constant 0 : index
    %691 = vector.load %arg16[%c0_153, %c0_154] : memref<384x1xf32, #tpu.memory_space<vmem>>, vector<384x1xf32>
    %cst_155 = arith.constant dense<0.000000e+00> : vector<8x1xf32>
    %692 = tpu.matmul %690, %691, %cst_155 {dimension_numbers = #tpu.dot_dimension_numbers<[1], [0], [0], [1], [0, 0, 1, 1], [], []>} : vector<8x384xf32>, vector<384x1xf32>, vector<8x1xf32> -> vector<8x1xf32>
    %c0_156 = arith.constant 0 : index
    %c0_157 = arith.constant 0 : index
    %693 = vector.load %arg17[%c0_156, %c0_157] : memref<1x1xf32, #tpu.memory_space<vmem>>, vector<1x1xf32>
    %694 = vector.broadcast %693 : vector<1x1xf32> to vector<8x1xf32>
    %695 = arith.addf %692, %694 : vector<8x1xf32>
    %c0_158 = arith.constant 0 : index
    %c0_159 = arith.constant 0 : index
    %696 = vector.load %arg18[%c0_158, %c0_159] : memref<8x1xf32, #tpu.memory_space<vmem>>, vector<8x1xf32>
    tpu.vector_store %arg18[%c0_158, %c0_159], %695 {strides = array<i32>} : memref<8x1xf32, #tpu.memory_space<vmem>>, vector<8x1xf32>,
    return
  }
  func.func @transform_0(%arg0: i32) -> (i32, i32, i32) {
    %c0_i32 = arith.constant 0 : i32
    %c0_i32_0 = arith.constant 0 : i32
    %c0_i32_1 = arith.constant 0 : i32
    return %arg0, %c0_i32, %c0_i32_0 : i32, i32, i32
  }
  func.func @transform_1(%arg0: i32) -> (i32, i32) {
    %c0_i32 = arith.constant 0 : i32
    %c0_i32_0 = arith.constant 0 : i32
    return %arg0, %c0_i32 : i32, i32
  }
  func.func @transform_2(%arg0: i32) -> (i32, i32) {
    %c0_i32 = arith.constant 0 : i32
    %c0_i32_0 = arith.constant 0 : i32
    return %arg0, %c0_i32 : i32, i32
  }
  func.func @transform_3(%arg0: i32) -> (i32, i32) {
    %c0_i32 = arith.constant 0 : i32
    %c0_i32_0 = arith.constant 0 : i32
    %c0_i32_1 = arith.constant 0 : i32
    return %c0_i32, %c0_i32_0 : i32, i32
  }
  func.func @transform_4(%arg0: i32) -> (i32, i32) {
    %c0_i32 = arith.constant 0 : i32
    %c0_i32_0 = arith.constant 0 : i32
    %c0_i32_1 = arith.constant 0 : i32
    return %c0_i32, %c0_i32_0 : i32, i32
  }
  func.func @transform_5(%arg0: i32) -> (i32, i32) {
    %c0_i32 = arith.constant 0 : i32
    %c0_i32_0 = arith.constant 0 : i32
    %c0_i32_1 = arith.constant 0 : i32
    return %c0_i32, %c0_i32_0 : i32, i32
  }
  func.func @transform_6(%arg0: i32) -> (i32, i32) {
    %c0_i32 = arith.constant 0 : i32
    %c0_i32_0 = arith.constant 0 : i32
    %c0_i32_1 = arith.constant 0 : i32
    return %c0_i32, %c0_i32_0 : i32, i32
  }
  func.func @transform_7(%arg0: i32) -> (i32, i32) {
    %c0_i32 = arith.constant 0 : i32
    %c0_i32_0 = arith.constant 0 : i32
    %c0_i32_1 = arith.constant 0 : i32
    return %c0_i32, %c0_i32_0 : i32, i32
  }
  func.func @transform_8(%arg0: i32) -> (i32, i32) {
    %c0_i32 = arith.constant 0 : i32
    %c0_i32_0 = arith.constant 0 : i32
    %c0_i32_1 = arith.constant 0 : i32
    return %c0_i32, %c0_i32_0 : i32, i32
  }
  func.func @transform_9(%arg0: i32) -> (i32, i32) {
    %c0_i32 = arith.constant 0 : i32
    %c0_i32_0 = arith.constant 0 : i32
    %c0_i32_1 = arith.constant 0 : i32
    return %c0_i32, %c0_i32_0 : i32, i32
  }
  func.func @transform_10(%arg0: i32) -> (i32, i32) {
    %c0_i32 = arith.constant 0 : i32
    %c0_i32_0 = arith.constant 0 : i32
    %c0_i32_1 = arith.constant 0 : i32
    return %c0_i32, %c0_i32_0 : i32, i32
  }
  func.func @transform_11(%arg0: i32) -> (i32, i32) {
    %c0_i32 = arith.constant 0 : i32
    %c0_i32_0 = arith.constant 0 : i32
    %c0_i32_1 = arith.constant 0 : i32
    return %c0_i32, %c0_i32_0 : i32, i32
  }
  func.func @transform_12(%arg0: i32) -> (i32, i32) {
    %c0_i32 = arith.constant 0 : i32
    %c0_i32_0 = arith.constant 0 : i32
    %c0_i32_1 = arith.constant 0 : i32
    return %c0_i32, %c0_i32_0 : i32, i32
  }
  func.func @transform_13(%arg0: i32) -> (i32, i32) {
    %c0_i32 = arith.constant 0 : i32
    %c0_i32_0 = arith.constant 0 : i32
    %c0_i32_1 = arith.constant 0 : i32
    return %c0_i32, %c0_i32_0 : i32, i32
  }
  func.func @transform_14(%arg0: i32) -> (i32, i32) {
    %c0_i32 = arith.constant 0 : i32
    %c0_i32_0 = arith.constant 0 : i32
    %c0_i32_1 = arith.constant 0 : i32
    return %c0_i32, %c0_i32_0 : i32, i32
  }
  func.func @transform_15(%arg0: i32) -> (i32, i32) {
    %c0_i32 = arith.constant 0 : i32
    %c0_i32_0 = arith.constant 0 : i32
    %c0_i32_1 = arith.constant 0 : i32
    return %c0_i32, %c0_i32_0 : i32, i32
  }
  func.func @transform_16(%arg0: i32) -> (i32, i32) {
    %c0_i32 = arith.constant 0 : i32
    %c0_i32_0 = arith.constant 0 : i32
    %c0_i32_1 = arith.constant 0 : i32
    return %c0_i32, %c0_i32_0 : i32, i32
  }
  func.func @transform_17(%arg0: i32) -> (i32, i32) {
    %c0_i32 = arith.constant 0 : i32
    %c0_i32_0 = arith.constant 0 : i32
    return %arg0, %c0_i32 : i32, i32
  }
}

</mosaic_0001>

<llo_original>
// kernel: tpu_custom_call.1
$region0: #{tpu_custom_call.1}
  #allocation0 [shape = 'u32[]', space=smem, size = 0x4, offset = 0x4, fixed_abs, tag = 'smem constant byte address 0x4 - core index']
  #allocation1 [shape = 'u32[144,128]{1,0:T(1,128)}', space=vmem, size = 0x12000, scoped, tag = 'internal scratch']
  #allocation2 [shape = 'f32[64,384]{1,0:T(8,128)}', space=vmem, size = 0x18000, scoped, tag = 'scratch operand']
  #allocation3 [shape = 'f32[64,384]{1,0:T(8,128)}', space=vmem, size = 0x18000, scoped, tag = 'scratch operand']
  #allocation4 [shape = 'f32[8,384]{1,0:T(8,128)}', space=vmem, size = 0x3000, scoped, tag = 'scratch operand']
  #allocation5 [shape = 'f32[1,1]{1,0:T(1,128)S(1)}', space=vmem, size = 0x200, scoped, tag = 'scoped memory for tpu_custom_call.1']
  %s0 = inlined_call_operand.vmem [shape: bf16[1,64,16], index: 0, kind: input, shape index: {}]
  %s1 = inlined_call_operand.vmem [shape: bf16[8,16], index: 1, kind: input, shape index: {}]
  %s2 = inlined_call_operand.vmem [shape: s32[8,1], index: 2, kind: input, shape index: {}]
  %s3 = inlined_call_operand.hbm [shape: bf16[16,768], index: 3, kind: input, shape index: {}]
  %s4 = inlined_call_operand.hbm [shape: f32[1,768], index: 4, kind: input, shape index: {}]
  %s5 = inlined_call_operand.vmem [shape: bf16[128,384], index: 5, kind: input, shape index: {}]
  %s6 = inlined_call_operand.vmem [shape: bf16[128,384], index: 6, kind: input, shape index: {}]
  %s7 = inlined_call_operand.hbm [shape: f32[1,128], index: 7, kind: input, shape index: {}]
  %s8 = inlined_call_operand.hbm [shape: f32[1,128], index: 8, kind: input, shape index: {}]
  %s9 = inlined_call_operand.hbm [shape: bf16[16,128], index: 9, kind: input, shape index: {}]
  %s10 = inlined_call_operand.hbm [shape: f32[1,128], index: 10, kind: input, shape index: {}]
  %s11 = inlined_call_operand.vmem [shape: bf16[128,128], index: 11, kind: input, shape index: {}]
  %s12 = inlined_call_operand.hbm [shape: f32[1,128], index: 12, kind: input, shape index: {}]
  %s13 = inlined_call_operand.vmem [shape: f32[1,384], index: 13, kind: input, shape index: {}]
  %s14 = inlined_call_operand.vmem [shape: f32[1,384], index: 14, kind: input, shape index: {}]
  %s15 = inlined_call_operand.vmem [shape: f32[384,1], index: 15, kind: input, shape index: {}]
  %s16 = inlined_call_operand.<no memory space> [shape: f32[1,1], index: 16, kind: input, shape index: {}]
  %s17 = inlined_call_operand.vmem [shape: f32[8,1], index: 17, kind: output, shape index: {}]
  %s18 = sld [smem:[#allocation0]]
  $region106: #{tpu_custom_call.1} parent=0
    _
  %s20 = ssub.s32 1, %s18
  %s21 = scalar_select 0, %s20, %s18
  %v22 = vstv %s16
  %23 = vst [vmem:[#allocation5] sm:$0x1] %v22
  $region1: #{tpu_custom_call.1} parent=0
    #allocation6 [shape = 'u8[24576]{0}', space=vmem, size = 0x6000, scoped, tag = 'input window, operand 3, single buffered']
    #allocation7 [shape = 's32[1]{0}', space=sflag, size = 0x4, scoped, tag = 'scoped memory for tpu_custom_call.1']
    #allocation8 [shape = 'u8[3072]{0}', space=vmem, size = 0xc00, scoped, tag = 'input window, operand 4, single buffered']
    #allocation9 [shape = 's32[1]{0}', space=sflag, size = 0x4, scoped, tag = 'scoped memory for tpu_custom_call.1']
    #allocation10 [shape = 'u8[512]{0}', space=vmem, size = 0x400, scoped, tag = 'input window, operand 7, single buffered']
    #allocation11 [shape = 'u8[512]{0}', space=vmem, size = 0x400, scoped, tag = 'input window, operand 8, single buffered']
    #allocation12 [shape = 's32[1]{0}', space=sflag, size = 0x4, scoped, tag = 'scoped memory for tpu_custom_call.1']
    #allocation13 [shape = 'u8[4096]{0}', space=vmem, size = 0x1000, scoped, tag = 'input window, operand 9, single buffered']
    #allocation14 [shape = 'u8[512]{0}', space=vmem, size = 0x400, scoped, tag = 'input window, operand 10, single buffered']
    #allocation15 [shape = 's32[1]{0}', space=sflag, size = 0x4, scoped, tag = 'scoped memory for tpu_custom_call.1']
    #allocation16 [shape = 'u8[512]{0}', space=vmem, size = 0x400, scoped, tag = 'input window, operand 12, single buffered']
    %24 = vsyncpa [#allocation7], 0
    %25 = vsyncpa [#allocation9], 0
    %26 = vsyncpa [#allocation12], 0
    %27 = vsyncpa [#allocation15], 0
    // Predicated region
    $region2: #{tpu_custom_call.1} parent=1 // pred_check
      _
    $region3: #{tpu_custom_call.1} parent=1 // pred_check_branch
      %29 = sbr.rel (0) target = $region5
    $region4: #{tpu_custom_call.1} parent=1 // pred_region
      _
    $region5: #{tpu_custom_call.1} parent=1 // pred_fallthru
      _
    // Predicated region
    $region6: #{tpu_custom_call.1} parent=1 // pred_check
      _
    $region7: #{tpu_custom_call.1} parent=1 // pred_check_branch
      %31 = sbr.rel (0) target = $region9
    $region8: #{tpu_custom_call.1} parent=1 // pred_region
      _
    $region9: #{tpu_custom_call.1} parent=1 // pred_fallthru
      _
    // Predicated region
    $region10: #{tpu_custom_call.1} parent=1 // pred_check
      _
    $region11: #{tpu_custom_call.1} parent=1 // pred_check_branch
      %33 = sbr.rel (0) target = $region13
    $region12: #{tpu_custom_call.1} parent=1 // pred_region
      _
    $region13: #{tpu_custom_call.1} parent=1 // pred_fallthru
      _
    // Predicated region
    $region14: #{tpu_custom_call.1} parent=1 // pred_check
      _
    $region15: #{tpu_custom_call.1} parent=1 // pred_check_branch
      %35 = sbr.rel (0) target = $region17
    $region16: #{tpu_custom_call.1} parent=1 // pred_region
      %s37 = ssub.s32 768, 768
      %38 = vsyncadd [#allocation7], %s37
      %s39 = sshll.u32 [#allocation6], 4
      %s40 = int_to_ptr.vmem [resolvable:$true] %s39
      %45 = dma.hbm_to_vmem [thread:$0]  %s3, 768, %s40, [#allocation7], 384, 384, 24
    $region17: #{tpu_custom_call.1} parent=1 // pred_fallthru
      _
    // Predicated region
    $region18: #{tpu_custom_call.1} parent=1 // pred_check
      _
    $region19: #{tpu_custom_call.1} parent=1 // pred_check_branch
      %47 = sbr.rel (0) target = $region21
    $region20: #{tpu_custom_call.1} parent=1 // pred_region
      %s49 = ssub.s32 96, 96
      %50 = vsyncadd [#allocation9], %s49
      %s52 = sshll.u32 [#allocation8], 4
      %s53 = int_to_ptr.vmem [resolvable:$true] %s52
      %55 = dma.hbm_to_vmem [thread:$0]  %s4, 96, %s53, [#allocation9]
    $region21: #{tpu_custom_call.1} parent=1 // pred_fallthru
      _
    // Predicated region
    $region22: #{tpu_custom_call.1} parent=1 // pred_check
      _
    $region23: #{tpu_custom_call.1} parent=1 // pred_check_branch
      %57 = sbr.rel (0) target = $region25
    $region24: #{tpu_custom_call.1} parent=1 // pred_region
      _
    $region25: #{tpu_custom_call.1} parent=1 // pred_fallthru
      _
    // Predicated region
    $region26: #{tpu_custom_call.1} parent=1 // pred_check
      _
    $region27: #{tpu_custom_call.1} parent=1 // pred_check_branch
      %59 = sbr.rel (0) target = $region29
    $region28: #{tpu_custom_call.1} parent=1 // pred_region
      _
    $region29: #{tpu_custom_call.1} parent=1 // pred_fallthru
      _
    // Predicated region
    $region30: #{tpu_custom_call.1} parent=1 // pred_check
      _
    $region31: #{tpu_custom_call.1} parent=1 // pred_check_branch
      %61 = sbr.rel (0) target = $region33
    $region32: #{tpu_custom_call.1} parent=1 // pred_region
      %s63 = ssub.s32 16, 16
      %64 = vsyncadd [#allocation9], %s63
      %s66 = sshll.u32 [#allocation10], 4
      %s67 = int_to_ptr.vmem [resolvable:$true] %s66
      %69 = dma.hbm_to_vmem [thread:$0]  %s7, 16, %s67, [#allocation9]
    $region33: #{tpu_custom_call.1} parent=1 // pred_fallthru
      _
    // Predicated region
    $region34: #{tpu_custom_call.1} parent=1 // pred_check
      _
    $region35: #{tpu_custom_call.1} parent=1 // pred_check_branch
      %71 = sbr.rel (0) target = $region37
    $region36: #{tpu_custom_call.1} parent=1 // pred_region
      %s73 = ssub.s32 16, 16
      %74 = vsyncadd [#allocation12], %s73
      %s76 = sshll.u32 [#allocation11], 4
      %s77 = int_to_ptr.vmem [resolvable:$true] %s76
      %79 = dma.hbm_to_vmem [thread:$0]  %s8, 16, %s77, [#allocation12]
    $region37: #{tpu_custom_call.1} parent=1 // pred_fallthru
      _
    // Predicated region
    $region38: #{tpu_custom_call.1} parent=1 // pred_check
      _
    $region39: #{tpu_custom_call.1} parent=1 // pred_check_branch
      %81 = sbr.rel (0) target = $region41
    $region40: #{tpu_custom_call.1} parent=1 // pred_region
      %s83 = ssub.s32 128, 128
      %84 = vsyncadd [#allocation12], %s83
      %s85 = sshll.u32 [#allocation13], 4
      %s86 = int_to_ptr.vmem [resolvable:$true] %s85
      %91 = dma.hbm_to_vmem [thread:$0]  %s9, 128, %s86, [#allocation12], 64, 64, 4
    $region41: #{tpu_custom_call.1} parent=1 // pred_fallthru
      _
    // Predicated region
    $region42: #{tpu_custom_call.1} parent=1 // pred_check
      _
    $region43: #{tpu_custom_call.1} parent=1 // pred_check_branch
      %93 = sbr.rel (0) target = $region45
    $region44: #{tpu_custom_call.1} parent=1 // pred_region
      %s95 = ssub.s32 16, 16
      %96 = vsyncadd [#allocation15], %s95
      %s98 = sshll.u32 [#allocation14], 4
      %s99 = int_to_ptr.vmem [resolvable:$true] %s98
      %101 = dma.hbm_to_vmem [thread:$0]  %s10, 16, %s99, [#allocation15]
    $region45: #{tpu_custom_call.1} parent=1 // pred_fallthru
      _
    // Predicated region
    $region46: #{tpu_custom_call.1} parent=1 // pred_check
      _
    $region47: #{tpu_custom_call.1} parent=1 // pred_check_branch
      %103 = sbr.rel (0) target = $region49
    $region48: #{tpu_custom_call.1} parent=1 // pred_region
      _
    $region49: #{tpu_custom_call.1} parent=1 // pred_fallthru
      _
    // Predicated region
    $region50: #{tpu_custom_call.1} parent=1 // pred_check
      _
    $region51: #{tpu_custom_call.1} parent=1 // pred_check_branch
      %105 = sbr.rel (0) target = $region53
    $region52: #{tpu_custom_call.1} parent=1 // pred_region
      %s107 = ssub.s32 16, 16
      %108 = vsyncadd [#allocation15], %s107
      %s110 = sshll.u32 [#allocation16], 4
      %s111 = int_to_ptr.vmem [resolvable:$true] %s110
      %113 = dma.hbm_to_vmem [thread:$0]  %s12, 16, %s111, [#allocation15]
    $region53: #{tpu_custom_call.1} parent=1 // pred_fallthru
      _
    // Predicated region
    $region54: #{tpu_custom_call.1} parent=1 // pred_check
      _
    $region55: #{tpu_custom_call.1} parent=1 // pred_check_branch
      %115 = sbr.rel (0) target = $region57
    $region56: #{tpu_custom_call.1} parent=1 // pred_region
      _
    $region57: #{tpu_custom_call.1} parent=1 // pred_fallthru
      _
    // Predicated region
    $region58: #{tpu_custom_call.1} parent=1 // pred_check
      _
    $region59: #{tpu_custom_call.1} parent=1 // pred_check_branch
      %117 = sbr.rel (0) target = $region61
    $region60: #{tpu_custom_call.1} parent=1 // pred_region
      _
    $region61: #{tpu_custom_call.1} parent=1 // pred_fallthru
      _
    // Predicated region
    $region62: #{tpu_custom_call.1} parent=1 // pred_check
      _
    $region63: #{tpu_custom_call.1} parent=1 // pred_check_branch
      %119 = sbr.rel (0) target = $region65
    $region64: #{tpu_custom_call.1} parent=1 // pred_region
      _
    $region65: #{tpu_custom_call.1} parent=1 // pred_fallthru
      _
    // Predicated region
    $region66: #{tpu_custom_call.1} parent=1 // pred_check
      _
    $region67: #{tpu_custom_call.1} parent=1 // pred_check_branch
      %121 = sbr.rel (0) target = $region69
    $region68: #{tpu_custom_call.1} parent=1 // pred_region
      _
    $region69: #{tpu_custom_call.1} parent=1 // pred_fallthru
      _
    // Predicated region
    $region70: #{tpu_custom_call.1} parent=1 // pred_check
      _
    $region71: #{tpu_custom_call.1} parent=1 // pred_check_branch
      %123 = sbr.rel (0) target = $region73
    $region72: #{tpu_custom_call.1} parent=1 // pred_region
      %124 = dma.done [#allocation7], 768
    $region73: #{tpu_custom_call.1} parent=1 // pred_fallthru
      _
    // Predicated region
    $region74: #{tpu_custom_call.1} parent=1 // pred_check
      _
    $region75: #{tpu_custom_call.1} parent=1 // pred_check_branch
      %126 = sbr.rel (0) target = $region77
    $region76: #{tpu_custom_call.1} parent=1 // pred_region
      %127 = dma.done [#allocation9], 96
    $region77: #{tpu_custom_call.1} parent=1 // pred_fallthru
      _
    // Predicated region
    $region78: #{tpu_custom_call.1} parent=1 // pred_check
      _
    $region79: #{tpu_custom_call.1} parent=1 // pred_check_branch
      %129 = sbr.rel (0) target = $region81
    $region80: #{tpu_custom_call.1} parent=1 // pred_region
      %130 = dma.done [#allocation9], 16
    $region81: #{tpu_custom_call.1} parent=1 // pred_fallthru
      _
    // Predicated region
    $region82: #{tpu_custom_call.1} parent=1 // pred_check
      _
    $region83: #{tpu_custom_call.1} parent=1 // pred_check_branch
      %132 = sbr.rel (0) target = $region85
    $region84: #{tpu_custom_call.1} parent=1 // pred_region
      %133 = dma.done [#allocation12], 16
    $region85: #{tpu_custom_call.1} parent=1 // pred_fallthru
      _
    // Predicated region
    $region86: #{tpu_custom_call.1} parent=1 // pred_check
      _
    $region87: #{tpu_custom_call.1} parent=1 // pred_check_branch
      %135 = sbr.rel (0) target = $region89
    $region88: #{tpu_custom_call.1} parent=1 // pred_region
      %136 = dma.done [#allocation12], 128
    $region89: #{tpu_custom_call.1} parent=1 // pred_fallthru
      _
    // Predicated region
    $region90: #{tpu_custom_call.1} parent=1 // pred_check
      _
    $region91: #{tpu_custom_call.1} parent=1 // pred_check_branch
      %138 = sbr.rel (0) target = $region93
    $region92: #{tpu_custom_call.1} parent=1 // pred_region
      %139 = dma.done [#allocation15], 16
    $region93: #{tpu_custom_call.1} parent=1 // pred_fallthru
      _
    // Predicated region
    $region94: #{tpu_custom_call.1} parent=1 // pred_check
      _
    $region95: #{tpu_custom_call.1} parent=1 // pred_check_branch
      %141 = sbr.rel (0) target = $region97
    $region96: #{tpu_custom_call.1} parent=1 // pred_region
      %142 = dma.done [#allocation15], 16
    $region97: #{tpu_custom_call.1} parent=1 // pred_fallthru
      _
    %v144 = vld [vmem:[%s2] sm:$0xff]
    %v145 = vld [vmem:[%s0] sm:$0xf]
    %v146 = vld [vmem:[%s0 + $0x4] sm:$0xf]
    %v147 = vld [vmem:[%s0 + $0x8] sm:$0xf]
    %v148 = vld [vmem:[%s0 + $0xc] sm:$0xf]
    %v149 = vld [vmem:[%s0 + $0x10] sm:$0xf]
    %v150 = vld [vmem:[%s0 + $0x14] sm:$0xf]
    %v151 = vld [vmem:[%s0 + $0x18] sm:$0xf]
    %v152 = vld [vmem:[%s0 + $0x1c] sm:$0xf]
    %v153 = vld [vmem:[#allocation6] sm:$0xff]
    %v154 = vld [vmem:[#allocation6 + $0x8] sm:$0xff]
    %v155 = vld [vmem:[#allocation6 + $0x10] sm:$0xff]
    %v156 = vld [vmem:[#allocation6 + $0x18] sm:$0xff]
    %v157 = vld [vmem:[#allocation6 + $0x20] sm:$0xff]
    %v158 = vld [vmem:[#allocation6 + $0x28] sm:$0xff]
    %v159 = vld [vmem:[#allocation8] sm:$0x3f]
    %v161 = vlaneseq
    %v162 = vshrl.u32 %v161, 7
    %v163 = vsub.s32 0, %v162
    %v164 = vrot.slane %v159, %v163
    %v165 = vlaneseq
    %v166 = vshrl.u32 %v165, 7
    %v167 = vsub.s32 1, %v166
    %v168 = vrot.slane %v159, %v167
    %v169 = vlaneseq
    %v170 = vshrl.u32 %v169, 7
    %v171 = vsub.s32 2, %v170
    %v172 = vrot.slane %v159, %v171
    %v173 = vlaneseq
    %v174 = vshrl.u32 %v173, 7
    %v175 = vsub.s32 3, %v174
    %v176 = vrot.slane %v159, %v175
    %v177 = vlaneseq
    %v178 = vshrl.u32 %v177, 7
    %v179 = vsub.s32 4, %v178
    %v180 = vrot.slane %v159, %v179
    %v181 = vlaneseq
    %v182 = vshrl.u32 %v181, 7
    %v183 = vsub.s32 5, %v182
    %v184 = vrot.slane %v159, %v183
    %v199 = vunpack.c.l.b16 %v145
    %v200 = vunpack.c.l.b16 %v146
    %v201 = vunpack.c.l.b16 %v147
    %v202 = vunpack.c.l.b16 %v148
    %v203 = vunpack.c.l.b16 %v149
    %v204 = vunpack.c.l.b16 %v150
    %v205 = vunpack.c.l.b16 %v151
    %v206 = vunpack.c.l.b16 %v152
    %v207 = vpack.c.b16 %v200, %v199
    %v208 = vpack.c.b16 %v202, %v201
    %v209 = vpack.c.b16 %v204, %v203
    %v210 = vpack.c.b16 %v206, %v205
    %v217 = vunpack.c.l.b16 %v153
    %v218 = vunpack.c.h.b16 %v153
    %v219 = vunpack.c.l.b16 %v154
    %v220 = vunpack.c.h.b16 %v154
    %v221 = vunpack.c.l.b16 %v155
    %v222 = vunpack.c.h.b16 %v155
    %v223 = vunpack.c.l.b16 %v156
    %v224 = vunpack.c.h.b16 %v156
    %v225 = vunpack.c.l.b16 %v157
    %v226 = vunpack.c.h.b16 %v157
    %v227 = vunpack.c.l.b16 %v158
    %v228 = vunpack.c.h.b16 %v158
    %v229 = vpack.c.b16 %v223, %v217
    %v230 = vpack.c.b16 %v224, %v218
    %v231 = vpack.c.b16 %v225, %v219
    %v232 = vpack.c.b16 %v226, %v220
    %v233 = vpack.c.b16 %v227, %v221
    %v234 = vpack.c.b16 %v228, %v222
    %vm241 = vcmask 130048
    %v243 = vsel %vm241, %v207, 0
    %v246 = vsel %vm241, %v208, 0
    %v249 = vsel %vm241, %v209, 0
    %v252 = vsel %vm241, %v210, 0
    %254 = vmatprep.subr.bf16.mxu0 0
    %255 = vmatpush1.bf16.msra.mxu0 0
    %256 = vmatprep.subr.bf16.mxu0 0
    %257 = vmatpush1.bf16.msra.mxu0 0
    %258 = vmatprep.subr.bf16.mxu0 0
    %259 = vmatpush1.bf16.msra.mxu0 0
    %260 = vmatprep.subr.bf16.mxu0 0
    %261 = vmatpush1.bf16.msra.mxu0 0
    %262 = vmatprep.subr.bf16.mxu0 0
    %263 = vmatpush1.bf16.msra.mxu0 0
    %264 = vmatprep.subr.bf16.mxu0 0
    %265 = vmatpush1.bf16.msra.mxu0 0
    %266 = vmatprep.subr.bf16.mxu0 0
    %267 = vmatpush1.bf16.msra.mxu0 0
    %268 = vmatprep.subr.bf16.mxu0 %v230
    %269 = vmatpush1.bf16.msra.mxu0 %v229
    %270 = vmatprep.subr.bf16.mxu0 0
    %271 = vmatpush2.bf16.msra.mxu0 0
    %272 = vmatprep.subr.bf16.mxu0 0
    %273 = vmatpush2.bf16.msra.mxu0 0
    %274 = vmatprep.subr.bf16.mxu0 0
    %275 = vmatpush2.bf16.msra.mxu0 0
    %276 = vmatprep.subr.bf16.mxu0 0
    %277 = vmatpush2.bf16.msra.mxu0 0
    %278 = vmatprep.subr.bf16.mxu0 0
    %279 = vmatpush2.bf16.msra.mxu0 0
    %280 = vmatprep.subr.bf16.mxu0 0
    %281 = vmatpush2.bf16.msra.mxu0 0
    %282 = vmatprep.subr.bf16.mxu0 0
    %283 = vmatpush2.bf16.msra.mxu0 0
    %284 = vmatprep.subr.bf16.mxu0 0
    %285 = vmatpush2.bf16.msra.mxu0 0
    %286 = vmatprep.mubr.bf16.mxu0 0
    %287 = vmatmul.mubr.bf16.gmra.mxu0 %v243
    %v288 = vpop.f32.mrf.mxu0
    %v289 = vadd.f32 %v164, %v288
    %v290 = vpop.f32.mrf.mxu0
    %v291 = vadd.f32 %v168, %v290
    %v292 = vpop.f32.mrf.mxu0
    %v293 = vadd.f32 %v164, %v292
    %v294 = vpop.f32.mrf.mxu0
    %v295 = vadd.f32 %v168, %v294
    %296 = vmatprep.mubr.bf16.mxu0 0
    %297 = vmatmul.mubr.bf16.gmra.mxu0 %v246
    %v298 = vpop.f32.mrf.mxu0
    %v299 = vadd.f32 %v164, %v298
    %v300 = vpop.f32.mrf.mxu0
    %v301 = vadd.f32 %v168, %v300
    %v302 = vpop.f32.mrf.mxu0
    %v303 = vadd.f32 %v164, %v302
    %v304 = vpop.f32.mrf.mxu0
    %v305 = vadd.f32 %v168, %v304
    %306 = vmatprep.mubr.bf16.mxu0 0
    %307 = vmatmul.mubr.bf16.gmra.mxu0 %v249
    %v308 = vpop.f32.mrf.mxu0
    %v309 = vadd.f32 %v164, %v308
    %v310 = vpop.f32.mrf.mxu0
    %v311 = vadd.f32 %v168, %v310
    %v312 = vpop.f32.mrf.mxu0
    %v313 = vadd.f32 %v164, %v312
    %v314 = vpop.f32.mrf.mxu0
    %v315 = vadd.f32 %v168, %v314
    %316 = vmatprep.mubr.bf16.mxu0 0
    %317 = vmatmul.mubr.bf16.gmra.mxu0 %v252
    %v318 = vpop.f32.mrf.mxu0
    %v319 = vadd.f32 %v164, %v318
    %v320 = vpop.f32.mrf.mxu0
    %v321 = vadd.f32 %v168, %v320
    %v322 = vpop.f32.mrf.mxu0
    %v323 = vadd.f32 %v164, %v322
    %v324 = vpop.f32.mrf.mxu0
    %v325 = vadd.f32 %v168, %v324
    %326 = vdwg.mxu0
    %327 = vmatprep.subr.bf16.mxu0 0
    %328 = vmatpush1.bf16.msra.mxu0 0
    %329 = vmatprep.subr.bf16.mxu0 0
    %330 = vmatpush1.bf16.msra.mxu0 0
    %331 = vmatprep.subr.bf16.mxu0 0
    %332 = vmatpush1.bf16.msra.mxu0 0
    %333 = vmatprep.subr.bf16.mxu0 0
    %334 = vmatpush1.bf16.msra.mxu0 0
    %335 = vmatprep.subr.bf16.mxu0 0
    %336 = vmatpush1.bf16.msra.mxu0 0
    %337 = vmatprep.subr.bf16.mxu0 0
    %338 = vmatpush1.bf16.msra.mxu0 0
    %339 = vmatprep.subr.bf16.mxu0 0
    %340 = vmatpush1.bf16.msra.mxu0 0
    %341 = vmatprep.subr.bf16.mxu0 %v232
    %342 = vmatpush1.bf16.msra.mxu0 %v231
    %343 = vmatprep.subr.bf16.mxu0 0
    %344 = vmatpush2.bf16.msra.mxu0 0
    %345 = vmatprep.subr.bf16.mxu0 0
    %346 = vmatpush2.bf16.msra.mxu0 0
    %347 = vmatprep.subr.bf16.mxu0 0
    %348 = vmatpush2.bf16.msra.mxu0 0
    %349 = vmatprep.subr.bf16.mxu0 0
    %350 = vmatpush2.bf16.msra.mxu0 0
    %351 = vmatprep.subr.bf16.mxu0 0
    %352 = vmatpush2.bf16.msra.mxu0 0
    %353 = vmatprep.subr.bf16.mxu0 0
    %354 = vmatpush2.bf16.msra.mxu0 0
    %355 = vmatprep.subr.bf16.mxu0 0
    %356 = vmatpush2.bf16.msra.mxu0 0
    %357 = vmatprep.subr.bf16.mxu0 0
    %358 = vmatpush2.bf16.msra.mxu0 0
    %359 = vmatprep.mubr.bf16.mxu0 0
    %360 = vmatmul.mubr.bf16.gmra.mxu0 %v243
    %v361 = vpop.f32.mrf.mxu0
    %v362 = vadd.f32 %v172, %v361
    %v363 = vpop.f32.mrf.mxu0
    %v364 = vadd.f32 %v176, %v363
    %v365 = vpop.f32.mrf.mxu0
    %v366 = vadd.f32 %v172, %v365
    %v367 = vpop.f32.mrf.mxu0
    %v368 = vadd.f32 %v176, %v367
    %369 = vmatprep.mubr.bf16.mxu0 0
    %370 = vmatmul.mubr.bf16.gmra.mxu0 %v246
    %v371 = vpop.f32.mrf.mxu0
    %v372 = vadd.f32 %v172, %v371
    %v373 = vpop.f32.mrf.mxu0
    %v374 = vadd.f32 %v176, %v373
    %v375 = vpop.f32.mrf.mxu0
    %v376 = vadd.f32 %v172, %v375
    %v377 = vpop.f32.mrf.mxu0
    %v378 = vadd.f32 %v176, %v377
    %379 = vmatprep.mubr.bf16.mxu0 0
    %380 = vmatmul.mubr.bf16.gmra.mxu0 %v249
    %v381 = vpop.f32.mrf.mxu0
    %v382 = vadd.f32 %v172, %v381
    %v383 = vpop.f32.mrf.mxu0
    %v384 = vadd.f32 %v176, %v383
    %v385 = vpop.f32.mrf.mxu0
    %v386 = vadd.f32 %v172, %v385
    %v387 = vpop.f32.mrf.mxu0
    %v388 = vadd.f32 %v176, %v387
    %389 = vmatprep.mubr.bf16.mxu0 0
    %390 = vmatmul.mubr.bf16.gmra.mxu0 %v252
    %v391 = vpop.f32.mrf.mxu0
    %v392 = vadd.f32 %v172, %v391
    %v393 = vpop.f32.mrf.mxu0
    %v394 = vadd.f32 %v176, %v393
    %v395 = vpop.f32.mrf.mxu0
    %v396 = vadd.f32 %v172, %v395
    %v397 = vpop.f32.mrf.mxu0
    %v398 = vadd.f32 %v176, %v397
    %399 = vdwg.mxu0
    %400 = vmatprep.subr.bf16.mxu0 0
    %401 = vmatpush1.bf16.msra.mxu0 0
    %402 = vmatprep.subr.bf16.mxu0 0
    %403 = vmatpush1.bf16.msra.mxu0 0
    %404 = vmatprep.subr.bf16.mxu0 0
    %405 = vmatpush1.bf16.msra.mxu0 0
    %406 = vmatprep.subr.bf16.mxu0 0
    %407 = vmatpush1.bf16.msra.mxu0 0
    %408 = vmatprep.subr.bf16.mxu0 0
    %409 = vmatpush1.bf16.msra.mxu0 0
    %410 = vmatprep.subr.bf16.mxu0 0
    %411 = vmatpush1.bf16.msra.mxu0 0
    %412 = vmatprep.subr.bf16.mxu0 0
    %413 = vmatpush1.bf16.msra.mxu0 0
    %414 = vmatprep.subr.bf16.mxu0 %v234
    %415 = vmatpush1.bf16.msra.mxu0 %v233
    %416 = vmatprep.subr.bf16.mxu0 0
    %417 = vmatpush2.bf16.msra.mxu0 0
    %418 = vmatprep.subr.bf16.mxu0 0
    %419 = vmatpush2.bf16.msra.mxu0 0
    %420 = vmatprep.subr.bf16.mxu0 0
    %421 = vmatpush2.bf16.msra.mxu0 0
    %422 = vmatprep.subr.bf16.mxu0 0
    %423 = vmatpush2.bf16.msra.mxu0 0
    %424 = vmatprep.subr.bf16.mxu0 0
    %425 = vmatpush2.bf16.msra.mxu0 0
    %426 = vmatprep.subr.bf16.mxu0 0
    %427 = vmatpush2.bf16.msra.mxu0 0
    %428 = vmatprep.subr.bf16.mxu0 0
    %429 = vmatpush2.bf16.msra.mxu0 0
    %430 = vmatprep.subr.bf16.mxu0 0
    %431 = vmatpush2.bf16.msra.mxu0 0
    %432 = vmatprep.mubr.bf16.mxu0 0
    %433 = vmatmul.mubr.bf16.gmra.mxu0 %v243
    %v434 = vpop.f32.mrf.mxu0
    %v435 = vadd.f32 %v180, %v434
    %v436 = vpop.f32.mrf.mxu0
    %v437 = vadd.f32 %v184, %v436
    %v438 = vpop.f32.mrf.mxu0
    %v439 = vadd.f32 %v180, %v438
    %v440 = vpop.f32.mrf.mxu0
    %v441 = vadd.f32 %v184, %v440
    %442 = vmatprep.mubr.bf16.mxu0 0
    %443 = vmatmul.mubr.bf16.gmra.mxu0 %v246
    %v444 = vpop.f32.mrf.mxu0
    %v445 = vadd.f32 %v180, %v444
    %v446 = vpop.f32.mrf.mxu0
    %v447 = vadd.f32 %v184, %v446
    %v448 = vpop.f32.mrf.mxu0
    %v449 = vadd.f32 %v180, %v448
    %v450 = vpop.f32.mrf.mxu0
    %v451 = vadd.f32 %v184, %v450
    %452 = vmatprep.mubr.bf16.mxu0 0
    %453 = vmatmul.mubr.bf16.gmra.mxu0 %v249
    %v454 = vpop.f32.mrf.mxu0
    %v455 = vadd.f32 %v180, %v454
    %v456 = vpop.f32.mrf.mxu0
    %v457 = vadd.f32 %v184, %v456
    %v458 = vpop.f32.mrf.mxu0
    %v459 = vadd.f32 %v180, %v458
    %v460 = vpop.f32.mrf.mxu0
    %v461 = vadd.f32 %v184, %v460
    %462 = vmatprep.mubr.bf16.mxu0 0
    %463 = vmatmul.mubr.bf16.gmra.mxu0 %v252
    %v464 = vpop.f32.mrf.mxu0
    %v465 = vadd.f32 %v180, %v464
    %v466 = vpop.f32.mrf.mxu0
    %v467 = vadd.f32 %v184, %v466
    %v468 = vpop.f32.mrf.mxu0
    %v469 = vadd.f32 %v180, %v468
    %v470 = vpop.f32.mrf.mxu0
    %v471 = vadd.f32 %v184, %v470
    %472 = vdwg.mxu0
    %473 = vst [vmem:[#allocation2] sm:$0xff] %v289
    %474 = vst [vmem:[#allocation2 + $0x8] sm:$0xff] %v291
    %475 = vst [vmem:[#allocation2 + $0x10] sm:$0xff] %v362
    %476 = vst [vmem:[#allocation2 + $0x18] sm:$0xff] %v293
    %477 = vst [vmem:[#allocation2 + $0x20] sm:$0xff] %v295
    %478 = vst [vmem:[#allocation2 + $0x28] sm:$0xff] %v366
    %479 = vst [vmem:[#allocation2 + $0x30] sm:$0xff] %v299
    %480 = vst [vmem:[#allocation2 + $0x38] sm:$0xff] %v301
    %481 = vst [vmem:[#allocation2 + $0x40] sm:$0xff] %v372
    %482 = vst [vmem:[#allocation2 + $0x48] sm:$0xff] %v303
    %483 = vst [vmem:[#allocation2 + $0x50] sm:$0xff] %v305
    %484 = vst [vmem:[#allocation2 + $0x58] sm:$0xff] %v376
    %485 = vst [vmem:[#allocation2 + $0x60] sm:$0xff] %v309
    %486 = vst [vmem:[#allocation2 + $0x68] sm:$0xff] %v311
    %487 = vst [vmem:[#allocation2 + $0x70] sm:$0xff] %v382
    %488 = vst [vmem:[#allocation2 + $0x78] sm:$0xff] %v313
    %489 = vst [vmem:[#allocation2 + $0x80] sm:$0xff] %v315
    %490 = vst [vmem:[#allocation2 + $0x88] sm:$0xff] %v386
    %491 = vst [vmem:[#allocation2 + $0x90] sm:$0xff] %v319
    %492 = vst [vmem:[#allocation2 + $0x98] sm:$0xff] %v321
    %493 = vst [vmem:[#allocation2 + $0xa0] sm:$0xff] %v392
    %494 = vst [vmem:[#allocation2 + $0xa8] sm:$0xff] %v323
    %495 = vst [vmem:[#allocation2 + $0xb0] sm:$0xff] %v325
    %496 = vst [vmem:[#allocation2 + $0xb8] sm:$0xff] %v396
    %497 = vst [vmem:[#allocation3] sm:$0xff] %v364
    %498 = vst [vmem:[#allocation3 + $0x8] sm:$0xff] %v435
    %499 = vst [vmem:[#allocation3 + $0x10] sm:$0xff] %v437
    %500 = vst [vmem:[#allocation3 + $0x18] sm:$0xff] %v368
    %501 = vst [vmem:[#allocation3 + $0x20] sm:$0xff] %v439
    %502 = vst [vmem:[#allocation3 + $0x28] sm:$0xff] %v441
    %503 = vst [vmem:[#allocation3 + $0x30] sm:$0xff] %v374
    %504 = vst [vmem:[#allocation3 + $0x38] sm:$0xff] %v445
    %505 = vst [vmem:[#allocation3 + $0x40] sm:$0xff] %v447
    %506 = vst [vmem:[#allocation3 + $0x48] sm:$0xff] %v378
    %507 = vst [vmem:[#allocation3 + $0x50] sm:$0xff] %v449
    %508 = vst [vmem:[#allocation3 + $0x58] sm:$0xff] %v451
    %509 = vst [vmem:[#allocation3 + $0x60] sm:$0xff] %v384
    %510 = vst [vmem:[#allocation3 + $0x68] sm:$0xff] %v455
    %511 = vst [vmem:[#allocation3 + $0x70] sm:$0xff] %v457
    %512 = vst [vmem:[#allocation3 + $0x78] sm:$0xff] %v388
    %513 = vst [vmem:[#allocation3 + $0x80] sm:$0xff] %v459
    %514 = vst [vmem:[#allocation3 + $0x88] sm:$0xff] %v461
    %515 = vst [vmem:[#allocation3 + $0x90] sm:$0xff] %v394
    %516 = vst [vmem:[#allocation3 + $0x98] sm:$0xff] %v465
    %517 = vst [vmem:[#allocation3 + $0xa0] sm:$0xff] %v467
    %518 = vst [vmem:[#allocation3 + $0xa8] sm:$0xff] %v398
    %519 = vst [vmem:[#allocation3 + $0xb0] sm:$0xff] %v469
    %520 = vst [vmem:[#allocation3 + $0xb8] sm:$0xff] %v471
    %v521 = vld [vmem:[%s5] sm:$0xff]
    %v522 = vld [vmem:[%s5 + $0x8] sm:$0xf]
    %v523 = vld [vmem:[%s5 + $0xc] sm:$0xff]
    %v524 = vld [vmem:[%s5 + $0x14] sm:$0xf]
    %v525 = vld [vmem:[%s5 + $0x18] sm:$0xff]
    %v526 = vld [vmem:[%s5 + $0x20] sm:$0xf]
    %v527 = vld [vmem:[%s5 + $0x24] sm:$0xff]
    %v528 = vld [vmem:[%s5 + $0x2c] sm:$0xf]
    %v529 = vld [vmem:[%s5 + $0x30] sm:$0xff]
    %v530 = vld [vmem:[%s5 + $0x38] sm:$0xf]
    %v531 = vld [vmem:[%s5 + $0x3c] sm:$0xff]
    %v532 = vld [vmem:[%s5 + $0x44] sm:$0xf]
    %v533 = vld [vmem:[%s5 + $0x48] sm:$0xff]
    %v534 = vld [vmem:[%s5 + $0x50] sm:$0xf]
    %v535 = vld [vmem:[%s5 + $0x54] sm:$0xff]
    %v536 = vld [vmem:[%s5 + $0x5c] sm:$0xf]
    %v537 = vld [vmem:[%s5 + $0x60] sm:$0xff]
    %v538 = vld [vmem:[%s5 + $0x68] sm:$0xf]
    %v539 = vld [vmem:[%s5 + $0x6c] sm:$0xff]
    %v540 = vld [vmem:[%s5 + $0x74] sm:$0xf]
    %v541 = vld [vmem:[%s5 + $0x78] sm:$0xff]
    %v542 = vld [vmem:[%s5 + $0x80] sm:$0xf]
    %v543 = vld [vmem:[%s5 + $0x84] sm:$0xff]
    %v544 = vld [vmem:[%s5 + $0x8c] sm:$0xf]
    %v545 = vld [vmem:[%s5 + $0x90] sm:$0xff]
    %v546 = vld [vmem:[%s5 + $0x98] sm:$0xf]
    %v547 = vld [vmem:[%s5 + $0x9c] sm:$0xff]
    %v548 = vld [vmem:[%s5 + $0xa4] sm:$0xf]
    %v549 = vld [vmem:[%s5 + $0xa8] sm:$0xff]
    %v550 = vld [vmem:[%s5 + $0xb0] sm:$0xf]
    %v551 = vld [vmem:[%s5 + $0xb4] sm:$0xff]
    %v552 = vld [vmem:[%s5 + $0xbc] sm:$0xf]
    %v553 = vld [vmem:[%s6] sm:$0xff]
    %v554 = vld [vmem:[%s6 + $0x8] sm:$0xf]
    %v555 = vld [vmem:[%s6 + $0xc] sm:$0xff]
    %v556 = vld [vmem:[%s6 + $0x14] sm:$0xf]
    %v557 = vld [vmem:[%s6 + $0x18] sm:$0xff]
    %v558 = vld [vmem:[%s6 + $0x20] sm:$0xf]
    %v559 = vld [vmem:[%s6 + $0x24] sm:$0xff]
    %v560 = vld [vmem:[%s6 + $0x2c] sm:$0xf]
    %v561 = vld [vmem:[%s6 + $0x30] sm:$0xff]
    %v562 = vld [vmem:[%s6 + $0x38] sm:$0xf]
    %v563 = vld [vmem:[%s6 + $0x3c] sm:$0xff]
    %v564 = vld [vmem:[%s6 + $0x44] sm:$0xf]
    %v565 = vld [vmem:[%s6 + $0x48] sm:$0xff]
    %v566 = vld [vmem:[%s6 + $0x50] sm:$0xf]
    %v567 = vld [vmem:[%s6 + $0x54] sm:$0xff]
    %v568 = vld [vmem:[%s6 + $0x5c] sm:$0xf]
    %v569 = vld [vmem:[%s6 + $0x60] sm:$0xff]
    %v570 = vld [vmem:[%s6 + $0x68] sm:$0xf]
    %v571 = vld [vmem:[%s6 + $0x6c] sm:$0xff]
    %v572 = vld [vmem:[%s6 + $0x74] sm:$0xf]
    %v573 = vld [vmem:[%s6 + $0x78] sm:$0xff]
    %v574 = vld [vmem:[%s6 + $0x80] sm:$0xf]
    %v575 = vld [vmem:[%s6 + $0x84] sm:$0xff]
    %v576 = vld [vmem:[%s6 + $0x8c] sm:$0xf]
    %v577 = vld [vmem:[%s6 + $0x90] sm:$0xff]
    %v578 = vld [vmem:[%s6 + $0x98] sm:$0xf]
    %v579 = vld [vmem:[%s6 + $0x9c] sm:$0xff]
    %v580 = vld [vmem:[%s6 + $0xa4] sm:$0xf]
    %v581 = vld [vmem:[%s6 + $0xa8] sm:$0xff]
    %v582 = vld [vmem:[%s6 + $0xb0] sm:$0xf]
    %v583 = vld [vmem:[%s6 + $0xb4] sm:$0xff]
    %v584 = vld [vmem:[%s6 + $0xbc] sm:$0xf]
    %v585 = vld [vmem:[#allocation10] sm:$0x1]
    %v586 = vld [vmem:[#allocation11] sm:$0x1]
    %s587 = smul.u32 0, 3
    %s588 = smul.addr %s587, 8
    %s589 = scalar_lea.vmem [#allocation2], %s588
    %v590 = vld [vmem:[%s589] sm:$0xff]
    %v591 = vld [vmem:[%s589 + $0x8] sm:$0xff]
    %v592 = vld [vmem:[%s589 + $0x10] sm:$0xff]
    %s593 = smul.u32 7, 3
    %s594 = smul.addr %s593, 8
    %s595 = scalar_lea.vmem [#allocation3], %s594
    %v596 = vld [vmem:[%s595] sm:$0xff]
    %v597 = vld [vmem:[%s595 + $0x8] sm:$0xff]
    %v598 = vld [vmem:[%s595 + $0x10] sm:$0xff]
    %v631 = vunpack.c.l.b16 %v521
    %v632 = vunpack.c.h.b16 %v521
    %v633 = vunpack.c.l.b16 %v522
    %v634 = vunpack.c.l.b16 %v523
    %v635 = vunpack.c.h.b16 %v523
    %v636 = vunpack.c.l.b16 %v524
    %v637 = vunpack.c.l.b16 %v525
    %v638 = vunpack.c.h.b16 %v525
    %v639 = vunpack.c.l.b16 %v526
    %v640 = vunpack.c.l.b16 %v527
    %v641 = vunpack.c.h.b16 %v527
    %v642 = vunpack.c.l.b16 %v528
    %v643 = vunpack.c.l.b16 %v529
    %v644 = vunpack.c.h.b16 %v529
    %v645 = vunpack.c.l.b16 %v530
    %v646 = vunpack.c.l.b16 %v531
    %v647 = vunpack.c.h.b16 %v531
    %v648 = vunpack.c.l.b16 %v532
    %v649 = vunpack.c.l.b16 %v533
    %v650 = vunpack.c.h.b16 %v533
    %v651 = vunpack.c.l.b16 %v534
    %v652 = vunpack.c.l.b16 %v535
    %v653 = vunpack.c.h.b16 %v535
    %v654 = vunpack.c.l.b16 %v536
    %v655 = vunpack.c.l.b16 %v537
    %v656 = vunpack.c.h.b16 %v537
    %v657 = vunpack.c.l.b16 %v538
    %v658 = vunpack.c.l.b16 %v539
    %v659 = vunpack.c.h.b16 %v539
    %v660 = vunpack.c.l.b16 %v540
    %v661 = vunpack.c.l.b16 %v541
    %v662 = vunpack.c.h.b16 %v541
    %v663 = vunpack.c.l.b16 %v542
    %v664 = vunpack.c.l.b16 %v543
    %v665 = vunpack.c.h.b16 %v543
    %v666 = vunpack.c.l.b16 %v544
    %v667 = vunpack.c.l.b16 %v545
    %v668 = vunpack.c.h.b16 %v545
    %v669 = vunpack.c.l.b16 %v546
    %v670 = vunpack.c.l.b16 %v547
    %v671 = vunpack.c.h.b16 %v547
    %v672 = vunpack.c.l.b16 %v548
    %v673 = vunpack.c.l.b16 %v549
    %v674 = vunpack.c.h.b16 %v549
    %v675 = vunpack.c.l.b16 %v550
    %v676 = vunpack.c.l.b16 %v551
    %v677 = vunpack.c.h.b16 %v551
    %v678 = vunpack.c.l.b16 %v552
    %v679 = vpack.c.b16 %v634, %v631
    %v680 = vpack.c.b16 %v635, %v632
    %v681 = vpack.c.b16 %v636, %v633
    %v682 = vpack.c.b16 %v640, %v637
    %v683 = vpack.c.b16 %v641, %v638
    %v684 = vpack.c.b16 %v642, %v639
    %v685 = vpack.c.b16 %v646, %v643
    %v686 = vpack.c.b16 %v647, %v644
    %v687 = vpack.c.b16 %v648, %v645
    %v688 = vpack.c.b16 %v652, %v649
    %v689 = vpack.c.b16 %v653, %v650
    %v690 = vpack.c.b16 %v654, %v651
    %v691 = vpack.c.b16 %v658, %v655
    %v692 = vpack.c.b16 %v659, %v656
    %v693 = vpack.c.b16 %v660, %v657
    %v694 = vpack.c.b16 %v664, %v661
    %v695 = vpack.c.b16 %v665, %v662
    %v696 = vpack.c.b16 %v666, %v663
    %v697 = vpack.c.b16 %v670, %v667
    %v698 = vpack.c.b16 %v671, %v668
    %v699 = vpack.c.b16 %v672, %v669
    %v700 = vpack.c.b16 %v676, %v673
    %v701 = vpack.c.b16 %v677, %v674
    %v702 = vpack.c.b16 %v678, %v675
    %727 = vmatprep.subr.bf16.mxu0 %v701
    %728 = vmatpush1.bf16.msra.mxu0 %v700
    %729 = vmatprep.subr.bf16.mxu0 %v698
    %730 = vmatpush1.bf16.msra.mxu0 %v697
    %731 = vmatprep.subr.bf16.mxu0 %v695
    %732 = vmatpush1.bf16.msra.mxu0 %v694
    %733 = vmatprep.subr.bf16.mxu0 %v692
    %734 = vmatpush1.bf16.msra.mxu0 %v691
    %735 = vmatprep.subr.bf16.mxu0 %v689
    %736 = vmatpush1.bf16.msra.mxu0 %v688
    %737 = vmatprep.subr.bf16.mxu0 %v686
    %738 = vmatpush1.bf16.msra.mxu0 %v685
    %739 = vmatprep.subr.bf16.mxu0 %v683
    %740 = vmatpush1.bf16.msra.mxu0 %v682
    %741 = vmatprep.subr.bf16.mxu0 %v680
    %742 = vmatpush1.bf16.msra.mxu0 %v679
    %743 = vmatprep.subr.bf16.mxu0 0
    %744 = vmatpush2.bf16.msra.mxu0 0
    %745 = vmatprep.subr.bf16.mxu0 0
    %746 = vmatpush2.bf16.msra.mxu0 0
    %747 = vmatprep.subr.bf16.mxu0 0
    %748 = vmatpush2.bf16.msra.mxu0 0
    %749 = vmatprep.subr.bf16.mxu0 0
    %750 = vmatpush2.bf16.msra.mxu0 0
    %751 = vmatprep.subr.bf16.mxu0 0
    %752 = vmatpush2.bf16.msra.mxu0 0
    %753 = vmatprep.subr.bf16.mxu0 0
    %754 = vmatpush2.bf16.msra.mxu0 0
    %755 = vmatprep.subr.bf16.mxu0 0
    %756 = vmatpush2.bf16.msra.mxu0 0
    %757 = vmatprep.subr.bf16.mxu0 0
    %758 = vmatpush2.bf16.msra.mxu0 0
    %759 = vmatprep.mubr.bf16.mxu0 0
    %760 = vmatmul.mubr.bf16.gmra.mxu0 0
    %v761 = vpop.f32.mrf.mxu0
    %v762 = vadd.f32 0.0, %v761
    %v763 = vpop.f32.mrf.mxu0
    %v764 = vadd.f32 0.0, %v763
    %v765 = vpop.f32.mrf.mxu0
    %v766 = vpop.f32.mrf.mxu0
    %767 = vdwg.mxu0
    %768 = vmatprep.subr.bf16.mxu0 0
    %769 = vmatpush1.bf16.msra.mxu0 %v702
    %770 = vmatprep.subr.bf16.mxu0 0
    %771 = vmatpush1.bf16.msra.mxu0 %v699
    %772 = vmatprep.subr.bf16.mxu0 0
    %773 = vmatpush1.bf16.msra.mxu0 %v696
    %774 = vmatprep.subr.bf16.mxu0 0
    %775 = vmatpush1.bf16.msra.mxu0 %v693
    %776 = vmatprep.subr.bf16.mxu0 0
    %777 = vmatpush1.bf16.msra.mxu0 %v690
    %778 = vmatprep.subr.bf16.mxu0 0
    %779 = vmatpush1.bf16.msra.mxu0 %v687
    %780 = vmatprep.subr.bf16.mxu0 0
    %781 = vmatpush1.bf16.msra.mxu0 %v684
    %782 = vmatprep.subr.bf16.mxu0 0
    %783 = vmatpush1.bf16.msra.mxu0 %v681
    %784 = vmatprep.subr.bf16.mxu0 0
    %785 = vmatpush2.bf16.msra.mxu0 0
    %786 = vmatprep.subr.bf16.mxu0 0
    %787 = vmatpush2.bf16.msra.mxu0 0
    %788 = vmatprep.subr.bf16.mxu0 0
    %789 = vmatpush2.bf16.msra.mxu0 0
    %790 = vmatprep.subr.bf16.mxu0 0
    %791 = vmatpush2.bf16.msra.mxu0 0
    %792 = vmatprep.subr.bf16.mxu0 0
    %793 = vmatpush2.bf16.msra.mxu0 0
    %794 = vmatprep.subr.bf16.mxu0 0
    %795 = vmatpush2.bf16.msra.mxu0 0
    %796 = vmatprep.subr.bf16.mxu0 0
    %797 = vmatpush2.bf16.msra.mxu0 0
    %798 = vmatprep.subr.bf16.mxu0 0
    %799 = vmatpush2.bf16.msra.mxu0 0
    %800 = vmatprep.mubr.bf16.mxu0 0
    %801 = vmatmul.mubr.bf16.gmra.mxu0 0
    %v802 = vpop.f32.mrf.mxu0
    %v803 = vadd.f32 0.0, %v802
    %v804 = vpop.f32.mrf.mxu0
    %v805 = vpop.f32.mrf.mxu0
    %v806 = vpop.f32.mrf.mxu0
    %807 = vdwg.mxu0
    %v808 = vadd.f32 %v590, %v762
    %v809 = vxor.u32 %v808, 2147483648
    %v810 = vmul.f32 %v809, 1.442695
    %v811 = vpow.pop %v810
    %v812 = vadd.f32 %v811, 1.0
    %v813 = vrcp.pop %v812
    %v814 = vmul.f32 1.0, %v813
    %v815 = vadd.f32 %v591, %v764
    %v816 = vxor.u32 %v815, 2147483648
    %v817 = vmul.f32 %v816, 1.442695
    %v818 = vpow.pop %v817
    %v819 = vadd.f32 %v818, 1.0
    %v820 = vrcp.pop %v819
    %v821 = vmul.f32 1.0, %v820
    %v823 = vlaneseq
    %v824 = vshrl.u32 %v823, 7
    %v825 = vsub.s32 0, %v824
    %v826 = vrot.slane %v585, %v825
    %v828 = vadd.f32 %v803, %v826
    %v829 = vmul.f32 %v814, %v828
    %v830 = vadd.f32 %v592, %v829
    %v831 = vtanh.pop %v830
    %v832 = vsub.f32 1.0, %v821
    %v833 = vmul.f32 %v832, %v831
    %v834 = vmul.f32 %v821, 0.0
    %v835 = vadd.f32 %v833, %v834
    %v868 = vunpack.c.l.b16 %v553
    %v869 = vunpack.c.h.b16 %v553
    %v870 = vunpack.c.l.b16 %v554
    %v871 = vunpack.c.l.b16 %v555
    %v872 = vunpack.c.h.b16 %v555
    %v873 = vunpack.c.l.b16 %v556
    %v874 = vunpack.c.l.b16 %v557
    %v875 = vunpack.c.h.b16 %v557
    %v876 = vunpack.c.l.b16 %v558
    %v877 = vunpack.c.l.b16 %v559
    %v878 = vunpack.c.h.b16 %v559
    %v879 = vunpack.c.l.b16 %v560
    %v880 = vunpack.c.l.b16 %v561
    %v881 = vunpack.c.h.b16 %v561
    %v882 = vunpack.c.l.b16 %v562
    %v883 = vunpack.c.l.b16 %v563
    %v884 = vunpack.c.h.b16 %v563
    %v885 = vunpack.c.l.b16 %v564
    %v886 = vunpack.c.l.b16 %v565
    %v887 = vunpack.c.h.b16 %v565
    %v888 = vunpack.c.l.b16 %v566
    %v889 = vunpack.c.l.b16 %v567
    %v890 = vunpack.c.h.b16 %v567
    %v891 = vunpack.c.l.b16 %v568
    %v892 = vunpack.c.l.b16 %v569
    %v893 = vunpack.c.h.b16 %v569
    %v894 = vunpack.c.l.b16 %v570
    %v895 = vunpack.c.l.b16 %v571
    %v896 = vunpack.c.h.b16 %v571
    %v897 = vunpack.c.l.b16 %v572
    %v898 = vunpack.c.l.b16 %v573
    %v899 = vunpack.c.h.b16 %v573
    %v900 = vunpack.c.l.b16 %v574
    %v901 = vunpack.c.l.b16 %v575
    %v902 = vunpack.c.h.b16 %v575
    %v903 = vunpack.c.l.b16 %v576
    %v904 = vunpack.c.l.b16 %v577
    %v905 = vunpack.c.h.b16 %v577
    %v906 = vunpack.c.l.b16 %v578
    %v907 = vunpack.c.l.b16 %v579
    %v908 = vunpack.c.h.b16 %v579
    %v909 = vunpack.c.l.b16 %v580
    %v910 = vunpack.c.l.b16 %v581
    %v911 = vunpack.c.h.b16 %v581
    %v912 = vunpack.c.l.b16 %v582
    %v913 = vunpack.c.l.b16 %v583
    %v914 = vunpack.c.h.b16 %v583
    %v915 = vunpack.c.l.b16 %v584
    %v916 = vpack.c.b16 %v871, %v868
    %v917 = vpack.c.b16 %v872, %v869
    %v918 = vpack.c.b16 %v873, %v870
    %v919 = vpack.c.b16 %v877, %v874
    %v920 = vpack.c.b16 %v878, %v875
    %v921 = vpack.c.b16 %v879, %v876
    %v922 = vpack.c.b16 %v883, %v880
    %v923 = vpack.c.b16 %v884, %v881
    %v924 = vpack.c.b16 %v885, %v882
    %v925 = vpack.c.b16 %v889, %v886
    %v926 = vpack.c.b16 %v890, %v887
    %v927 = vpack.c.b16 %v891, %v888
    %v928 = vpack.c.b16 %v895, %v892
    %v929 = vpack.c.b16 %v896, %v893
    %v930 = vpack.c.b16 %v897, %v894
    %v931 = vpack.c.b16 %v901, %v898
    %v932 = vpack.c.b16 %v902, %v899
    %v933 = vpack.c.b16 %v903, %v900
    %v934 = vpack.c.b16 %v907, %v904
    %v935 = vpack.c.b16 %v908, %v905
    %v936 = vpack.c.b16 %v909, %v906
    %v937 = vpack.c.b16 %v913, %v910
    %v938 = vpack.c.b16 %v914, %v911
    %v939 = vpack.c.b16 %v915, %v912
    %964 = vmatprep.subr.bf16.mxu0 %v938
    %965 = vmatpush1.bf16.msra.mxu0 %v937
    %966 = vmatprep.subr.bf16.mxu0 %v935
    %967 = vmatpush1.bf16.msra.mxu0 %v934
    %968 = vmatprep.subr.bf16.mxu0 %v932
    %969 = vmatpush1.bf16.msra.mxu0 %v931
    %970 = vmatprep.subr.bf16.mxu0 %v929
    %971 = vmatpush1.bf16.msra.mxu0 %v928
    %972 = vmatprep.subr.bf16.mxu0 %v926
    %973 = vmatpush1.bf16.msra.mxu0 %v925
    %974 = vmatprep.subr.bf16.mxu0 %v923
    %975 = vmatpush1.bf16.msra.mxu0 %v922
    %976 = vmatprep.subr.bf16.mxu0 %v920
    %977 = vmatpush1.bf16.msra.mxu0 %v919
    %978 = vmatprep.subr.bf16.mxu0 %v917
    %979 = vmatpush1.bf16.msra.mxu0 %v916
    %980 = vmatprep.subr.bf16.mxu0 0
    %981 = vmatpush2.bf16.msra.mxu0 0
    %982 = vmatprep.subr.bf16.mxu0 0
    %983 = vmatpush2.bf16.msra.mxu0 0
    %984 = vmatprep.subr.bf16.mxu0 0
    %985 = vmatpush2.bf16.msra.mxu0 0
    %986 = vmatprep.subr.bf16.mxu0 0
    %987 = vmatpush2.bf16.msra.mxu0 0
    %988 = vmatprep.subr.bf16.mxu0 0
    %989 = vmatpush2.bf16.msra.mxu0 0
    %990 = vmatprep.subr.bf16.mxu0 0
    %991 = vmatpush2.bf16.msra.mxu0 0
    %992 = vmatprep.subr.bf16.mxu0 0
    %993 = vmatpush2.bf16.msra.mxu0 0
    %994 = vmatprep.subr.bf16.mxu0 0
    %995 = vmatpush2.bf16.msra.mxu0 0
    %996 = vmatprep.mubr.bf16.mxu0 0
    %997 = vmatmul.mubr.bf16.gmra.mxu0 0
    %v998 = vpop.f32.mrf.mxu0
    %v999 = vadd.f32 0.0, %v998
    %v1000 = vpop.f32.mrf.mxu0
    %v1001 = vadd.f32 0.0, %v1000
    %v1002 = vpop.f32.mrf.mxu0
    %v1003 = vpop.f32.mrf.mxu0
    %1004 = vdwg.mxu0
    %1005 = vmatprep.subr.bf16.mxu0 0
    %1006 = vmatpush1.bf16.msra.mxu0 %v939
    %1007 = vmatprep.subr.bf16.mxu0 0
    %1008 = vmatpush1.bf16.msra.mxu0 %v936
    %1009 = vmatprep.subr.bf16.mxu0 0
    %1010 = vmatpush1.bf16.msra.mxu0 %v933
    %1011 = vmatprep.subr.bf16.mxu0 0
    %1012 = vmatpush1.bf16.msra.mxu0 %v930
    %1013 = vmatprep.subr.bf16.mxu0 0
    %1014 = vmatpush1.bf16.msra.mxu0 %v927
    %1015 = vmatprep.subr.bf16.mxu0 0
    %1016 = vmatpush1.bf16.msra.mxu0 %v924
    %1017 = vmatprep.subr.bf16.mxu0 0
    %1018 = vmatpush1.bf16.msra.mxu0 %v921
    %1019 = vmatprep.subr.bf16.mxu0 0
    %1020 = vmatpush1.bf16.msra.mxu0 %v918
    %1021 = vmatprep.subr.bf16.mxu0 0
    %1022 = vmatpush2.bf16.msra.mxu0 0
    %1023 = vmatprep.subr.bf16.mxu0 0
    %1024 = vmatpush2.bf16.msra.mxu0 0
    %1025 = vmatprep.subr.bf16.mxu0 0
    %1026 = vmatpush2.bf16.msra.mxu0 0
    %1027 = vmatprep.subr.bf16.mxu0 0
    %1028 = vmatpush2.bf16.msra.mxu0 0
    %1029 = vmatprep.subr.bf16.mxu0 0
    %1030 = vmatpush2.bf16.msra.mxu0 0
    %1031 = vmatprep.subr.bf16.mxu0 0
    %1032 = vmatpush2.bf16.msra.mxu0 0
    %1033 = vmatprep.subr.bf16.mxu0 0
    %1034 = vmatpush2.bf16.msra.mxu0 0
    %1035 = vmatprep.subr.bf16.mxu0 0
    %1036 = vmatpush2.bf16.msra.mxu0 0
    %1037 = vmatprep.mubr.bf16.mxu0 0
    %1038 = vmatmul.mubr.bf16.gmra.mxu0 0
    %v1039 = vpop.f32.mrf.mxu0
    %v1040 = vadd.f32 0.0, %v1039
    %v1041 = vpop.f32.mrf.mxu0
    %v1042 = vpop.f32.mrf.mxu0
    %v1043 = vpop.f32.mrf.mxu0
    %1044 = vdwg.mxu0
    %v1045 = vadd.f32 %v596, %v999
    %v1046 = vxor.u32 %v1045, 2147483648
    %v1047 = vmul.f32 %v1046, 1.442695
    %v1048 = vpow.pop %v1047
    %v1049 = vadd.f32 %v1048, 1.0
    %v1050 = vrcp.pop %v1049
    %v1051 = vmul.f32 1.0, %v1050
    %v1052 = vadd.f32 %v597, %v1001
    %v1053 = vxor.u32 %v1052, 2147483648
    %v1054 = vmul.f32 %v1053, 1.442695
    %v1055 = vpow.pop %v1054
    %v1056 = vadd.f32 %v1055, 1.0
    %v1057 = vrcp.pop %v1056
    %v1058 = vmul.f32 1.0, %v1057
    %v1060 = vlaneseq
    %v1061 = vshrl.u32 %v1060, 7
    %v1062 = vsub.s32 0, %v1061
    %v1063 = vrot.slane %v586, %v1062
    %v1065 = vadd.f32 %v1040, %v1063
    %v1066 = vmul.f32 %v1051, %v1065
    %v1067 = vadd.f32 %v598, %v1066
    %v1068 = vtanh.pop %v1067
    %v1069 = vsub.f32 1.0, %v1058
    %v1070 = vmul.f32 %v1069, %v1068
    %v1071 = vmul.f32 %v1058, 0.0
    %v1072 = vadd.f32 %v1070, %v1071
    %vm1073 = vcmp.gt.s32.totalorder %v144, 0
    %v1074 = vsel %vm1073, 1, 0
    %1075 = vset.pattern.permute.xlu0 0
    %1076 = vperm.xlu0 %1075, %v1074
    %v1077 = vpop.permute.xlu0 %1076
    %vm1078 = vcmp.eq.s32.totalorder %v1077, 1
    %v1079 = vsel %vm1078, %v835, 0.0
    %vm1080 = vcmp.gt.s32.totalorder %v144, 7
    %v1081 = vsel %vm1080, 1, 0
    %1082 = vset.pattern.permute.xlu0 0
    %1083 = vperm.xlu0 %1082, %v1081
    %v1084 = vpop.permute.xlu0 %1083
    %vm1085 = vcmp.eq.s32.totalorder %v1084, 1
    %v1086 = vsel %vm1085, %v1072, 0.0
    %s1087 = smul.u32 1, 3
    %s1088 = smul.addr %s1087, 8
    %s1089 = scalar_lea.vmem [#allocation2], %s1088
    %v1090 = vld [vmem:[%s1089] sm:$0xff]
    %v1091 = vld [vmem:[%s1089 + $0x8] sm:$0xff]
    %v1092 = vld [vmem:[%s1089 + $0x10] sm:$0xff]
    %s1093 = smul.u32 6, 3
    %s1094 = smul.addr %s1093, 8
    %s1095 = scalar_lea.vmem [#allocation3], %s1094
    %v1096 = vld [vmem:[%s1095] sm:$0xff]
    %v1097 = vld [vmem:[%s1095 + $0x8] sm:$0xff]
    %v1098 = vld [vmem:[%s1095 + $0x10] sm:$0xff]
    %v1099 = vpack.c.bf16 %v1079, %v1079
    %1100 = vmatprep.subr.bf16.mxu0 %v701
    %1101 = vmatpush1.bf16.msra.mxu0 %v700
    %1102 = vmatprep.subr.bf16.mxu0 %v698
    %1103 = vmatpush1.bf16.msra.mxu0 %v697
    %1104 = vmatprep.subr.bf16.mxu0 %v695
    %1105 = vmatpush1.bf16.msra.mxu0 %v694
    %1106 = vmatprep.subr.bf16.mxu0 %v692
    %1107 = vmatpush1.bf16.msra.mxu0 %v691
    %1108 = vmatprep.subr.bf16.mxu0 %v689
    %1109 = vmatpush1.bf16.msra.mxu0 %v688
    %1110 = vmatprep.subr.bf16.mxu0 %v686
    %1111 = vmatpush1.bf16.msra.mxu0 %v685
    %1112 = vmatprep.subr.bf16.mxu0 %v683
    %1113 = vmatpush1.bf16.msra.mxu0 %v682
    %1114 = vmatprep.subr.bf16.mxu0 %v680
    %1115 = vmatpush1.bf16.msra.mxu0 %v679
    %1116 = vmatprep.subr.bf16.mxu0 0
    %1117 = vmatpush2.bf16.msra.mxu0 0
    %1118 = vmatprep.subr.bf16.mxu0 0
    %1119 = vmatpush2.bf16.msra.mxu0 0
    %1120 = vmatprep.subr.bf16.mxu0 0
    %1121 = vmatpush2.bf16.msra.mxu0 0
    %1122 = vmatprep.subr.bf16.mxu0 0
    %1123 = vmatpush2.bf16.msra.mxu0 0
    %1124 = vmatprep.subr.bf16.mxu0 0
    %1125 = vmatpush2.bf16.msra.mxu0 0
    %1126 = vmatprep.subr.bf16.mxu0 0
    %1127 = vmatpush2.bf16.msra.mxu0 0
    %1128 = vmatprep.subr.bf16.mxu0 0
    %1129 = vmatpush2.bf16.msra.mxu0 0
    %1130 = vmatprep.subr.bf16.mxu0 0
    %1131 = vmatpush2.bf16.msra.mxu0 0
    %1132 = vmatprep.mubr.bf16.mxu0 0
    %1133 = vmatmul.mubr.bf16.gmra.mxu0 %v1099
    %v1134 = vpop.f32.mrf.mxu0
    %v1135 = vadd.f32 0.0, %v1134
    %v1136 = vpop.f32.mrf.mxu0
    %v1137 = vadd.f32 0.0, %v1136
    %v1138 = vpop.f32.mrf.mxu0
    %v1139 = vpop.f32.mrf.mxu0
    %1140 = vdwg.mxu0
    %1141 = vmatprep.subr.bf16.mxu0 0
    %1142 = vmatpush1.bf16.msra.mxu0 %v702
    %1143 = vmatprep.subr.bf16.mxu0 0
    %1144 = vmatpush1.bf16.msra.mxu0 %v699
    %1145 = vmatprep.subr.bf16.mxu0 0
    %1146 = vmatpush1.bf16.msra.mxu0 %v696
    %1147 = vmatprep.subr.bf16.mxu0 0
    %1148 = vmatpush1.bf16.msra.mxu0 %v693
    %1149 = vmatprep.subr.bf16.mxu0 0
    %1150 = vmatpush1.bf16.msra.mxu0 %v690
    %1151 = vmatprep.subr.bf16.mxu0 0
    %1152 = vmatpush1.bf16.msra.mxu0 %v687
    %1153 = vmatprep.subr.bf16.mxu0 0
    %1154 = vmatpush1.bf16.msra.mxu0 %v684
    %1155 = vmatprep.subr.bf16.mxu0 0
    %1156 = vmatpush1.bf16.msra.mxu0 %v681
    %1157 = vmatprep.subr.bf16.mxu0 0
    %1158 = vmatpush2.bf16.msra.mxu0 0
    %1159 = vmatprep.subr.bf16.mxu0 0
    %1160 = vmatpush2.bf16.msra.mxu0 0
    %1161 = vmatprep.subr.bf16.mxu0 0
    %1162 = vmatpush2.bf16.msra.mxu0 0
    %1163 = vmatprep.subr.bf16.mxu0 0
    %1164 = vmatpush2.bf16.msra.mxu0 0
    %1165 = vmatprep.subr.bf16.mxu0 0
    %1166 = vmatpush2.bf16.msra.mxu0 0
    %1167 = vmatprep.subr.bf16.mxu0 0
    %1168 = vmatpush2.bf16.msra.mxu0 0
    %1169 = vmatprep.subr.bf16.mxu0 0
    %1170 = vmatpush2.bf16.msra.mxu0 0
    %1171 = vmatprep.subr.bf16.mxu0 0
    %1172 = vmatpush2.bf16.msra.mxu0 0
    %1173 = vmatprep.mubr.bf16.mxu0 0
    %1174 = vmatmul.mubr.bf16.gmra.mxu0 %v1099
    %v1175 = vpop.f32.mrf.mxu0
    %v1176 = vadd.f32 0.0, %v1175
    %v1177 = vpop.f32.mrf.mxu0
    %v1178 = vpop.f32.mrf.mxu0
    %v1179 = vpop.f32.mrf.mxu0
    %1180 = vdwg.mxu0
    %v1181 = vadd.f32 %v1090, %v1135
    %v1182 = vxor.u32 %v1181, 2147483648
    %v1183 = vmul.f32 %v1182, 1.442695
    %v1184 = vpow.pop %v1183
    %v1185 = vadd.f32 %v1184, 1.0
    %v1186 = vrcp.pop %v1185
    %v1187 = vmul.f32 1.0, %v1186
    %v1188 = vadd.f32 %v1091, %v1137
    %v1189 = vxor.u32 %v1188, 2147483648
    %v1190 = vmul.f32 %v1189, 1.442695
    %v1191 = vpow.pop %v1190
    %v1192 = vadd.f32 %v1191, 1.0
    %v1193 = vrcp.pop %v1192
    %v1194 = vmul.f32 1.0, %v1193
    %v1195 = vadd.f32 %v1176, %v826
    %v1196 = vmul.f32 %v1187, %v1195
    %v1197 = vadd.f32 %v1092, %v1196
    %v1198 = vtanh.pop %v1197
    %v1199 = vsub.f32 1.0, %v1194
    %v1200 = vmul.f32 %v1199, %v1198
    %v1201 = vmul.f32 %v1194, %v1079
    %v1202 = vadd.f32 %v1200, %v1201
    %v1203 = vpack.c.bf16 %v1086, %v1086
    %1204 = vmatprep.subr.bf16.mxu0 %v938
    %1205 = vmatpush1.bf16.msra.mxu0 %v937
    %1206 = vmatprep.subr.bf16.mxu0 %v935
    %1207 = vmatpush1.bf16.msra.mxu0 %v934
    %1208 = vmatprep.subr.bf16.mxu0 %v932
    %1209 = vmatpush1.bf16.msra.mxu0 %v931
    %1210 = vmatprep.subr.bf16.mxu0 %v929
    %1211 = vmatpush1.bf16.msra.mxu0 %v928
    %1212 = vmatprep.subr.bf16.mxu0 %v926
    %1213 = vmatpush1.bf16.msra.mxu0 %v925
    %1214 = vmatprep.subr.bf16.mxu0 %v923
    %1215 = vmatpush1.bf16.msra.mxu0 %v922
    %1216 = vmatprep.subr.bf16.mxu0 %v920
    %1217 = vmatpush1.bf16.msra.mxu0 %v919
    %1218 = vmatprep.subr.bf16.mxu0 %v917
    %1219 = vmatpush1.bf16.msra.mxu0 %v916
    %1220 = vmatprep.subr.bf16.mxu0 0
    %1221 = vmatpush2.bf16.msra.mxu0 0
    %1222 = vmatprep.subr.bf16.mxu0 0
    %1223 = vmatpush2.bf16.msra.mxu0 0
    %1224 = vmatprep.subr.bf16.mxu0 0
    %1225 = vmatpush2.bf16.msra.mxu0 0
    %1226 = vmatprep.subr.bf16.mxu0 0
    %1227 = vmatpush2.bf16.msra.mxu0 0
    %1228 = vmatprep.subr.bf16.mxu0 0
    %1229 = vmatpush2.bf16.msra.mxu0 0
    %1230 = vmatprep.subr.bf16.mxu0 0
    %1231 = vmatpush2.bf16.msra.mxu0 0
    %1232 = vmatprep.subr.bf16.mxu0 0
    %1233 = vmatpush2.bf16.msra.mxu0 0
    %1234 = vmatprep.subr.bf16.mxu0 0
    %1235 = vmatpush2.bf16.msra.mxu0 0
    %1236 = vmatprep.mubr.bf16.mxu0 0
    %1237 = vmatmul.mubr.bf16.gmra.mxu0 %v1203
    %v1238 = vpop.f32.mrf.mxu0
    %v1239 = vadd.f32 0.0, %v1238
    %v1240 = vpop.f32.mrf.mxu0
    %v1241 = vadd.f32 0.0, %v1240
    %v1242 = vpop.f32.mrf.mxu0
    %v1243 = vpop.f32.mrf.mxu0
    %1244 = vdwg.mxu0
    %1245 = vmatprep.subr.bf16.mxu0 0
    %1246 = vmatpush1.bf16.msra.mxu0 %v939
    %1247 = vmatprep.subr.bf16.mxu0 0
    %1248 = vmatpush1.bf16.msra.mxu0 %v936
    %1249 = vmatprep.subr.bf16.mxu0 0
    %1250 = vmatpush1.bf16.msra.mxu0 %v933
    %1251 = vmatprep.subr.bf16.mxu0 0
    %1252 = vmatpush1.bf16.msra.mxu0 %v930
    %1253 = vmatprep.subr.bf16.mxu0 0
    %1254 = vmatpush1.bf16.msra.mxu0 %v927
    %1255 = vmatprep.subr.bf16.mxu0 0
    %1256 = vmatpush1.bf16.msra.mxu0 %v924
    %1257 = vmatprep.subr.bf16.mxu0 0
    %1258 = vmatpush1.bf16.msra.mxu0 %v921
    %1259 = vmatprep.subr.bf16.mxu0 0
    %1260 = vmatpush1.bf16.msra.mxu0 %v918
    %1261 = vmatprep.subr.bf16.mxu0 0
    %1262 = vmatpush2.bf16.msra.mxu0 0
    %1263 = vmatprep.subr.bf16.mxu0 0
    %1264 = vmatpush2.bf16.msra.mxu0 0
    %1265 = vmatprep.subr.bf16.mxu0 0
    %1266 = vmatpush2.bf16.msra.mxu0 0
    %1267 = vmatprep.subr.bf16.mxu0 0
    %1268 = vmatpush2.bf16.msra.mxu0 0
    %1269 = vmatprep.subr.bf16.mxu0 0
    %1270 = vmatpush2.bf16.msra.mxu0 0
    %1271 = vmatprep.subr.bf16.mxu0 0
    %1272 = vmatpush2.bf16.msra.mxu0 0
    %1273 = vmatprep.subr.bf16.mxu0 0
    %1274 = vmatpush2.bf16.msra.mxu0 0
    %1275 = vmatprep.subr.bf16.mxu0 0
    %1276 = vmatpush2.bf16.msra.mxu0 0
    %1277 = vmatprep.mubr.bf16.mxu0 0
    %1278 = vmatmul.mubr.bf16.gmra.mxu0 %v1203
    %v1279 = vpop.f32.mrf.mxu0
    %v1280 = vadd.f32 0.0, %v1279
    %v1281 = vpop.f32.mrf.mxu0
    %v1282 = vpop.f32.mrf.mxu0
    %v1283 = vpop.f32.mrf.mxu0
    %1284 = vdwg.mxu0
    %v1285 = vadd.f32 %v1096, %v1239
    %v1286 = vxor.u32 %v1285, 2147483648
    %v1287 = vmul.f32 %v1286, 1.442695
    %v1288 = vpow.pop %v1287
    %v1289 = vadd.f32 %v1288, 1.0
    %v1290 = vrcp.pop %v1289
    %v1291 = vmul.f32 1.0, %v1290
    %v1292 = vadd.f32 %v1097, %v1241
    %v1293 = vxor.u32 %v1292, 2147483648
    %v1294 = vmul.f32 %v1293, 1.442695
    %v1295 = vpow.pop %v1294
    %v1296 = vadd.f32 %v1295, 1.0
    %v1297 = vrcp.pop %v1296
    %v1298 = vmul.f32 1.0, %v1297
    %v1299 = vadd.f32 %v1280, %v1063
    %v1300 = vmul.f32 %v1291, %v1299
    %v1301 = vadd.f32 %v1098, %v1300
    %v1302 = vtanh.pop %v1301
    %v1303 = vsub.f32 1.0, %v1298
    %v1304 = vmul.f32 %v1303, %v1302
    %v1305 = vmul.f32 %v1298, %v1086
    %v1306 = vadd.f32 %v1304, %v1305
    %vm1307 = vcmp.gt.s32.totalorder %v144, 1
    %v1308 = vsel %vm1307, 1, 0
    %1309 = vset.pattern.permute.xlu0 0
    %1310 = vperm.xlu0 %1309, %v1308
    %v1311 = vpop.permute.xlu0 %1310
    %vm1312 = vcmp.eq.s32.totalorder %v1311, 1
    %v1313 = vsel %vm1312, %v1202, %v1079
    %vm1314 = vcmp.gt.s32.totalorder %v144, 6
    %v1315 = vsel %vm1314, 1, 0
    %1316 = vset.pattern.permute.xlu0 0
    %1317 = vperm.xlu0 %1316, %v1315
    %v1318 = vpop.permute.xlu0 %1317
    %vm1319 = vcmp.eq.s32.totalorder %v1318, 1
    %v1320 = vsel %vm1319, %v1306, %v1086
    %s1321 = smul.u32 2, 3
    %s1322 = smul.addr %s1321, 8
    %s1323 = scalar_lea.vmem [#allocation2], %s1322
    %v1324 = vld [vmem:[%s1323] sm:$0xff]
    %v1325 = vld [vmem:[%s1323 + $0x8] sm:$0xff]
    %v1326 = vld [vmem:[%s1323 + $0x10] sm:$0xff]
    %s1327 = smul.u32 5, 3
    %s1328 = smul.addr %s1327, 8
    %s1329 = scalar_lea.vmem [#allocation3], %s1328
    %v1330 = vld [vmem:[%s1329] sm:$0xff]
    %v1331 = vld [vmem:[%s1329 + $0x8] sm:$0xff]
    %v1332 = vld [vmem:[%s1329 + $0x10] sm:$0xff]
    %v1333 = vpack.c.bf16 %v1313, %v1313
    %1334 = vmatprep.subr.bf16.mxu0 %v701
    %1335 = vmatpush1.bf16.msra.mxu0 %v700
    %1336 = vmatprep.subr.bf16.mxu0 %v698
    %1337 = vmatpush1.bf16.msra.mxu0 %v697
    %1338 = vmatprep.subr.bf16.mxu0 %v695
    %1339 = vmatpush1.bf16.msra.mxu0 %v694
    %1340 = vmatprep.subr.bf16.mxu0 %v692
    %1341 = vmatpush1.bf16.msra.mxu0 %v691
    %1342 = vmatprep.subr.bf16.mxu0 %v689
    %1343 = vmatpush1.bf16.msra.mxu0 %v688
    %1344 = vmatprep.subr.bf16.mxu0 %v686
    %1345 = vmatpush1.bf16.msra.mxu0 %v685
    %1346 = vmatprep.subr.bf16.mxu0 %v683
    %1347 = vmatpush1.bf16.msra.mxu0 %v682
    %1348 = vmatprep.subr.bf16.mxu0 %v680
    %1349 = vmatpush1.bf16.msra.mxu0 %v679
    %1350 = vmatprep.subr.bf16.mxu0 0
    %1351 = vmatpush2.bf16.msra.mxu0 0
    %1352 = vmatprep.subr.bf16.mxu0 0
    %1353 = vmatpush2.bf16.msra.mxu0 0
    %1354 = vmatprep.subr.bf16.mxu0 0
    %1355 = vmatpush2.bf16.msra.mxu0 0
    %1356 = vmatprep.subr.bf16.mxu0 0
    %1357 = vmatpush2.bf16.msra.mxu0 0
    %1358 = vmatprep.subr.bf16.mxu0 0
    %1359 = vmatpush2.bf16.msra.mxu0 0
    %1360 = vmatprep.subr.bf16.mxu0 0
    %1361 = vmatpush2.bf16.msra.mxu0 0
    %1362 = vmatprep.subr.bf16.mxu0 0
    %1363 = vmatpush2.bf16.msra.mxu0 0
    %1364 = vmatprep.subr.bf16.mxu0 0
    %1365 = vmatpush2.bf16.msra.mxu0 0
    %1366 = vmatprep.mubr.bf16.mxu0 0
    %1367 = vmatmul.mubr.bf16.gmra.mxu0 %v1333
    %v1368 = vpop.f32.mrf.mxu0
    %v1369 = vadd.f32 0.0, %v1368
    %v1370 = vpop.f32.mrf.mxu0
    %v1371 = vadd.f32 0.0, %v1370
    %v1372 = vpop.f32.mrf.mxu0
    %v1373 = vpop.f32.mrf.mxu0
    %1374 = vdwg.mxu0
    %1375 = vmatprep.subr.bf16.mxu0 0
    %1376 = vmatpush1.bf16.msra.mxu0 %v702
    %1377 = vmatprep.subr.bf16.mxu0 0
    %1378 = vmatpush1.bf16.msra.mxu0 %v699
    %1379 = vmatprep.subr.bf16.mxu0 0
    %1380 = vmatpush1.bf16.msra.mxu0 %v696
    %1381 = vmatprep.subr.bf16.mxu0 0
    %1382 = vmatpush1.bf16.msra.mxu0 %v693
    %1383 = vmatprep.subr.bf16.mxu0 0
    %1384 = vmatpush1.bf16.msra.mxu0 %v690
    %1385 = vmatprep.subr.bf16.mxu0 0
    %1386 = vmatpush1.bf16.msra.mxu0 %v687
    %1387 = vmatprep.subr.bf16.mxu0 0
    %1388 = vmatpush1.bf16.msra.mxu0 %v684
    %1389 = vmatprep.subr.bf16.mxu0 0
    %1390 = vmatpush1.bf16.msra.mxu0 %v681
    %1391 = vmatprep.subr.bf16.mxu0 0
    %1392 = vmatpush2.bf16.msra.mxu0 0
    %1393 = vmatprep.subr.bf16.mxu0 0
    %1394 = vmatpush2.bf16.msra.mxu0 0
    %1395 = vmatprep.subr.bf16.mxu0 0
    %1396 = vmatpush2.bf16.msra.mxu0 0
    %1397 = vmatprep.subr.bf16.mxu0 0
    %1398 = vmatpush2.bf16.msra.mxu0 0
    %1399 = vmatprep.subr.bf16.mxu0 0
    %1400 = vmatpush2.bf16.msra.mxu0 0
    %1401 = vmatprep.subr.bf16.mxu0 0
    %1402 = vmatpush2.bf16.msra.mxu0 0
    %1403 = vmatprep.subr.bf16.mxu0 0
    %1404 = vmatpush2.bf16.msra.mxu0 0
    %1405 = vmatprep.subr.bf16.mxu0 0
    %1406 = vmatpush2.bf16.msra.mxu0 0
    %1407 = vmatprep.mubr.bf16.mxu0 0
    %1408 = vmatmul.mubr.bf16.gmra.mxu0 %v1333
    %v1409 = vpop.f32.mrf.mxu0
    %v1410 = vadd.f32 0.0, %v1409
    %v1411 = vpop.f32.mrf.mxu0
    %v1412 = vpop.f32.mrf.mxu0
    %v1413 = vpop.f32.mrf.mxu0
    %1414 = vdwg.mxu0
    %v1415 = vadd.f32 %v1324, %v1369
    %v1416 = vxor.u32 %v1415, 2147483648
    %v1417 = vmul.f32 %v1416, 1.442695
    %v1418 = vpow.pop %v1417
    %v1419 = vadd.f32 %v1418, 1.0
    %v1420 = vrcp.pop %v1419
    %v1421 = vmul.f32 1.0, %v1420
    %v1422 = vadd.f32 %v1325, %v1371
    %v1423 = vxor.u32 %v1422, 2147483648
    %v1424 = vmul.f32 %v1423, 1.442695
    %v1425 = vpow.pop %v1424
    %v1426 = vadd.f32 %v1425, 1.0
    %v1427 = vrcp.pop %v1426
    %v1428 = vmul.f32 1.0, %v1427
    %v1429 = vadd.f32 %v1410, %v826
    %v1430 = vmul.f32 %v1421, %v1429
    %v1431 = vadd.f32 %v1326, %v1430
    %v1432 = vtanh.pop %v1431
    %v1433 = vsub.f32 1.0, %v1428
    %v1434 = vmul.f32 %v1433, %v1432
    %v1435 = vmul.f32 %v1428, %v1313
    %v1436 = vadd.f32 %v1434, %v1435
    %v1437 = vpack.c.bf16 %v1320, %v1320
    %1438 = vmatprep.subr.bf16.mxu0 %v938
    %1439 = vmatpush1.bf16.msra.mxu0 %v937
    %1440 = vmatprep.subr.bf16.mxu0 %v935
    %1441 = vmatpush1.bf16.msra.mxu0 %v934
    %1442 = vmatprep.subr.bf16.mxu0 %v932
    %1443 = vmatpush1.bf16.msra.mxu0 %v931
    %1444 = vmatprep.subr.bf16.mxu0 %v929
    %1445 = vmatpush1.bf16.msra.mxu0 %v928
    %1446 = vmatprep.subr.bf16.mxu0 %v926
    %1447 = vmatpush1.bf16.msra.mxu0 %v925
    %1448 = vmatprep.subr.bf16.mxu0 %v923
    %1449 = vmatpush1.bf16.msra.mxu0 %v922
    %1450 = vmatprep.subr.bf16.mxu0 %v920
    %1451 = vmatpush1.bf16.msra.mxu0 %v919
    %1452 = vmatprep.subr.bf16.mxu0 %v917
    %1453 = vmatpush1.bf16.msra.mxu0 %v916
    %1454 = vmatprep.subr.bf16.mxu0 0
    %1455 = vmatpush2.bf16.msra.mxu0 0
    %1456 = vmatprep.subr.bf16.mxu0 0
    %1457 = vmatpush2.bf16.msra.mxu0 0
    %1458 = vmatprep.subr.bf16.mxu0 0
    %1459 = vmatpush2.bf16.msra.mxu0 0
    %1460 = vmatprep.subr.bf16.mxu0 0
    %1461 = vmatpush2.bf16.msra.mxu0 0
    %1462 = vmatprep.subr.bf16.mxu0 0
    %1463 = vmatpush2.bf16.msra.mxu0 0
    %1464 = vmatprep.subr.bf16.mxu0 0
    %1465 = vmatpush2.bf16.msra.mxu0 0
    %1466 = vmatprep.subr.bf16.mxu0 0
    %1467 = vmatpush2.bf16.msra.mxu0 0
    %1468 = vmatprep.subr.bf16.mxu0 0
    %1469 = vmatpush2.bf16.msra.mxu0 0
    %1470 = vmatprep.mubr.bf16.mxu0 0
    %1471 = vmatmul.mubr.bf16.gmra.mxu0 %v1437
    %v1472 = vpop.f32.mrf.mxu0
    %v1473 = vadd.f32 0.0, %v1472
    %v1474 = vpop.f32.mrf.mxu0
    %v1475 = vadd.f32 0.0, %v1474
    %v1476 = vpop.f32.mrf.mxu0
    %v1477 = vpop.f32.mrf.mxu0
    %1478 = vdwg.mxu0
    %1479 = vmatprep.subr.bf16.mxu0 0
    %1480 = vmatpush1.bf16.msra.mxu0 %v939
    %1481 = vmatprep.subr.bf16.mxu0 0
    %1482 = vmatpush1.bf16.msra.mxu0 %v936
    %1483 = vmatprep.subr.bf16.mxu0 0
    %1484 = vmatpush1.bf16.msra.mxu0 %v933
    %1485 = vmatprep.subr.bf16.mxu0 0
    %1486 = vmatpush1.bf16.msra.mxu0 %v930
    %1487 = vmatprep.subr.bf16.mxu0 0
    %1488 = vmatpush1.bf16.msra.mxu0 %v927
    %1489 = vmatprep.subr.bf16.mxu0 0
    %1490 = vmatpush1.bf16.msra.mxu0 %v924
    %1491 = vmatprep.subr.bf16.mxu0 0
    %1492 = vmatpush1.bf16.msra.mxu0 %v921
    %1493 = vmatprep.subr.bf16.mxu0 0
    %1494 = vmatpush1.bf16.msra.mxu0 %v918
    %1495 = vmatprep.subr.bf16.mxu0 0
    %1496 = vmatpush2.bf16.msra.mxu0 0
    %1497 = vmatprep.subr.bf16.mxu0 0
    %1498 = vmatpush2.bf16.msra.mxu0 0
    %1499 = vmatprep.subr.bf16.mxu0 0
    %1500 = vmatpush2.bf16.msra.mxu0 0
    %1501 = vmatprep.subr.bf16.mxu0 0
    %1502 = vmatpush2.bf16.msra.mxu0 0
    %1503 = vmatprep.subr.bf16.mxu0 0
    %1504 = vmatpush2.bf16.msra.mxu0 0
    %1505 = vmatprep.subr.bf16.mxu0 0
    %1506 = vmatpush2.bf16.msra.mxu0 0
    %1507 = vmatprep.subr.bf16.mxu0 0
    %1508 = vmatpush2.bf16.msra.mxu0 0
    %1509 = vmatprep.subr.bf16.mxu0 0
    %1510 = vmatpush2.bf16.msra.mxu0 0
    %1511 = vmatprep.mubr.bf16.mxu0 0
    %1512 = vmatmul.mubr.bf16.gmra.mxu0 %v1437
    %v1513 = vpop.f32.mrf.mxu0
    %v1514 = vadd.f32 0.0, %v1513
    %v1515 = vpop.f32.mrf.mxu0
    %v1516 = vpop.f32.mrf.mxu0
    %v1517 = vpop.f32.mrf.mxu0
    %1518 = vdwg.mxu0
    %v1519 = vadd.f32 %v1330, %v1473
    %v1520 = vxor.u32 %v1519, 2147483648
    %v1521 = vmul.f32 %v1520, 1.442695
    %v1522 = vpow.pop %v1521
    %v1523 = vadd.f32 %v1522, 1.0
    %v1524 = vrcp.pop %v1523
    %v1525 = vmul.f32 1.0, %v1524
    %v1526 = vadd.f32 %v1331, %v1475
    %v1527 = vxor.u32 %v1526, 2147483648
    %v1528 = vmul.f32 %v1527, 1.442695
    %v1529 = vpow.pop %v1528
    %v1530 = vadd.f32 %v1529, 1.0
    %v1531 = vrcp.pop %v1530
    %v1532 = vmul.f32 1.0, %v1531
    %v1533 = vadd.f32 %v1514, %v1063
    %v1534 = vmul.f32 %v1525, %v1533
    %v1535 = vadd.f32 %v1332, %v1534
    %v1536 = vtanh.pop %v1535
    %v1537 = vsub.f32 1.0, %v1532
    %v1538 = vmul.f32 %v1537, %v1536
    %v1539 = vmul.f32 %v1532, %v1320
    %v1540 = vadd.f32 %v1538, %v1539
    %vm1541 = vcmp.gt.s32.totalorder %v144, 2
    %v1542 = vsel %vm1541, 1, 0
    %1543 = vset.pattern.permute.xlu0 0
    %1544 = vperm.xlu0 %1543, %v1542
    %v1545 = vpop.permute.xlu0 %1544
    %vm1546 = vcmp.eq.s32.totalorder %v1545, 1
    %v1547 = vsel %vm1546, %v1436, %v1313
    %vm1548 = vcmp.gt.s32.totalorder %v144, 5
    %v1549 = vsel %vm1548, 1, 0
    %1550 = vset.pattern.permute.xlu0 0
    %1551 = vperm.xlu0 %1550, %v1549
    %v1552 = vpop.permute.xlu0 %1551
    %vm1553 = vcmp.eq.s32.totalorder %v1552, 1
    %v1554 = vsel %vm1553, %v1540, %v1320
    %s1555 = smul.u32 3, 3
    %s1556 = smul.addr %s1555, 8
    %s1557 = scalar_lea.vmem [#allocation2], %s1556
    %v1558 = vld [vmem:[%s1557] sm:$0xff]
    %v1559 = vld [vmem:[%s1557 + $0x8] sm:$0xff]
    %v1560 = vld [vmem:[%s1557 + $0x10] sm:$0xff]
    %s1561 = smul.u32 4, 3
    %s1562 = smul.addr %s1561, 8
    %s1563 = scalar_lea.vmem [#allocation3], %s1562
    %v1564 = vld [vmem:[%s1563] sm:$0xff]
    %v1565 = vld [vmem:[%s1563 + $0x8] sm:$0xff]
    %v1566 = vld [vmem:[%s1563 + $0x10] sm:$0xff]
    %v1567 = vpack.c.bf16 %v1547, %v1547
    %1568 = vmatprep.subr.bf16.mxu0 %v701
    %1569 = vmatpush1.bf16.msra.mxu0 %v700
    %1570 = vmatprep.subr.bf16.mxu0 %v698
    %1571 = vmatpush1.bf16.msra.mxu0 %v697
    %1572 = vmatprep.subr.bf16.mxu0 %v695
    %1573 = vmatpush1.bf16.msra.mxu0 %v694
    %1574 = vmatprep.subr.bf16.mxu0 %v692
    %1575 = vmatpush1.bf16.msra.mxu0 %v691
    %1576 = vmatprep.subr.bf16.mxu0 %v689
    %1577 = vmatpush1.bf16.msra.mxu0 %v688
    %1578 = vmatprep.subr.bf16.mxu0 %v686
    %1579 = vmatpush1.bf16.msra.mxu0 %v685
    %1580 = vmatprep.subr.bf16.mxu0 %v683
    %1581 = vmatpush1.bf16.msra.mxu0 %v682
    %1582 = vmatprep.subr.bf16.mxu0 %v680
    %1583 = vmatpush1.bf16.msra.mxu0 %v679
    %1584 = vmatprep.subr.bf16.mxu0 0
    %1585 = vmatpush2.bf16.msra.mxu0 0
    %1586 = vmatprep.subr.bf16.mxu0 0
    %1587 = vmatpush2.bf16.msra.mxu0 0
    %1588 = vmatprep.subr.bf16.mxu0 0
    %1589 = vmatpush2.bf16.msra.mxu0 0
    %1590 = vmatprep.subr.bf16.mxu0 0
    %1591 = vmatpush2.bf16.msra.mxu0 0
    %1592 = vmatprep.subr.bf16.mxu0 0
    %1593 = vmatpush2.bf16.msra.mxu0 0
    %1594 = vmatprep.subr.bf16.mxu0 0
    %1595 = vmatpush2.bf16.msra.mxu0 0
    %1596 = vmatprep.subr.bf16.mxu0 0
    %1597 = vmatpush2.bf16.msra.mxu0 0
    %1598 = vmatprep.subr.bf16.mxu0 0
    %1599 = vmatpush2.bf16.msra.mxu0 0
    %1600 = vmatprep.mubr.bf16.mxu0 0
    %1601 = vmatmul.mubr.bf16.gmra.mxu0 %v1567
    %v1602 = vpop.f32.mrf.mxu0
    %v1603 = vadd.f32 0.0, %v1602
    %v1604 = vpop.f32.mrf.mxu0
    %v1605 = vadd.f32 0.0, %v1604
    %v1606 = vpop.f32.mrf.mxu0
    %v1607 = vpop.f32.mrf.mxu0
    %1608 = vdwg.mxu0
    %1609 = vmatprep.subr.bf16.mxu0 0
    %1610 = vmatpush1.bf16.msra.mxu0 %v702
    %1611 = vmatprep.subr.bf16.mxu0 0
    %1612 = vmatpush1.bf16.msra.mxu0 %v699
    %1613 = vmatprep.subr.bf16.mxu0 0
    %1614 = vmatpush1.bf16.msra.mxu0 %v696
    %1615 = vmatprep.subr.bf16.mxu0 0
    %1616 = vmatpush1.bf16.msra.mxu0 %v693
    %1617 = vmatprep.subr.bf16.mxu0 0
    %1618 = vmatpush1.bf16.msra.mxu0 %v690
    %1619 = vmatprep.subr.bf16.mxu0 0
    %1620 = vmatpush1.bf16.msra.mxu0 %v687
    %1621 = vmatprep.subr.bf16.mxu0 0
    %1622 = vmatpush1.bf16.msra.mxu0 %v684
    %1623 = vmatprep.subr.bf16.mxu0 0
    %1624 = vmatpush1.bf16.msra.mxu0 %v681
    %1625 = vmatprep.subr.bf16.mxu0 0
    %1626 = vmatpush2.bf16.msra.mxu0 0
    %1627 = vmatprep.subr.bf16.mxu0 0
    %1628 = vmatpush2.bf16.msra.mxu0 0
    %1629 = vmatprep.subr.bf16.mxu0 0
    %1630 = vmatpush2.bf16.msra.mxu0 0
    %1631 = vmatprep.subr.bf16.mxu0 0
    %1632 = vmatpush2.bf16.msra.mxu0 0
    %1633 = vmatprep.subr.bf16.mxu0 0
    %1634 = vmatpush2.bf16.msra.mxu0 0
    %1635 = vmatprep.subr.bf16.mxu0 0
    %1636 = vmatpush2.bf16.msra.mxu0 0
    %1637 = vmatprep.subr.bf16.mxu0 0
    %1638 = vmatpush2.bf16.msra.mxu0 0
    %1639 = vmatprep.subr.bf16.mxu0 0
    %1640 = vmatpush2.bf16.msra.mxu0 0
    %1641 = vmatprep.mubr.bf16.mxu0 0
    %1642 = vmatmul.mubr.bf16.gmra.mxu0 %v1567
    %v1643 = vpop.f32.mrf.mxu0
    %v1644 = vadd.f32 0.0, %v1643
    %v1645 = vpop.f32.mrf.mxu0
    %v1646 = vpop.f32.mrf.mxu0
    %v1647 = vpop.f32.mrf.mxu0
    %1648 = vdwg.mxu0
    %v1649 = vadd.f32 %v1558, %v1603
    %v1650 = vxor.u32 %v1649, 2147483648
    %v1651 = vmul.f32 %v1650, 1.442695
    %v1652 = vpow.pop %v1651
    %v1653 = vadd.f32 %v1652, 1.0
    %v1654 = vrcp.pop %v1653
    %v1655 = vmul.f32 1.0, %v1654
    %v1656 = vadd.f32 %v1559, %v1605
    %v1657 = vxor.u32 %v1656, 2147483648
    %v1658 = vmul.f32 %v1657, 1.442695
    %v1659 = vpow.pop %v1658
    %v1660 = vadd.f32 %v1659, 1.0
    %v1661 = vrcp.pop %v1660
    %v1662 = vmul.f32 1.0, %v1661
    %v1663 = vadd.f32 %v1644, %v826
    %v1664 = vmul.f32 %v1655, %v1663
    %v1665 = vadd.f32 %v1560, %v1664
    %v1666 = vtanh.pop %v1665
    %v1667 = vsub.f32 1.0, %v1662
    %v1668 = vmul.f32 %v1667, %v1666
    %v1669 = vmul.f32 %v1662, %v1547
    %v1670 = vadd.f32 %v1668, %v1669
    %v1671 = vpack.c.bf16 %v1554, %v1554
    %1672 = vmatprep.subr.bf16.mxu0 %v938
    %1673 = vmatpush1.bf16.msra.mxu0 %v937
    %1674 = vmatprep.subr.bf16.mxu0 %v935
    %1675 = vmatpush1.bf16.msra.mxu0 %v934
    %1676 = vmatprep.subr.bf16.mxu0 %v932
    %1677 = vmatpush1.bf16.msra.mxu0 %v931
    %1678 = vmatprep.subr.bf16.mxu0 %v929
    %1679 = vmatpush1.bf16.msra.mxu0 %v928
    %1680 = vmatprep.subr.bf16.mxu0 %v926
    %1681 = vmatpush1.bf16.msra.mxu0 %v925
    %1682 = vmatprep.subr.bf16.mxu0 %v923
    %1683 = vmatpush1.bf16.msra.mxu0 %v922
    %1684 = vmatprep.subr.bf16.mxu0 %v920
    %1685 = vmatpush1.bf16.msra.mxu0 %v919
    %1686 = vmatprep.subr.bf16.mxu0 %v917
    %1687 = vmatpush1.bf16.msra.mxu0 %v916
    %1688 = vmatprep.subr.bf16.mxu0 0
    %1689 = vmatpush2.bf16.msra.mxu0 0
    %1690 = vmatprep.subr.bf16.mxu0 0
    %1691 = vmatpush2.bf16.msra.mxu0 0
    %1692 = vmatprep.subr.bf16.mxu0 0
    %1693 = vmatpush2.bf16.msra.mxu0 0
    %1694 = vmatprep.subr.bf16.mxu0 0
    %1695 = vmatpush2.bf16.msra.mxu0 0
    %1696 = vmatprep.subr.bf16.mxu0 0
    %1697 = vmatpush2.bf16.msra.mxu0 0
    %1698 = vmatprep.subr.bf16.mxu0 0
    %1699 = vmatpush2.bf16.msra.mxu0 0
    %1700 = vmatprep.subr.bf16.mxu0 0
    %1701 = vmatpush2.bf16.msra.mxu0 0
    %1702 = vmatprep.subr.bf16.mxu0 0
    %1703 = vmatpush2.bf16.msra.mxu0 0
    %1704 = vmatprep.mubr.bf16.mxu0 0
    %1705 = vmatmul.mubr.bf16.gmra.mxu0 %v1671
    %v1706 = vpop.f32.mrf.mxu0
    %v1707 = vadd.f32 0.0, %v1706
    %v1708 = vpop.f32.mrf.mxu0
    %v1709 = vadd.f32 0.0, %v1708
    %v1710 = vpop.f32.mrf.mxu0
    %v1711 = vpop.f32.mrf.mxu0
    %1712 = vdwg.mxu0
    %1713 = vmatprep.subr.bf16.mxu0 0
    %1714 = vmatpush1.bf16.msra.mxu0 %v939
    %1715 = vmatprep.subr.bf16.mxu0 0
    %1716 = vmatpush1.bf16.msra.mxu0 %v936
    %1717 = vmatprep.subr.bf16.mxu0 0
    %1718 = vmatpush1.bf16.msra.mxu0 %v933
    %1719 = vmatprep.subr.bf16.mxu0 0
    %1720 = vmatpush1.bf16.msra.mxu0 %v930
    %1721 = vmatprep.subr.bf16.mxu0 0
    %1722 = vmatpush1.bf16.msra.mxu0 %v927
    %1723 = vmatprep.subr.bf16.mxu0 0
    %1724 = vmatpush1.bf16.msra.mxu0 %v924
    %1725 = vmatprep.subr.bf16.mxu0 0
    %1726 = vmatpush1.bf16.msra.mxu0 %v921
    %1727 = vmatprep.subr.bf16.mxu0 0
    %1728 = vmatpush1.bf16.msra.mxu0 %v918
    %1729 = vmatprep.subr.bf16.mxu0 0
    %1730 = vmatpush2.bf16.msra.mxu0 0
    %1731 = vmatprep.subr.bf16.mxu0 0
    %1732 = vmatpush2.bf16.msra.mxu0 0
    %1733 = vmatprep.subr.bf16.mxu0 0
    %1734 = vmatpush2.bf16.msra.mxu0 0
    %1735 = vmatprep.subr.bf16.mxu0 0
    %1736 = vmatpush2.bf16.msra.mxu0 0
    %1737 = vmatprep.subr.bf16.mxu0 0
    %1738 = vmatpush2.bf16.msra.mxu0 0
    %1739 = vmatprep.subr.bf16.mxu0 0
    %1740 = vmatpush2.bf16.msra.mxu0 0
    %1741 = vmatprep.subr.bf16.mxu0 0
    %1742 = vmatpush2.bf16.msra.mxu0 0
    %1743 = vmatprep.subr.bf16.mxu0 0
    %1744 = vmatpush2.bf16.msra.mxu0 0
    %1745 = vmatprep.mubr.bf16.mxu0 0
    %1746 = vmatmul.mubr.bf16.gmra.mxu0 %v1671
    %v1747 = vpop.f32.mrf.mxu0
    %v1748 = vadd.f32 0.0, %v1747
    %v1749 = vpop.f32.mrf.mxu0
    %v1750 = vpop.f32.mrf.mxu0
    %v1751 = vpop.f32.mrf.mxu0
    %1752 = vdwg.mxu0
    %v1753 = vadd.f32 %v1564, %v1707
    %v1754 = vxor.u32 %v1753, 2147483648
    %v1755 = vmul.f32 %v1754, 1.442695
    %v1756 = vpow.pop %v1755
    %v1757 = vadd.f32 %v1756, 1.0
    %v1758 = vrcp.pop %v1757
    %v1759 = vmul.f32 1.0, %v1758
    %v1760 = vadd.f32 %v1565, %v1709
    %v1761 = vxor.u32 %v1760, 2147483648
    %v1762 = vmul.f32 %v1761, 1.442695
    %v1763 = vpow.pop %v1762
    %v1764 = vadd.f32 %v1763, 1.0
    %v1765 = vrcp.pop %v1764
    %v1766 = vmul.f32 1.0, %v1765
    %v1767 = vadd.f32 %v1748, %v1063
    %v1768 = vmul.f32 %v1759, %v1767
    %v1769 = vadd.f32 %v1566, %v1768
    %v1770 = vtanh.pop %v1769
    %v1771 = vsub.f32 1.0, %v1766
    %v1772 = vmul.f32 %v1771, %v1770
    %v1773 = vmul.f32 %v1766, %v1554
    %v1774 = vadd.f32 %v1772, %v1773
    %vm1775 = vcmp.gt.s32.totalorder %v144, 3
    %v1776 = vsel %vm1775, 1, 0
    %1777 = vset.pattern.permute.xlu0 0
    %1778 = vperm.xlu0 %1777, %v1776
    %v1779 = vpop.permute.xlu0 %1778
    %vm1780 = vcmp.eq.s32.totalorder %v1779, 1
    %v1781 = vsel %vm1780, %v1670, %v1547
    %vm1782 = vcmp.gt.s32.totalorder %v144, 4
    %v1783 = vsel %vm1782, 1, 0
    %1784 = vset.pattern.permute.xlu0 0
    %1785 = vperm.xlu0 %1784, %v1783
    %v1786 = vpop.permute.xlu0 %1785
    %vm1787 = vcmp.eq.s32.totalorder %v1786, 1
    %v1788 = vsel %vm1787, %v1774, %v1554
    %s1789 = smul.addr %s1561, 8
    %s1790 = scalar_lea.vmem [#allocation2], %s1789
    %v1791 = vld [vmem:[%s1790] sm:$0xff]
    %v1792 = vld [vmem:[%s1790 + $0x8] sm:$0xff]
    %v1793 = vld [vmem:[%s1790 + $0x10] sm:$0xff]
    %s1794 = smul.addr %s1555, 8
    %s1795 = scalar_lea.vmem [#allocation3], %s1794
    %v1796 = vld [vmem:[%s1795] sm:$0xff]
    %v1797 = vld [vmem:[%s1795 + $0x8] sm:$0xff]
    %v1798 = vld [vmem:[%s1795 + $0x10] sm:$0xff]
    %v1799 = vpack.c.bf16 %v1781, %v1781
    %1800 = vmatprep.subr.bf16.mxu0 %v701
    %1801 = vmatpush1.bf16.msra.mxu0 %v700
    %1802 = vmatprep.subr.bf16.mxu0 %v698
    %1803 = vmatpush1.bf16.msra.mxu0 %v697
    %1804 = vmatprep.subr.bf16.mxu0 %v695
    %1805 = vmatpush1.bf16.msra.mxu0 %v694
    %1806 = vmatprep.subr.bf16.mxu0 %v692
    %1807 = vmatpush1.bf16.msra.mxu0 %v691
    %1808 = vmatprep.subr.bf16.mxu0 %v689
    %1809 = vmatpush1.bf16.msra.mxu0 %v688
    %1810 = vmatprep.subr.bf16.mxu0 %v686
    %1811 = vmatpush1.bf16.msra.mxu0 %v685
    %1812 = vmatprep.subr.bf16.mxu0 %v683
    %1813 = vmatpush1.bf16.msra.mxu0 %v682
    %1814 = vmatprep.subr.bf16.mxu0 %v680
    %1815 = vmatpush1.bf16.msra.mxu0 %v679
    %1816 = vmatprep.subr.bf16.mxu0 0
    %1817 = vmatpush2.bf16.msra.mxu0 0
    %1818 = vmatprep.subr.bf16.mxu0 0
    %1819 = vmatpush2.bf16.msra.mxu0 0
    %1820 = vmatprep.subr.bf16.mxu0 0
    %1821 = vmatpush2.bf16.msra.mxu0 0
    %1822 = vmatprep.subr.bf16.mxu0 0
    %1823 = vmatpush2.bf16.msra.mxu0 0
    %1824 = vmatprep.subr.bf16.mxu0 0
    %1825 = vmatpush2.bf16.msra.mxu0 0
    %1826 = vmatprep.subr.bf16.mxu0 0
    %1827 = vmatpush2.bf16.msra.mxu0 0
    %1828 = vmatprep.subr.bf16.mxu0 0
    %1829 = vmatpush2.bf16.msra.mxu0 0
    %1830 = vmatprep.subr.bf16.mxu0 0
    %1831 = vmatpush2.bf16.msra.mxu0 0
    %1832 = vmatprep.mubr.bf16.mxu0 0
    %1833 = vmatmul.mubr.bf16.gmra.mxu0 %v1799
    %v1834 = vpop.f32.mrf.mxu0
    %v1835 = vadd.f32 0.0, %v1834
    %v1836 = vpop.f32.mrf.mxu0
    %v1837 = vadd.f32 0.0, %v1836
    %v1838 = vpop.f32.mrf.mxu0
    %v1839 = vpop.f32.mrf.mxu0
    %1840 = vdwg.mxu0
    %1841 = vmatprep.subr.bf16.mxu0 0
    %1842 = vmatpush1.bf16.msra.mxu0 %v702
    %1843 = vmatprep.subr.bf16.mxu0 0
    %1844 = vmatpush1.bf16.msra.mxu0 %v699
    %1845 = vmatprep.subr.bf16.mxu0 0
    %1846 = vmatpush1.bf16.msra.mxu0 %v696
    %1847 = vmatprep.subr.bf16.mxu0 0
    %1848 = vmatpush1.bf16.msra.mxu0 %v693
    %1849 = vmatprep.subr.bf16.mxu0 0
    %1850 = vmatpush1.bf16.msra.mxu0 %v690
    %1851 = vmatprep.subr.bf16.mxu0 0
    %1852 = vmatpush1.bf16.msra.mxu0 %v687
    %1853 = vmatprep.subr.bf16.mxu0 0
    %1854 = vmatpush1.bf16.msra.mxu0 %v684
    %1855 = vmatprep.subr.bf16.mxu0 0
    %1856 = vmatpush1.bf16.msra.mxu0 %v681
    %1857 = vmatprep.subr.bf16.mxu0 0
    %1858 = vmatpush2.bf16.msra.mxu0 0
    %1859 = vmatprep.subr.bf16.mxu0 0
    %1860 = vmatpush2.bf16.msra.mxu0 0
    %1861 = vmatprep.subr.bf16.mxu0 0
    %1862 = vmatpush2.bf16.msra.mxu0 0
    %1863 = vmatprep.subr.bf16.mxu0 0
    %1864 = vmatpush2.bf16.msra.mxu0 0
    %1865 = vmatprep.subr.bf16.mxu0 0
    %1866 = vmatpush2.bf16.msra.mxu0 0
    %1867 = vmatprep.subr.bf16.mxu0 0
    %1868 = vmatpush2.bf16.msra.mxu0 0
    %1869 = vmatprep.subr.bf16.mxu0 0
    %1870 = vmatpush2.bf16.msra.mxu0 0
    %1871 = vmatprep.subr.bf16.mxu0 0
    %1872 = vmatpush2.bf16.msra.mxu0 0
    %1873 = vmatprep.mubr.bf16.mxu0 0
    %1874 = vmatmul.mubr.bf16.gmra.mxu0 %v1799
    %v1875 = vpop.f32.mrf.mxu0
    %v1876 = vadd.f32 0.0, %v1875
    %v1877 = vpop.f32.mrf.mxu0
    %v1878 = vpop.f32.mrf.mxu0
    %v1879 = vpop.f32.mrf.mxu0
    %1880 = vdwg.mxu0
    %v1881 = vadd.f32 %v1791, %v1835
    %v1882 = vxor.u32 %v1881, 2147483648
    %v1883 = vmul.f32 %v1882, 1.442695
    %v1884 = vpow.pop %v1883
    %v1885 = vadd.f32 %v1884, 1.0
    %v1886 = vrcp.pop %v1885
    %v1887 = vmul.f32 1.0, %v1886
    %v1888 = vadd.f32 %v1792, %v1837
    %v1889 = vxor.u32 %v1888, 2147483648
    %v1890 = vmul.f32 %v1889, 1.442695
    %v1891 = vpow.pop %v1890
    %v1892 = vadd.f32 %v1891, 1.0
    %v1893 = vrcp.pop %v1892
    %v1894 = vmul.f32 1.0, %v1893
    %v1895 = vadd.f32 %v1876, %v826
    %v1896 = vmul.f32 %v1887, %v1895
    %v1897 = vadd.f32 %v1793, %v1896
    %v1898 = vtanh.pop %v1897
    %v1899 = vsub.f32 1.0, %v1894
    %v1900 = vmul.f32 %v1899, %v1898
    %v1901 = vmul.f32 %v1894, %v1781
    %v1902 = vadd.f32 %v1900, %v1901
    %v1903 = vpack.c.bf16 %v1788, %v1788
    %1904 = vmatprep.subr.bf16.mxu0 %v938
    %1905 = vmatpush1.bf16.msra.mxu0 %v937
    %1906 = vmatprep.subr.bf16.mxu0 %v935
    %1907 = vmatpush1.bf16.msra.mxu0 %v934
    %1908 = vmatprep.subr.bf16.mxu0 %v932
    %1909 = vmatpush1.bf16.msra.mxu0 %v931
    %1910 = vmatprep.subr.bf16.mxu0 %v929
    %1911 = vmatpush1.bf16.msra.mxu0 %v928
    %1912 = vmatprep.subr.bf16.mxu0 %v926
    %1913 = vmatpush1.bf16.msra.mxu0 %v925
    %1914 = vmatprep.subr.bf16.mxu0 %v923
    %1915 = vmatpush1.bf16.msra.mxu0 %v922
    %1916 = vmatprep.subr.bf16.mxu0 %v920
    %1917 = vmatpush1.bf16.msra.mxu0 %v919
    %1918 = vmatprep.subr.bf16.mxu0 %v917
    %1919 = vmatpush1.bf16.msra.mxu0 %v916
    %1920 = vmatprep.subr.bf16.mxu0 0
    %1921 = vmatpush2.bf16.msra.mxu0 0
    %1922 = vmatprep.subr.bf16.mxu0 0
    %1923 = vmatpush2.bf16.msra.mxu0 0
    %1924 = vmatprep.subr.bf16.mxu0 0
    %1925 = vmatpush2.bf16.msra.mxu0 0
    %1926 = vmatprep.subr.bf16.mxu0 0
    %1927 = vmatpush2.bf16.msra.mxu0 0
    %1928 = vmatprep.subr.bf16.mxu0 0
    %1929 = vmatpush2.bf16.msra.mxu0 0
    %1930 = vmatprep.subr.bf16.mxu0 0
    %1931 = vmatpush2.bf16.msra.mxu0 0
    %1932 = vmatprep.subr.bf16.mxu0 0
    %1933 = vmatpush2.bf16.msra.mxu0 0
    %1934 = vmatprep.subr.bf16.mxu0 0
    %1935 = vmatpush2.bf16.msra.mxu0 0
    %1936 = vmatprep.mubr.bf16.mxu0 0
    %1937 = vmatmul.mubr.bf16.gmra.mxu0 %v1903
    %v1938 = vpop.f32.mrf.mxu0
    %v1939 = vadd.f32 0.0, %v1938
    %v1940 = vpop.f32.mrf.mxu0
    %v1941 = vadd.f32 0.0, %v1940
    %v1942 = vpop.f32.mrf.mxu0
    %v1943 = vpop.f32.mrf.mxu0
    %1944 = vdwg.mxu0
    %1945 = vmatprep.subr.bf16.mxu0 0
    %1946 = vmatpush1.bf16.msra.mxu0 %v939
    %1947 = vmatprep.subr.bf16.mxu0 0
    %1948 = vmatpush1.bf16.msra.mxu0 %v936
    %1949 = vmatprep.subr.bf16.mxu0 0
    %1950 = vmatpush1.bf16.msra.mxu0 %v933
    %1951 = vmatprep.subr.bf16.mxu0 0
    %1952 = vmatpush1.bf16.msra.mxu0 %v930
    %1953 = vmatprep.subr.bf16.mxu0 0
    %1954 = vmatpush1.bf16.msra.mxu0 %v927
    %1955 = vmatprep.subr.bf16.mxu0 0
    %1956 = vmatpush1.bf16.msra.mxu0 %v924
    %1957 = vmatprep.subr.bf16.mxu0 0
    %1958 = vmatpush1.bf16.msra.mxu0 %v921
    %1959 = vmatprep.subr.bf16.mxu0 0
    %1960 = vmatpush1.bf16.msra.mxu0 %v918
    %1961 = vmatprep.subr.bf16.mxu0 0
    %1962 = vmatpush2.bf16.msra.mxu0 0
    %1963 = vmatprep.subr.bf16.mxu0 0
    %1964 = vmatpush2.bf16.msra.mxu0 0
    %1965 = vmatprep.subr.bf16.mxu0 0
    %1966 = vmatpush2.bf16.msra.mxu0 0
    %1967 = vmatprep.subr.bf16.mxu0 0
    %1968 = vmatpush2.bf16.msra.mxu0 0
    %1969 = vmatprep.subr.bf16.mxu0 0
    %1970 = vmatpush2.bf16.msra.mxu0 0
    %1971 = vmatprep.subr.bf16.mxu0 0
    %1972 = vmatpush2.bf16.msra.mxu0 0
    %1973 = vmatprep.subr.bf16.mxu0 0
    %1974 = vmatpush2.bf16.msra.mxu0 0
    %1975 = vmatprep.subr.bf16.mxu0 0
    %1976 = vmatpush2.bf16.msra.mxu0 0
    %1977 = vmatprep.mubr.bf16.mxu0 0
    %1978 = vmatmul.mubr.bf16.gmra.mxu0 %v1903
    %v1979 = vpop.f32.mrf.mxu0
    %v1980 = vadd.f32 0.0, %v1979
    %v1981 = vpop.f32.mrf.mxu0
    %v1982 = vpop.f32.mrf.mxu0
    %v1983 = vpop.f32.mrf.mxu0
    %1984 = vdwg.mxu0
    %v1985 = vadd.f32 %v1796, %v1939
    %v1986 = vxor.u32 %v1985, 2147483648
    %v1987 = vmul.f32 %v1986, 1.442695
    %v1988 = vpow.pop %v1987
    %v1989 = vadd.f32 %v1988, 1.0
    %v1990 = vrcp.pop %v1989
    %v1991 = vmul.f32 1.0, %v1990
    %v1992 = vadd.f32 %v1797, %v1941
    %v1993 = vxor.u32 %v1992, 2147483648
    %v1994 = vmul.f32 %v1993, 1.442695
    %v1995 = vpow.pop %v1994
    %v1996 = vadd.f32 %v1995, 1.0
    %v1997 = vrcp.pop %v1996
    %v1998 = vmul.f32 1.0, %v1997
    %v1999 = vadd.f32 %v1980, %v1063
    %v2000 = vmul.f32 %v1991, %v1999
    %v2001 = vadd.f32 %v1798, %v2000
    %v2002 = vtanh.pop %v2001
    %v2003 = vsub.f32 1.0, %v1998
    %v2004 = vmul.f32 %v2003, %v2002
    %v2005 = vmul.f32 %v1998, %v1788
    %v2006 = vadd.f32 %v2004, %v2005
    %v2007 = vsel %vm1787, %v1902, %v1781
    %v2008 = vsel %vm1780, %v2006, %v1788
    %s2009 = smul.addr %s1327, 8
    %s2010 = scalar_lea.vmem [#allocation2], %s2009
    %v2011 = vld [vmem:[%s2010] sm:$0xff]
    %v2012 = vld [vmem:[%s2010 + $0x8] sm:$0xff]
    %v2013 = vld [vmem:[%s2010 + $0x10] sm:$0xff]
    %s2014 = smul.addr %s1321, 8
    %s2015 = scalar_lea.vmem [#allocation3], %s2014
    %v2016 = vld [vmem:[%s2015] sm:$0xff]
    %v2017 = vld [vmem:[%s2015 + $0x8] sm:$0xff]
    %v2018 = vld [vmem:[%s2015 + $0x10] sm:$0xff]
    %v2019 = vpack.c.bf16 %v2007, %v2007
    %2020 = vmatprep.subr.bf16.mxu0 %v701
    %2021 = vmatpush1.bf16.msra.mxu0 %v700
    %2022 = vmatprep.subr.bf16.mxu0 %v698
    %2023 = vmatpush1.bf16.msra.mxu0 %v697
    %2024 = vmatprep.subr.bf16.mxu0 %v695
    %2025 = vmatpush1.bf16.msra.mxu0 %v694
    %2026 = vmatprep.subr.bf16.mxu0 %v692
    %2027 = vmatpush1.bf16.msra.mxu0 %v691
    %2028 = vmatprep.subr.bf16.mxu0 %v689
    %2029 = vmatpush1.bf16.msra.mxu0 %v688
    %2030 = vmatprep.subr.bf16.mxu0 %v686
    %2031 = vmatpush1.bf16.msra.mxu0 %v685
    %2032 = vmatprep.subr.bf16.mxu0 %v683
    %2033 = vmatpush1.bf16.msra.mxu0 %v682
    %2034 = vmatprep.subr.bf16.mxu0 %v680
    %2035 = vmatpush1.bf16.msra.mxu0 %v679
    %2036 = vmatprep.subr.bf16.mxu0 0
    %2037 = vmatpush2.bf16.msra.mxu0 0
    %2038 = vmatprep.subr.bf16.mxu0 0
    %2039 = vmatpush2.bf16.msra.mxu0 0
    %2040 = vmatprep.subr.bf16.mxu0 0
    %2041 = vmatpush2.bf16.msra.mxu0 0
    %2042 = vmatprep.subr.bf16.mxu0 0
    %2043 = vmatpush2.bf16.msra.mxu0 0
    %2044 = vmatprep.subr.bf16.mxu0 0
    %2045 = vmatpush2.bf16.msra.mxu0 0
    %2046 = vmatprep.subr.bf16.mxu0 0
    %2047 = vmatpush2.bf16.msra.mxu0 0
    %2048 = vmatprep.subr.bf16.mxu0 0
    %2049 = vmatpush2.bf16.msra.mxu0 0
    %2050 = vmatprep.subr.bf16.mxu0 0
    %2051 = vmatpush2.bf16.msra.mxu0 0
    %2052 = vmatprep.mubr.bf16.mxu0 0
    %2053 = vmatmul.mubr.bf16.gmra.mxu0 %v2019
    %v2054 = vpop.f32.mrf.mxu0
    %v2055 = vadd.f32 0.0, %v2054
    %v2056 = vpop.f32.mrf.mxu0
    %v2057 = vadd.f32 0.0, %v2056
    %v2058 = vpop.f32.mrf.mxu0
    %v2059 = vpop.f32.mrf.mxu0
    %2060 = vdwg.mxu0
    %2061 = vmatprep.subr.bf16.mxu0 0
    %2062 = vmatpush1.bf16.msra.mxu0 %v702
    %2063 = vmatprep.subr.bf16.mxu0 0
    %2064 = vmatpush1.bf16.msra.mxu0 %v699
    %2065 = vmatprep.subr.bf16.mxu0 0
    %2066 = vmatpush1.bf16.msra.mxu0 %v696
    %2067 = vmatprep.subr.bf16.mxu0 0
    %2068 = vmatpush1.bf16.msra.mxu0 %v693
    %2069 = vmatprep.subr.bf16.mxu0 0
    %2070 = vmatpush1.bf16.msra.mxu0 %v690
    %2071 = vmatprep.subr.bf16.mxu0 0
    %2072 = vmatpush1.bf16.msra.mxu0 %v687
    %2073 = vmatprep.subr.bf16.mxu0 0
    %2074 = vmatpush1.bf16.msra.mxu0 %v684
    %2075 = vmatprep.subr.bf16.mxu0 0
    %2076 = vmatpush1.bf16.msra.mxu0 %v681
    %2077 = vmatprep.subr.bf16.mxu0 0
    %2078 = vmatpush2.bf16.msra.mxu0 0
    %2079 = vmatprep.subr.bf16.mxu0 0
    %2080 = vmatpush2.bf16.msra.mxu0 0
    %2081 = vmatprep.subr.bf16.mxu0 0
    %2082 = vmatpush2.bf16.msra.mxu0 0
    %2083 = vmatprep.subr.bf16.mxu0 0
    %2084 = vmatpush2.bf16.msra.mxu0 0
    %2085 = vmatprep.subr.bf16.mxu0 0
    %2086 = vmatpush2.bf16.msra.mxu0 0
    %2087 = vmatprep.subr.bf16.mxu0 0
    %2088 = vmatpush2.bf16.msra.mxu0 0
    %2089 = vmatprep.subr.bf16.mxu0 0
    %2090 = vmatpush2.bf16.msra.mxu0 0
    %2091 = vmatprep.subr.bf16.mxu0 0
    %2092 = vmatpush2.bf16.msra.mxu0 0
    %2093 = vmatprep.mubr.bf16.mxu0 0
    %2094 = vmatmul.mubr.bf16.gmra.mxu0 %v2019
    %v2095 = vpop.f32.mrf.mxu0
    %v2096 = vadd.f32 0.0, %v2095
    %v2097 = vpop.f32.mrf.mxu0
    %v2098 = vpop.f32.mrf.mxu0
    %v2099 = vpop.f32.mrf.mxu0
    %2100 = vdwg.mxu0
    %v2101 = vadd.f32 %v2011, %v2055
    %v2102 = vxor.u32 %v2101, 2147483648
    %v2103 = vmul.f32 %v2102, 1.442695
    %v2104 = vpow.pop %v2103
    %v2105 = vadd.f32 %v2104, 1.0
    %v2106 = vrcp.pop %v2105
    %v2107 = vmul.f32 1.0, %v2106
    %v2108 = vadd.f32 %v2012, %v2057
    %v2109 = vxor.u32 %v2108, 2147483648
    %v2110 = vmul.f32 %v2109, 1.442695
    %v2111 = vpow.pop %v2110
    %v2112 = vadd.f32 %v2111, 1.0
    %v2113 = vrcp.pop %v2112
    %v2114 = vmul.f32 1.0, %v2113
    %v2115 = vadd.f32 %v2096, %v826
    %v2116 = vmul.f32 %v2107, %v2115
    %v2117 = vadd.f32 %v2013, %v2116
    %v2118 = vtanh.pop %v2117
    %v2119 = vsub.f32 1.0, %v2114
    %v2120 = vmul.f32 %v2119, %v2118
    %v2121 = vmul.f32 %v2114, %v2007
    %v2122 = vadd.f32 %v2120, %v2121
    %v2123 = vpack.c.bf16 %v2008, %v2008
    %2124 = vmatprep.subr.bf16.mxu0 %v938
    %2125 = vmatpush1.bf16.msra.mxu0 %v937
    %2126 = vmatprep.subr.bf16.mxu0 %v935
    %2127 = vmatpush1.bf16.msra.mxu0 %v934
    %2128 = vmatprep.subr.bf16.mxu0 %v932
    %2129 = vmatpush1.bf16.msra.mxu0 %v931
    %2130 = vmatprep.subr.bf16.mxu0 %v929
    %2131 = vmatpush1.bf16.msra.mxu0 %v928
    %2132 = vmatprep.subr.bf16.mxu0 %v926
    %2133 = vmatpush1.bf16.msra.mxu0 %v925
    %2134 = vmatprep.subr.bf16.mxu0 %v923
    %2135 = vmatpush1.bf16.msra.mxu0 %v922
    %2136 = vmatprep.subr.bf16.mxu0 %v920
    %2137 = vmatpush1.bf16.msra.mxu0 %v919
    %2138 = vmatprep.subr.bf16.mxu0 %v917
    %2139 = vmatpush1.bf16.msra.mxu0 %v916
    %2140 = vmatprep.subr.bf16.mxu0 0
    %2141 = vmatpush2.bf16.msra.mxu0 0
    %2142 = vmatprep.subr.bf16.mxu0 0
    %2143 = vmatpush2.bf16.msra.mxu0 0
    %2144 = vmatprep.subr.bf16.mxu0 0
    %2145 = vmatpush2.bf16.msra.mxu0 0
    %2146 = vmatprep.subr.bf16.mxu0 0
    %2147 = vmatpush2.bf16.msra.mxu0 0
    %2148 = vmatprep.subr.bf16.mxu0 0
    %2149 = vmatpush2.bf16.msra.mxu0 0
    %2150 = vmatprep.subr.bf16.mxu0 0
    %2151 = vmatpush2.bf16.msra.mxu0 0
    %2152 = vmatprep.subr.bf16.mxu0 0
    %2153 = vmatpush2.bf16.msra.mxu0 0
    %2154 = vmatprep.subr.bf16.mxu0 0
    %2155 = vmatpush2.bf16.msra.mxu0 0
    %2156 = vmatprep.mubr.bf16.mxu0 0
    %2157 = vmatmul.mubr.bf16.gmra.mxu0 %v2123
    %v2158 = vpop.f32.mrf.mxu0
    %v2159 = vadd.f32 0.0, %v2158
    %v2160 = vpop.f32.mrf.mxu0
    %v2161 = vadd.f32 0.0, %v2160
    %v2162 = vpop.f32.mrf.mxu0
    %v2163 = vpop.f32.mrf.mxu0
    %2164 = vdwg.mxu0
    %2165 = vmatprep.subr.bf16.mxu0 0
    %2166 = vmatpush1.bf16.msra.mxu0 %v939
    %2167 = vmatprep.subr.bf16.mxu0 0
    %2168 = vmatpush1.bf16.msra.mxu0 %v936
    %2169 = vmatprep.subr.bf16.mxu0 0
    %2170 = vmatpush1.bf16.msra.mxu0 %v933
    %2171 = vmatprep.subr.bf16.mxu0 0
    %2172 = vmatpush1.bf16.msra.mxu0 %v930
    %2173 = vmatprep.subr.bf16.mxu0 0
    %2174 = vmatpush1.bf16.msra.mxu0 %v927
    %2175 = vmatprep.subr.bf16.mxu0 0
    %2176 = vmatpush1.bf16.msra.mxu0 %v924
    %2177 = vmatprep.subr.bf16.mxu0 0
    %2178 = vmatpush1.bf16.msra.mxu0 %v921
    %2179 = vmatprep.subr.bf16.mxu0 0
    %2180 = vmatpush1.bf16.msra.mxu0 %v918
    %2181 = vmatprep.subr.bf16.mxu0 0
    %2182 = vmatpush2.bf16.msra.mxu0 0
    %2183 = vmatprep.subr.bf16.mxu0 0
    %2184 = vmatpush2.bf16.msra.mxu0 0
    %2185 = vmatprep.subr.bf16.mxu0 0
    %2186 = vmatpush2.bf16.msra.mxu0 0
    %2187 = vmatprep.subr.bf16.mxu0 0
    %2188 = vmatpush2.bf16.msra.mxu0 0
    %2189 = vmatprep.subr.bf16.mxu0 0
    %2190 = vmatpush2.bf16.msra.mxu0 0
    %2191 = vmatprep.subr.bf16.mxu0 0
    %2192 = vmatpush2.bf16.msra.mxu0 0
    %2193 = vmatprep.subr.bf16.mxu0 0
    %2194 = vmatpush2.bf16.msra.mxu0 0
    %2195 = vmatprep.subr.bf16.mxu0 0
    %2196 = vmatpush2.bf16.msra.mxu0 0
    %2197 = vmatprep.mubr.bf16.mxu0 0
    %2198 = vmatmul.mubr.bf16.gmra.mxu0 %v2123
    %v2199 = vpop.f32.mrf.mxu0
    %v2200 = vadd.f32 0.0, %v2199
    %v2201 = vpop.f32.mrf.mxu0
    %v2202 = vpop.f32.mrf.mxu0
    %v2203 = vpop.f32.mrf.mxu0
    %2204 = vdwg.mxu0
    %v2205 = vadd.f32 %v2016, %v2159
    %v2206 = vxor.u32 %v2205, 2147483648
    %v2207 = vmul.f32 %v2206, 1.442695
    %v2208 = vpow.pop %v2207
    %v2209 = vadd.f32 %v2208, 1.0
    %v2210 = vrcp.pop %v2209
    %v2211 = vmul.f32 1.0, %v2210
    %v2212 = vadd.f32 %v2017, %v2161
    %v2213 = vxor.u32 %v2212, 2147483648
    %v2214 = vmul.f32 %v2213, 1.442695
    %v2215 = vpow.pop %v2214
    %v2216 = vadd.f32 %v2215, 1.0
    %v2217 = vrcp.pop %v2216
    %v2218 = vmul.f32 1.0, %v2217
    %v2219 = vadd.f32 %v2200, %v1063
    %v2220 = vmul.f32 %v2211, %v2219
    %v2221 = vadd.f32 %v2018, %v2220
    %v2222 = vtanh.pop %v2221
    %v2223 = vsub.f32 1.0, %v2218
    %v2224 = vmul.f32 %v2223, %v2222
    %v2225 = vmul.f32 %v2218, %v2008
    %v2226 = vadd.f32 %v2224, %v2225
    %v2227 = vsel %vm1553, %v2122, %v2007
    %v2228 = vsel %vm1546, %v2226, %v2008
    %s2229 = smul.addr %s1093, 8
    %s2230 = scalar_lea.vmem [#allocation2], %s2229
    %v2231 = vld [vmem:[%s2230] sm:$0xff]
    %v2232 = vld [vmem:[%s2230 + $0x8] sm:$0xff]
    %v2233 = vld [vmem:[%s2230 + $0x10] sm:$0xff]
    %s2234 = smul.addr %s1087, 8
    %s2235 = scalar_lea.vmem [#allocation3], %s2234
    %v2236 = vld [vmem:[%s2235] sm:$0xff]
    %v2237 = vld [vmem:[%s2235 + $0x8] sm:$0xff]
    %v2238 = vld [vmem:[%s2235 + $0x10] sm:$0xff]
    %v2239 = vpack.c.bf16 %v2227, %v2227
    %2240 = vmatprep.subr.bf16.mxu0 %v701
    %2241 = vmatpush1.bf16.msra.mxu0 %v700
    %2242 = vmatprep.subr.bf16.mxu0 %v698
    %2243 = vmatpush1.bf16.msra.mxu0 %v697
    %2244 = vmatprep.subr.bf16.mxu0 %v695
    %2245 = vmatpush1.bf16.msra.mxu0 %v694
    %2246 = vmatprep.subr.bf16.mxu0 %v692
    %2247 = vmatpush1.bf16.msra.mxu0 %v691
    %2248 = vmatprep.subr.bf16.mxu0 %v689
    %2249 = vmatpush1.bf16.msra.mxu0 %v688
    %2250 = vmatprep.subr.bf16.mxu0 %v686
    %2251 = vmatpush1.bf16.msra.mxu0 %v685
    %2252 = vmatprep.subr.bf16.mxu0 %v683
    %2253 = vmatpush1.bf16.msra.mxu0 %v682
    %2254 = vmatprep.subr.bf16.mxu0 %v680
    %2255 = vmatpush1.bf16.msra.mxu0 %v679
    %2256 = vmatprep.subr.bf16.mxu0 0
    %2257 = vmatpush2.bf16.msra.mxu0 0
    %2258 = vmatprep.subr.bf16.mxu0 0
    %2259 = vmatpush2.bf16.msra.mxu0 0
    %2260 = vmatprep.subr.bf16.mxu0 0
    %2261 = vmatpush2.bf16.msra.mxu0 0
    %2262 = vmatprep.subr.bf16.mxu0 0
    %2263 = vmatpush2.bf16.msra.mxu0 0
    %2264 = vmatprep.subr.bf16.mxu0 0
    %2265 = vmatpush2.bf16.msra.mxu0 0
    %2266 = vmatprep.subr.bf16.mxu0 0
    %2267 = vmatpush2.bf16.msra.mxu0 0
    %2268 = vmatprep.subr.bf16.mxu0 0
    %2269 = vmatpush2.bf16.msra.mxu0 0
    %2270 = vmatprep.subr.bf16.mxu0 0
    %2271 = vmatpush2.bf16.msra.mxu0 0
    %2272 = vmatprep.mubr.bf16.mxu0 0
    %2273 = vmatmul.mubr.bf16.gmra.mxu0 %v2239
    %v2274 = vpop.f32.mrf.mxu0
    %v2275 = vadd.f32 0.0, %v2274
    %v2276 = vpop.f32.mrf.mxu0
    %v2277 = vadd.f32 0.0, %v2276
    %v2278 = vpop.f32.mrf.mxu0
    %v2279 = vpop.f32.mrf.mxu0
    %2280 = vdwg.mxu0
    %2281 = vmatprep.subr.bf16.mxu0 0
    %2282 = vmatpush1.bf16.msra.mxu0 %v702
    %2283 = vmatprep.subr.bf16.mxu0 0
    %2284 = vmatpush1.bf16.msra.mxu0 %v699
    %2285 = vmatprep.subr.bf16.mxu0 0
    %2286 = vmatpush1.bf16.msra.mxu0 %v696
    %2287 = vmatprep.subr.bf16.mxu0 0
    %2288 = vmatpush1.bf16.msra.mxu0 %v693
    %2289 = vmatprep.subr.bf16.mxu0 0
    %2290 = vmatpush1.bf16.msra.mxu0 %v690
    %2291 = vmatprep.subr.bf16.mxu0 0
    %2292 = vmatpush1.bf16.msra.mxu0 %v687
    %2293 = vmatprep.subr.bf16.mxu0 0
    %2294 = vmatpush1.bf16.msra.mxu0 %v684
    %2295 = vmatprep.subr.bf16.mxu0 0
    %2296 = vmatpush1.bf16.msra.mxu0 %v681
    %2297 = vmatprep.subr.bf16.mxu0 0
    %2298 = vmatpush2.bf16.msra.mxu0 0
    %2299 = vmatprep.subr.bf16.mxu0 0
    %2300 = vmatpush2.bf16.msra.mxu0 0
    %2301 = vmatprep.subr.bf16.mxu0 0
    %2302 = vmatpush2.bf16.msra.mxu0 0
    %2303 = vmatprep.subr.bf16.mxu0 0
    %2304 = vmatpush2.bf16.msra.mxu0 0
    %2305 = vmatprep.subr.bf16.mxu0 0
    %2306 = vmatpush2.bf16.msra.mxu0 0
    %2307 = vmatprep.subr.bf16.mxu0 0
    %2308 = vmatpush2.bf16.msra.mxu0 0
    %2309 = vmatprep.subr.bf16.mxu0 0
    %2310 = vmatpush2.bf16.msra.mxu0 0
    %2311 = vmatprep.subr.bf16.mxu0 0
    %2312 = vmatpush2.bf16.msra.mxu0 0
    %2313 = vmatprep.mubr.bf16.mxu0 0
    %2314 = vmatmul.mubr.bf16.gmra.mxu0 %v2239
    %v2315 = vpop.f32.mrf.mxu0
    %v2316 = vadd.f32 0.0, %v2315
    %v2317 = vpop.f32.mrf.mxu0
    %v2318 = vpop.f32.mrf.mxu0
    %v2319 = vpop.f32.mrf.mxu0
    %2320 = vdwg.mxu0
    %v2321 = vadd.f32 %v2231, %v2275
    %v2322 = vxor.u32 %v2321, 2147483648
    %v2323 = vmul.f32 %v2322, 1.442695
    %v2324 = vpow.pop %v2323
    %v2325 = vadd.f32 %v2324, 1.0
    %v2326 = vrcp.pop %v2325
    %v2327 = vmul.f32 1.0, %v2326
    %v2328 = vadd.f32 %v2232, %v2277
    %v2329 = vxor.u32 %v2328, 2147483648
    %v2330 = vmul.f32 %v2329, 1.442695
    %v2331 = vpow.pop %v2330
    %v2332 = vadd.f32 %v2331, 1.0
    %v2333 = vrcp.pop %v2332
    %v2334 = vmul.f32 1.0, %v2333
    %v2335 = vadd.f32 %v2316, %v826
    %v2336 = vmul.f32 %v2327, %v2335
    %v2337 = vadd.f32 %v2233, %v2336
    %v2338 = vtanh.pop %v2337
    %v2339 = vsub.f32 1.0, %v2334
    %v2340 = vmul.f32 %v2339, %v2338
    %v2341 = vmul.f32 %v2334, %v2227
    %v2342 = vadd.f32 %v2340, %v2341
    %v2343 = vpack.c.bf16 %v2228, %v2228
    %2344 = vmatprep.subr.bf16.mxu0 %v938
    %2345 = vmatpush1.bf16.msra.mxu0 %v937
    %2346 = vmatprep.subr.bf16.mxu0 %v935
    %2347 = vmatpush1.bf16.msra.mxu0 %v934
    %2348 = vmatprep.subr.bf16.mxu0 %v932
    %2349 = vmatpush1.bf16.msra.mxu0 %v931
    %2350 = vmatprep.subr.bf16.mxu0 %v929
    %2351 = vmatpush1.bf16.msra.mxu0 %v928
    %2352 = vmatprep.subr.bf16.mxu0 %v926
    %2353 = vmatpush1.bf16.msra.mxu0 %v925
    %2354 = vmatprep.subr.bf16.mxu0 %v923
    %2355 = vmatpush1.bf16.msra.mxu0 %v922
    %2356 = vmatprep.subr.bf16.mxu0 %v920
    %2357 = vmatpush1.bf16.msra.mxu0 %v919
    %2358 = vmatprep.subr.bf16.mxu0 %v917
    %2359 = vmatpush1.bf16.msra.mxu0 %v916
    %2360 = vmatprep.subr.bf16.mxu0 0
    %2361 = vmatpush2.bf16.msra.mxu0 0
    %2362 = vmatprep.subr.bf16.mxu0 0
    %2363 = vmatpush2.bf16.msra.mxu0 0
    %2364 = vmatprep.subr.bf16.mxu0 0
    %2365 = vmatpush2.bf16.msra.mxu0 0
    %2366 = vmatprep.subr.bf16.mxu0 0
    %2367 = vmatpush2.bf16.msra.mxu0 0
    %2368 = vmatprep.subr.bf16.mxu0 0
    %2369 = vmatpush2.bf16.msra.mxu0 0
    %2370 = vmatprep.subr.bf16.mxu0 0
    %2371 = vmatpush2.bf16.msra.mxu0 0
    %2372 = vmatprep.subr.bf16.mxu0 0
    %2373 = vmatpush2.bf16.msra.mxu0 0
    %2374 = vmatprep.subr.bf16.mxu0 0
    %2375 = vmatpush2.bf16.msra.mxu0 0
    %2376 = vmatprep.mubr.bf16.mxu0 0
    %2377 = vmatmul.mubr.bf16.gmra.mxu0 %v2343
    %v2378 = vpop.f32.mrf.mxu0
    %v2379 = vadd.f32 0.0, %v2378
    %v2380 = vpop.f32.mrf.mxu0
    %v2381 = vadd.f32 0.0, %v2380
    %v2382 = vpop.f32.mrf.mxu0
    %v2383 = vpop.f32.mrf.mxu0
    %2384 = vdwg.mxu0
    %2385 = vmatprep.subr.bf16.mxu0 0
    %2386 = vmatpush1.bf16.msra.mxu0 %v939
    %2387 = vmatprep.subr.bf16.mxu0 0
    %2388 = vmatpush1.bf16.msra.mxu0 %v936
    %2389 = vmatprep.subr.bf16.mxu0 0
    %2390 = vmatpush1.bf16.msra.mxu0 %v933
    %2391 = vmatprep.subr.bf16.mxu0 0
    %2392 = vmatpush1.bf16.msra.mxu0 %v930
    %2393 = vmatprep.subr.bf16.mxu0 0
    %2394 = vmatpush1.bf16.msra.mxu0 %v927
    %2395 = vmatprep.subr.bf16.mxu0 0
    %2396 = vmatpush1.bf16.msra.mxu0 %v924
    %2397 = vmatprep.subr.bf16.mxu0 0
    %2398 = vmatpush1.bf16.msra.mxu0 %v921
    %2399 = vmatprep.subr.bf16.mxu0 0
    %2400 = vmatpush1.bf16.msra.mxu0 %v918
    %2401 = vmatprep.subr.bf16.mxu0 0
    %2402 = vmatpush2.bf16.msra.mxu0 0
    %2403 = vmatprep.subr.bf16.mxu0 0
    %2404 = vmatpush2.bf16.msra.mxu0 0
    %2405 = vmatprep.subr.bf16.mxu0 0
    %2406 = vmatpush2.bf16.msra.mxu0 0
    %2407 = vmatprep.subr.bf16.mxu0 0
    %2408 = vmatpush2.bf16.msra.mxu0 0
    %2409 = vmatprep.subr.bf16.mxu0 0
    %2410 = vmatpush2.bf16.msra.mxu0 0
    %2411 = vmatprep.subr.bf16.mxu0 0
    %2412 = vmatpush2.bf16.msra.mxu0 0
    %2413 = vmatprep.subr.bf16.mxu0 0
    %2414 = vmatpush2.bf16.msra.mxu0 0
    %2415 = vmatprep.subr.bf16.mxu0 0
    %2416 = vmatpush2.bf16.msra.mxu0 0
    %2417 = vmatprep.mubr.bf16.mxu0 0
    %2418 = vmatmul.mubr.bf16.gmra.mxu0 %v2343
    %v2419 = vpop.f32.mrf.mxu0
    %v2420 = vadd.f32 0.0, %v2419
    %v2421 = vpop.f32.mrf.mxu0
    %v2422 = vpop.f32.mrf.mxu0
    %v2423 = vpop.f32.mrf.mxu0
    %2424 = vdwg.mxu0
    %v2425 = vadd.f32 %v2236, %v2379
    %v2426 = vxor.u32 %v2425, 2147483648
    %v2427 = vmul.f32 %v2426, 1.442695
    %v2428 = vpow.pop %v2427
    %v2429 = vadd.f32 %v2428, 1.0
    %v2430 = vrcp.pop %v2429
    %v2431 = vmul.f32 1.0, %v2430
    %v2432 = vadd.f32 %v2237, %v2381
    %v2433 = vxor.u32 %v2432, 2147483648
    %v2434 = vmul.f32 %v2433, 1.442695
    %v2435 = vpow.pop %v2434
    %v2436 = vadd.f32 %v2435, 1.0
    %v2437 = vrcp.pop %v2436
    %v2438 = vmul.f32 1.0, %v2437
    %v2439 = vadd.f32 %v2420, %v1063
    %v2440 = vmul.f32 %v2431, %v2439
    %v2441 = vadd.f32 %v2238, %v2440
    %v2442 = vtanh.pop %v2441
    %v2443 = vsub.f32 1.0, %v2438
    %v2444 = vmul.f32 %v2443, %v2442
    %v2445 = vmul.f32 %v2438, %v2228
    %v2446 = vadd.f32 %v2444, %v2445
    %v2447 = vsel %vm1319, %v2342, %v2227
    %v2448 = vsel %vm1312, %v2446, %v2228
    %s2449 = smul.addr %s593, 8
    %s2450 = scalar_lea.vmem [#allocation2], %s2449
    %v2451 = vld [vmem:[%s2450] sm:$0xff]
    %v2452 = vld [vmem:[%s2450 + $0x8] sm:$0xff]
    %v2453 = vld [vmem:[%s2450 + $0x10] sm:$0xff]
    %s2454 = smul.addr %s587, 8
    %s2455 = scalar_lea.vmem [#allocation3], %s2454
    %v2456 = vld [vmem:[%s2455] sm:$0xff]
    %v2457 = vld [vmem:[%s2455 + $0x8] sm:$0xff]
    %v2458 = vld [vmem:[%s2455 + $0x10] sm:$0xff]
    %v2459 = vpack.c.bf16 %v2447, %v2447
    %2460 = vmatprep.subr.bf16.mxu0 %v701
    %2461 = vmatpush1.bf16.msra.mxu0 %v700
    %2462 = vmatprep.subr.bf16.mxu0 %v698
    %2463 = vmatpush1.bf16.msra.mxu0 %v697
    %2464 = vmatprep.subr.bf16.mxu0 %v695
    %2465 = vmatpush1.bf16.msra.mxu0 %v694
    %2466 = vmatprep.subr.bf16.mxu0 %v692
    %2467 = vmatpush1.bf16.msra.mxu0 %v691
    %2468 = vmatprep.subr.bf16.mxu0 %v689
    %2469 = vmatpush1.bf16.msra.mxu0 %v688
    %2470 = vmatprep.subr.bf16.mxu0 %v686
    %2471 = vmatpush1.bf16.msra.mxu0 %v685
    %2472 = vmatprep.subr.bf16.mxu0 %v683
    %2473 = vmatpush1.bf16.msra.mxu0 %v682
    %2474 = vmatprep.subr.bf16.mxu0 %v680
    %2475 = vmatpush1.bf16.msra.mxu0 %v679
    %2476 = vmatprep.subr.bf16.mxu0 0
    %2477 = vmatpush2.bf16.msra.mxu0 0
    %2478 = vmatprep.subr.bf16.mxu0 0
    %2479 = vmatpush2.bf16.msra.mxu0 0
    %2480 = vmatprep.subr.bf16.mxu0 0
    %2481 = vmatpush2.bf16.msra.mxu0 0
    %2482 = vmatprep.subr.bf16.mxu0 0
    %2483 = vmatpush2.bf16.msra.mxu0 0
    %2484 = vmatprep.subr.bf16.mxu0 0
    %2485 = vmatpush2.bf16.msra.mxu0 0
    %2486 = vmatprep.subr.bf16.mxu0 0
    %2487 = vmatpush2.bf16.msra.mxu0 0
    %2488 = vmatprep.subr.bf16.mxu0 0
    %2489 = vmatpush2.bf16.msra.mxu0 0
    %2490 = vmatprep.subr.bf16.mxu0 0
    %2491 = vmatpush2.bf16.msra.mxu0 0
    %2492 = vmatprep.mubr.bf16.mxu0 0
    %2493 = vmatmul.mubr.bf16.gmra.mxu0 %v2459
    %v2494 = vpop.f32.mrf.mxu0
    %v2495 = vadd.f32 0.0, %v2494
    %v2496 = vpop.f32.mrf.mxu0
    %v2497 = vadd.f32 0.0, %v2496
    %v2498 = vpop.f32.mrf.mxu0
    %v2499 = vpop.f32.mrf.mxu0
    %2500 = vdwg.mxu0
    %2501 = vmatprep.subr.bf16.mxu0 0
    %2502 = vmatpush1.bf16.msra.mxu0 %v702
    %2503 = vmatprep.subr.bf16.mxu0 0
    %2504 = vmatpush1.bf16.msra.mxu0 %v699
    %2505 = vmatprep.subr.bf16.mxu0 0
    %2506 = vmatpush1.bf16.msra.mxu0 %v696
    %2507 = vmatprep.subr.bf16.mxu0 0
    %2508 = vmatpush1.bf16.msra.mxu0 %v693
    %2509 = vmatprep.subr.bf16.mxu0 0
    %2510 = vmatpush1.bf16.msra.mxu0 %v690
    %2511 = vmatprep.subr.bf16.mxu0 0
    %2512 = vmatpush1.bf16.msra.mxu0 %v687
    %2513 = vmatprep.subr.bf16.mxu0 0
    %2514 = vmatpush1.bf16.msra.mxu0 %v684
    %2515 = vmatprep.subr.bf16.mxu0 0
    %2516 = vmatpush1.bf16.msra.mxu0 %v681
    %2517 = vmatprep.subr.bf16.mxu0 0
    %2518 = vmatpush2.bf16.msra.mxu0 0
    %2519 = vmatprep.subr.bf16.mxu0 0
    %2520 = vmatpush2.bf16.msra.mxu0 0
    %2521 = vmatprep.subr.bf16.mxu0 0
    %2522 = vmatpush2.bf16.msra.mxu0 0
    %2523 = vmatprep.subr.bf16.mxu0 0
    %2524 = vmatpush2.bf16.msra.mxu0 0
    %2525 = vmatprep.subr.bf16.mxu0 0
    %2526 = vmatpush2.bf16.msra.mxu0 0
    %2527 = vmatprep.subr.bf16.mxu0 0
    %2528 = vmatpush2.bf16.msra.mxu0 0
    %2529 = vmatprep.subr.bf16.mxu0 0
    %2530 = vmatpush2.bf16.msra.mxu0 0
    %2531 = vmatprep.subr.bf16.mxu0 0
    %2532 = vmatpush2.bf16.msra.mxu0 0
    %2533 = vmatprep.mubr.bf16.mxu0 0
    %2534 = vmatmul.mubr.bf16.gmra.mxu0 %v2459
    %v2535 = vpop.f32.mrf.mxu0
    %v2536 = vadd.f32 0.0, %v2535
    %v2537 = vpop.f32.mrf.mxu0
    %v2538 = vpop.f32.mrf.mxu0
    %v2539 = vpop.f32.mrf.mxu0
    %2540 = vdwg.mxu0
    %v2541 = vadd.f32 %v2451, %v2495
    %v2542 = vxor.u32 %v2541, 2147483648
    %v2543 = vmul.f32 %v2542, 1.442695
    %v2544 = vpow.pop %v2543
    %v2545 = vadd.f32 %v2544, 1.0
    %v2546 = vrcp.pop %v2545
    %v2547 = vmul.f32 1.0, %v2546
    %v2548 = vadd.f32 %v2452, %v2497
    %v2549 = vxor.u32 %v2548, 2147483648
    %v2550 = vmul.f32 %v2549, 1.442695
    %v2551 = vpow.pop %v2550
    %v2552 = vadd.f32 %v2551, 1.0
    %v2553 = vrcp.pop %v2552
    %v2554 = vmul.f32 1.0, %v2553
    %v2555 = vadd.f32 %v2536, %v826
    %v2556 = vmul.f32 %v2547, %v2555
    %v2557 = vadd.f32 %v2453, %v2556
    %v2558 = vtanh.pop %v2557
    %v2559 = vsub.f32 1.0, %v2554
    %v2560 = vmul.f32 %v2559, %v2558
    %v2561 = vmul.f32 %v2554, %v2447
    %v2562 = vadd.f32 %v2560, %v2561
    %v2563 = vpack.c.bf16 %v2448, %v2448
    %2564 = vmatprep.subr.bf16.mxu0 %v938
    %2565 = vmatpush1.bf16.msra.mxu0 %v937
    %2566 = vmatprep.subr.bf16.mxu0 %v935
    %2567 = vmatpush1.bf16.msra.mxu0 %v934
    %2568 = vmatprep.subr.bf16.mxu0 %v932
    %2569 = vmatpush1.bf16.msra.mxu0 %v931
    %2570 = vmatprep.subr.bf16.mxu0 %v929
    %2571 = vmatpush1.bf16.msra.mxu0 %v928
    %2572 = vmatprep.subr.bf16.mxu0 %v926
    %2573 = vmatpush1.bf16.msra.mxu0 %v925
    %2574 = vmatprep.subr.bf16.mxu0 %v923
    %2575 = vmatpush1.bf16.msra.mxu0 %v922
    %2576 = vmatprep.subr.bf16.mxu0 %v920
    %2577 = vmatpush1.bf16.msra.mxu0 %v919
    %2578 = vmatprep.subr.bf16.mxu0 %v917
    %2579 = vmatpush1.bf16.msra.mxu0 %v916
    %2580 = vmatprep.subr.bf16.mxu0 0
    %2581 = vmatpush2.bf16.msra.mxu0 0
    %2582 = vmatprep.subr.bf16.mxu0 0
    %2583 = vmatpush2.bf16.msra.mxu0 0
    %2584 = vmatprep.subr.bf16.mxu0 0
    %2585 = vmatpush2.bf16.msra.mxu0 0
    %2586 = vmatprep.subr.bf16.mxu0 0
    %2587 = vmatpush2.bf16.msra.mxu0 0
    %2588 = vmatprep.subr.bf16.mxu0 0
    %2589 = vmatpush2.bf16.msra.mxu0 0
    %2590 = vmatprep.subr.bf16.mxu0 0
    %2591 = vmatpush2.bf16.msra.mxu0 0
    %2592 = vmatprep.subr.bf16.mxu0 0
    %2593 = vmatpush2.bf16.msra.mxu0 0
    %2594 = vmatprep.subr.bf16.mxu0 0
    %2595 = vmatpush2.bf16.msra.mxu0 0
    %2596 = vmatprep.mubr.bf16.mxu0 0
    %2597 = vmatmul.mubr.bf16.gmra.mxu0 %v2563
    %v2598 = vpop.f32.mrf.mxu0
    %v2599 = vadd.f32 0.0, %v2598
    %v2600 = vpop.f32.mrf.mxu0
    %v2601 = vadd.f32 0.0, %v2600
    %v2602 = vpop.f32.mrf.mxu0
    %v2603 = vpop.f32.mrf.mxu0
    %2604 = vdwg.mxu0
    %2605 = vmatprep.subr.bf16.mxu0 0
    %2606 = vmatpush1.bf16.msra.mxu0 %v939
    %2607 = vmatprep.subr.bf16.mxu0 0
    %2608 = vmatpush1.bf16.msra.mxu0 %v936
    %2609 = vmatprep.subr.bf16.mxu0 0
    %2610 = vmatpush1.bf16.msra.mxu0 %v933
    %2611 = vmatprep.subr.bf16.mxu0 0
    %2612 = vmatpush1.bf16.msra.mxu0 %v930
    %2613 = vmatprep.subr.bf16.mxu0 0
    %2614 = vmatpush1.bf16.msra.mxu0 %v927
    %2615 = vmatprep.subr.bf16.mxu0 0
    %2616 = vmatpush1.bf16.msra.mxu0 %v924
    %2617 = vmatprep.subr.bf16.mxu0 0
    %2618 = vmatpush1.bf16.msra.mxu0 %v921
    %2619 = vmatprep.subr.bf16.mxu0 0
    %2620 = vmatpush1.bf16.msra.mxu0 %v918
    %2621 = vmatprep.subr.bf16.mxu0 0
    %2622 = vmatpush2.bf16.msra.mxu0 0
    %2623 = vmatprep.subr.bf16.mxu0 0
    %2624 = vmatpush2.bf16.msra.mxu0 0
    %2625 = vmatprep.subr.bf16.mxu0 0
    %2626 = vmatpush2.bf16.msra.mxu0 0
    %2627 = vmatprep.subr.bf16.mxu0 0
    %2628 = vmatpush2.bf16.msra.mxu0 0
    %2629 = vmatprep.subr.bf16.mxu0 0
    %2630 = vmatpush2.bf16.msra.mxu0 0
    %2631 = vmatprep.subr.bf16.mxu0 0
    %2632 = vmatpush2.bf16.msra.mxu0 0
    %2633 = vmatprep.subr.bf16.mxu0 0
    %2634 = vmatpush2.bf16.msra.mxu0 0
    %2635 = vmatprep.subr.bf16.mxu0 0
    %2636 = vmatpush2.bf16.msra.mxu0 0
    %2637 = vmatprep.mubr.bf16.mxu0 0
    %2638 = vmatmul.mubr.bf16.gmra.mxu0 %v2563
    %v2639 = vpop.f32.mrf.mxu0
    %v2640 = vadd.f32 0.0, %v2639
    %v2641 = vpop.f32.mrf.mxu0
    %v2642 = vpop.f32.mrf.mxu0
    %v2643 = vpop.f32.mrf.mxu0
    %2644 = vdwg.mxu0
    %v2645 = vadd.f32 %v2456, %v2599
    %v2646 = vxor.u32 %v2645, 2147483648
    %v2647 = vmul.f32 %v2646, 1.442695
    %v2648 = vpow.pop %v2647
    %v2649 = vadd.f32 %v2648, 1.0
    %v2650 = vrcp.pop %v2649
    %v2651 = vmul.f32 1.0, %v2650
    %v2652 = vadd.f32 %v2457, %v2601
    %v2653 = vxor.u32 %v2652, 2147483648
    %v2654 = vmul.f32 %v2653, 1.442695
    %v2655 = vpow.pop %v2654
    %v2656 = vadd.f32 %v2655, 1.0
    %v2657 = vrcp.pop %v2656
    %v2658 = vmul.f32 1.0, %v2657
    %v2659 = vadd.f32 %v2640, %v1063
    %v2660 = vmul.f32 %v2651, %v2659
    %v2661 = vadd.f32 %v2458, %v2660
    %v2662 = vtanh.pop %v2661
    %v2663 = vsub.f32 1.0, %v2658
    %v2664 = vmul.f32 %v2663, %v2662
    %v2665 = vmul.f32 %v2658, %v2448
    %v2666 = vadd.f32 %v2664, %v2665
    %v2667 = vsel %vm1085, %v2562, %v2447
    %v2668 = vsel %vm1078, %v2666, %v2448
    %v2669 = vld [vmem:[%s1] sm:$0xf]
    %v2670 = vld [vmem:[#allocation13] sm:$0xf]
    %v2671 = vld [vmem:[#allocation13 + $0x4] sm:$0xf]
    %v2672 = vld [vmem:[#allocation14] sm:$0x1]
    %v2674 = vlaneseq
    %v2675 = vshrl.u32 %v2674, 7
    %v2676 = vsub.s32 0, %v2675
    %v2677 = vrot.slane %v2672, %v2676
    %v2681 = vunpack.c.l.b16 %v2670
    %v2682 = vunpack.c.l.b16 %v2671
    %v2683 = vpack.c.b16 %v2682, %v2681
    %v2686 = vsel %vm241, %v2669, 0
    %2688 = vmatprep.subr.bf16.mxu0 0
    %2689 = vmatpush1.bf16.msra.mxu0 0
    %2690 = vmatprep.subr.bf16.mxu0 0
    %2691 = vmatpush1.bf16.msra.mxu0 0
    %2692 = vmatprep.subr.bf16.mxu0 0
    %2693 = vmatpush1.bf16.msra.mxu0 0
    %2694 = vmatprep.subr.bf16.mxu0 0
    %2695 = vmatpush1.bf16.msra.mxu0 0
    %2696 = vmatprep.subr.bf16.mxu0 0
    %2697 = vmatpush1.bf16.msra.mxu0 0
    %2698 = vmatprep.subr.bf16.mxu0 0
    %2699 = vmatpush1.bf16.msra.mxu0 0
    %2700 = vmatprep.subr.bf16.mxu0 0
    %2701 = vmatpush1.bf16.msra.mxu0 0
    %2702 = vmatprep.subr.bf16.mxu0 0
    %2703 = vmatpush1.bf16.msra.mxu0 %v2683
    %2704 = vmatprep.subr.bf16.mxu0 0
    %2705 = vmatpush2.bf16.msra.mxu0 0
    %2706 = vmatprep.subr.bf16.mxu0 0
    %2707 = vmatpush2.bf16.msra.mxu0 0
    %2708 = vmatprep.subr.bf16.mxu0 0
    %2709 = vmatpush2.bf16.msra.mxu0 0
    %2710 = vmatprep.subr.bf16.mxu0 0
    %2711 = vmatpush2.bf16.msra.mxu0 0
    %2712 = vmatprep.subr.bf16.mxu0 0
    %2713 = vmatpush2.bf16.msra.mxu0 0
    %2714 = vmatprep.subr.bf16.mxu0 0
    %2715 = vmatpush2.bf16.msra.mxu0 0
    %2716 = vmatprep.subr.bf16.mxu0 0
    %2717 = vmatpush2.bf16.msra.mxu0 0
    %2718 = vmatprep.subr.bf16.mxu0 0
    %2719 = vmatpush2.bf16.msra.mxu0 0
    %2720 = vmatprep.mubr.bf16.mxu0 0
    %2721 = vmatmul.mubr.bf16.gmra.mxu0 %v2686
    %v2722 = vpop.f32.mrf.mxu0
    %v2723 = vadd.f32 %v2677, %v2722
    %v2724 = vpop.f32.mrf.mxu0
    %v2725 = vpop.f32.mrf.mxu0
    %v2726 = vpop.f32.mrf.mxu0
    %2727 = vdwg.mxu0
    %v2728 = vmax.f32 %v2723, 0.0
    %v2729 = vpack.c.bf16 %v2728, %v2728
    %v2730 = vld [vmem:[%s11] sm:$0xf]
    %v2731 = vld [vmem:[%s11 + $0x4] sm:$0xf]
    %v2732 = vld [vmem:[%s11 + $0x8] sm:$0xf]
    %v2733 = vld [vmem:[%s11 + $0xc] sm:$0xf]
    %v2734 = vld [vmem:[%s11 + $0x10] sm:$0xf]
    %v2735 = vld [vmem:[%s11 + $0x14] sm:$0xf]
    %v2736 = vld [vmem:[%s11 + $0x18] sm:$0xf]
    %v2737 = vld [vmem:[%s11 + $0x1c] sm:$0xf]
    %v2738 = vld [vmem:[%s11 + $0x20] sm:$0xf]
    %v2739 = vld [vmem:[%s11 + $0x24] sm:$0xf]
    %v2740 = vld [vmem:[%s11 + $0x28] sm:$0xf]
    %v2741 = vld [vmem:[%s11 + $0x2c] sm:$0xf]
    %v2742 = vld [vmem:[%s11 + $0x30] sm:$0xf]
    %v2743 = vld [vmem:[%s11 + $0x34] sm:$0xf]
    %v2744 = vld [vmem:[%s11 + $0x38] sm:$0xf]
    %v2745 = vld [vmem:[%s11 + $0x3c] sm:$0xf]
    %v2746 = vld [vmem:[#allocation16] sm:$0x1]
    %v2748 = vlaneseq
    %v2749 = vshrl.u32 %v2748, 7
    %v2750 = vsub.s32 0, %v2749
    %v2751 = vrot.slane %v2746, %v2750
    %v2769 = vunpack.c.l.b16 %v2730
    %v2770 = vunpack.c.l.b16 %v2731
    %v2771 = vunpack.c.l.b16 %v2732
    %v2772 = vunpack.c.l.b16 %v2733
    %v2773 = vunpack.c.l.b16 %v2734
    %v2774 = vunpack.c.l.b16 %v2735
    %v2775 = vunpack.c.l.b16 %v2736
    %v2776 = vunpack.c.l.b16 %v2737
    %v2777 = vunpack.c.l.b16 %v2738
    %v2778 = vunpack.c.l.b16 %v2739
    %v2779 = vunpack.c.l.b16 %v2740
    %v2780 = vunpack.c.l.b16 %v2741
    %v2781 = vunpack.c.l.b16 %v2742
    %v2782 = vunpack.c.l.b16 %v2743
    %v2783 = vunpack.c.l.b16 %v2744
    %v2784 = vunpack.c.l.b16 %v2745
    %v2785 = vpack.c.b16 %v2770, %v2769
    %v2786 = vpack.c.b16 %v2772, %v2771
    %v2787 = vpack.c.b16 %v2774, %v2773
    %v2788 = vpack.c.b16 %v2776, %v2775
    %v2789 = vpack.c.b16 %v2778, %v2777
    %v2790 = vpack.c.b16 %v2780, %v2779
    %v2791 = vpack.c.b16 %v2782, %v2781
    %v2792 = vpack.c.b16 %v2784, %v2783
    %2801 = vmatprep.subr.bf16.mxu0 0
    %2802 = vmatpush1.bf16.msra.mxu0 %v2792
    %2803 = vmatprep.subr.bf16.mxu0 0
    %2804 = vmatpush1.bf16.msra.mxu0 %v2791
    %2805 = vmatprep.subr.bf16.mxu0 0
    %2806 = vmatpush1.bf16.msra.mxu0 %v2790
    %2807 = vmatprep.subr.bf16.mxu0 0
    %2808 = vmatpush1.bf16.msra.mxu0 %v2789
    %2809 = vmatprep.subr.bf16.mxu0 0
    %2810 = vmatpush1.bf16.msra.mxu0 %v2788
    %2811 = vmatprep.subr.bf16.mxu0 0
    %2812 = vmatpush1.bf16.msra.mxu0 %v2787
    %2813 = vmatprep.subr.bf16.mxu0 0
    %2814 = vmatpush1.bf16.msra.mxu0 %v2786
    %2815 = vmatprep.subr.bf16.mxu0 0
    %2816 = vmatpush1.bf16.msra.mxu0 %v2785
    %2817 = vmatprep.subr.bf16.mxu0 0
    %2818 = vmatpush2.bf16.msra.mxu0 0
    %2819 = vmatprep.subr.bf16.mxu0 0
    %2820 = vmatpush2.bf16.msra.mxu0 0
    %2821 = vmatprep.subr.bf16.mxu0 0
    %2822 = vmatpush2.bf16.msra.mxu0 0
    %2823 = vmatprep.subr.bf16.mxu0 0
    %2824 = vmatpush2.bf16.msra.mxu0 0
    %2825 = vmatprep.subr.bf16.mxu0 0
    %2826 = vmatpush2.bf16.msra.mxu0 0
    %2827 = vmatprep.subr.bf16.mxu0 0
    %2828 = vmatpush2.bf16.msra.mxu0 0
    %2829 = vmatprep.subr.bf16.mxu0 0
    %2830 = vmatpush2.bf16.msra.mxu0 0
    %2831 = vmatprep.subr.bf16.mxu0 0
    %2832 = vmatpush2.bf16.msra.mxu0 0
    %2833 = vmatprep.mubr.bf16.mxu0 0
    %2834 = vmatmul.mubr.bf16.gmra.mxu0 %v2729
    %v2835 = vpop.f32.mrf.mxu0
    %v2836 = vadd.f32 %v2751, %v2835
    %v2837 = vpop.f32.mrf.mxu0
    %v2838 = vpop.f32.mrf.mxu0
    %v2839 = vpop.f32.mrf.mxu0
    %2840 = vdwg.mxu0
    %2841 = vst [vmem:[#allocation4] sm:$0xff] %v2667
    %2842 = vst [vmem:[#allocation4 + $0x8] sm:$0xff] %v2668
    %2843 = vst [vmem:[#allocation4 + $0x10] sm:$0xff] %v2836
    %v2844 = vld [vmem:[#allocation4] sm:$0xff]
    %v2845 = vld [vmem:[#allocation4 + $0x8] sm:$0xff]
    %v2846 = vld [vmem:[#allocation4 + $0x10] sm:$0xff]
    %v2847 = vadd.f32 %v2844, %v2845
    %v2848 = vadd.f32 %v2847, %v2846
    %2849 = vadd.xlane.f32.xlu0 %v2848
    %v2850 = vpop.xlane.xlu0 %2849
    %v2851 = vrcp.pop 384.0
    %v2852 = vmul.f32 %v2850, %v2851
    %v2853 = vsub.f32 %v2844, %v2852
    %v2854 = vsub.f32 %v2845, %v2852
    %v2855 = vsub.f32 %v2846, %v2852
    %v2856 = vmul.f32 %v2853, %v2853
    %v2857 = vmul.f32 %v2854, %v2854
    %v2858 = vmul.f32 %v2855, %v2855
    %v2859 = vadd.f32 %v2856, %v2857
    %v2860 = vadd.f32 %v2859, %v2858
    %2861 = vadd.xlane.f32.xlu0 %v2860
    %v2862 = vpop.xlane.xlu0 %2861
    %v2863 = vmul.f32 %v2862, %v2851
    %v2864 = vadd.f32 %v2863, 1e-05
    %v2865 = vrsqrt.pop %v2864
    %v2866 = vmul.f32 %v2853, %v2865
    %v2867 = vmul.f32 %v2854, %v2865
    %v2868 = vmul.f32 %v2855, %v2865
    %v2869 = vld [vmem:[%s13] sm:$0x7]
    %v2871 = vlaneseq
    %v2872 = vshrl.u32 %v2871, 7
    %v2873 = vsub.s32 0, %v2872
    %v2874 = vrot.slane %v2869, %v2873
    %v2875 = vlaneseq
    %v2876 = vshrl.u32 %v2875, 7
    %v2877 = vsub.s32 1, %v2876
    %v2878 = vrot.slane %v2869, %v2877
    %v2879 = vlaneseq
    %v2880 = vshrl.u32 %v2879, 7
    %v2881 = vsub.s32 2, %v2880
    %v2882 = vrot.slane %v2869, %v2881
    %v2886 = vmul.f32 %v2866, %v2874
    %v2887 = vmul.f32 %v2867, %v2878
    %v2888 = vmul.f32 %v2868, %v2882
    %v2889 = vld [vmem:[%s14] sm:$0x7]
    %v2891 = vlaneseq
    %v2892 = vshrl.u32 %v2891, 7
    %v2893 = vsub.s32 0, %v2892
    %v2894 = vrot.slane %v2889, %v2893
    %v2895 = vlaneseq
    %v2896 = vshrl.u32 %v2895, 7
    %v2897 = vsub.s32 1, %v2896
    %v2898 = vrot.slane %v2889, %v2897
    %v2899 = vlaneseq
    %v2900 = vshrl.u32 %v2899, 7
    %v2901 = vsub.s32 2, %v2900
    %v2902 = vrot.slane %v2889, %v2901
    %v2906 = vadd.f32 %v2886, %v2894
    %v2907 = vadd.f32 %v2887, %v2898
    %v2908 = vadd.f32 %v2888, %v2902
    %v2909 = vld [vmem:[%s15] sm:$0xff]
    %v2910 = vld [vmem:[%s15 + $0x8] sm:$0xff]
    %v2911 = vld [vmem:[%s15 + $0x10] sm:$0xff]
    %v2912 = vld [vmem:[%s15 + $0x18] sm:$0xff]
    %v2913 = vld [vmem:[%s15 + $0x20] sm:$0xff]
    %v2914 = vld [vmem:[%s15 + $0x28] sm:$0xff]
    %v2915 = vld [vmem:[%s15 + $0x30] sm:$0xff]
    %v2916 = vld [vmem:[%s15 + $0x38] sm:$0xff]
    %v2917 = vld [vmem:[%s15 + $0x40] sm:$0xff]
    %v2918 = vld [vmem:[%s15 + $0x48] sm:$0xff]
    %v2919 = vld [vmem:[%s15 + $0x50] sm:$0xff]
    %v2920 = vld [vmem:[%s15 + $0x58] sm:$0xff]
    %v2921 = vld [vmem:[%s15 + $0x60] sm:$0xff]
    %v2922 = vld [vmem:[%s15 + $0x68] sm:$0xff]
    %v2923 = vld [vmem:[%s15 + $0x70] sm:$0xff]
    %v2924 = vld [vmem:[%s15 + $0x78] sm:$0xff]
    %v2925 = vld [vmem:[%s15 + $0x80] sm:$0xff]
    %v2926 = vld [vmem:[%s15 + $0x88] sm:$0xff]
    %v2927 = vld [vmem:[%s15 + $0x90] sm:$0xff]
    %v2928 = vld [vmem:[%s15 + $0x98] sm:$0xff]
    %v2929 = vld [vmem:[%s15 + $0xa0] sm:$0xff]
    %v2930 = vld [vmem:[%s15 + $0xa8] sm:$0xff]
    %v2931 = vld [vmem:[%s15 + $0xb0] sm:$0xff]
    %v2932 = vld [vmem:[%s15 + $0xb8] sm:$0xff]
    %v2933 = vld [vmem:[%s15 + $0xc0] sm:$0xff]
    %v2934 = vld [vmem:[%s15 + $0xc8] sm:$0xff]
    %v2935 = vld [vmem:[%s15 + $0xd0] sm:$0xff]
    %v2936 = vld [vmem:[%s15 + $0xd8] sm:$0xff]
    %v2937 = vld [vmem:[%s15 + $0xe0] sm:$0xff]
    %v2938 = vld [vmem:[%s15 + $0xe8] sm:$0xff]
    %v2939 = vld [vmem:[%s15 + $0xf0] sm:$0xff]
    %v2940 = vld [vmem:[%s15 + $0xf8] sm:$0xff]
    %v2941 = vld [vmem:[%s15 + $0x100] sm:$0xff]
    %v2942 = vld [vmem:[%s15 + $0x108] sm:$0xff]
    %v2943 = vld [vmem:[%s15 + $0x110] sm:$0xff]
    %v2944 = vld [vmem:[%s15 + $0x118] sm:$0xff]
    %v2945 = vld [vmem:[%s15 + $0x120] sm:$0xff]
    %v2946 = vld [vmem:[%s15 + $0x128] sm:$0xff]
    %v2947 = vld [vmem:[%s15 + $0x130] sm:$0xff]
    %v2948 = vld [vmem:[%s15 + $0x138] sm:$0xff]
    %v2949 = vld [vmem:[%s15 + $0x140] sm:$0xff]
    %v2950 = vld [vmem:[%s15 + $0x148] sm:$0xff]
    %v2951 = vld [vmem:[%s15 + $0x150] sm:$0xff]
    %v2952 = vld [vmem:[%s15 + $0x158] sm:$0xff]
    %v2953 = vld [vmem:[%s15 + $0x160] sm:$0xff]
    %v2954 = vld [vmem:[%s15 + $0x168] sm:$0xff]
    %v2955 = vld [vmem:[%s15 + $0x170] sm:$0xff]
    %v2956 = vld [vmem:[%s15 + $0x178] sm:$0xff]
    %v2957 = vld [vmem:[#allocation5] sm:$0x1]
    %v2959 = vlaneseq
    %v2960 = vshrl.u32 %v2959, 7
    %v2961 = vsub.s32 0, %v2960
    %v2962 = vrot.slane %v2957, %v2961
    %2964 = vmatprep.subr.mxu0 0.0
    %2965 = vmatpush1.msra.mxu0 %v2924
    %2966 = vmatprep.subr.mxu0 0.0
    %2967 = vmatpush1.msra.mxu0 %v2923
    %2968 = vmatprep.subr.mxu0 0.0
    %2969 = vmatpush1.msra.mxu0 %v2922
    %2970 = vmatprep.subr.mxu0 0.0
    %2971 = vmatpush1.msra.mxu0 %v2921
    %2972 = vmatprep.subr.mxu0 0.0
    %2973 = vmatpush1.msra.mxu0 %v2920
    %2974 = vmatprep.subr.mxu0 0.0
    %2975 = vmatpush1.msra.mxu0 %v2919
    %2976 = vmatprep.subr.mxu0 0.0
    %2977 = vmatpush1.msra.mxu0 %v2918
    %2978 = vmatprep.subr.mxu0 0.0
    %2979 = vmatpush1.msra.mxu0 %v2917
    %2980 = vmatprep.subr.mxu0 0.0
    %2981 = vmatpush1.msra.mxu0 %v2916
    %2982 = vmatprep.subr.mxu0 0.0
    %2983 = vmatpush1.msra.mxu0 %v2915
    %2984 = vmatprep.subr.mxu0 0.0
    %2985 = vmatpush1.msra.mxu0 %v2914
    %2986 = vmatprep.subr.mxu0 0.0
    %2987 = vmatpush1.msra.mxu0 %v2913
    %2988 = vmatprep.subr.mxu0 0.0
    %2989 = vmatpush1.msra.mxu0 %v2912
    %2990 = vmatprep.subr.mxu0 0.0
    %2991 = vmatpush1.msra.mxu0 %v2911
    %2992 = vmatprep.subr.mxu0 0.0
    %2993 = vmatpush1.msra.mxu0 %v2910
    %2994 = vmatprep.subr.mxu0 0.0
    %2995 = vmatpush1.msra.mxu0 %v2909
    %2996 = vmatprep.subr.mxu0 0.0
    %2997 = vmatpush2.msra.mxu0 %v2940
    %2998 = vmatprep.subr.mxu0 0.0
    %2999 = vmatpush2.msra.mxu0 %v2939
    %3000 = vmatprep.subr.mxu0 0.0
    %3001 = vmatpush2.msra.mxu0 %v2938
    %3002 = vmatprep.subr.mxu0 0.0
    %3003 = vmatpush2.msra.mxu0 %v2937
    %3004 = vmatprep.subr.mxu0 0.0
    %3005 = vmatpush2.msra.mxu0 %v2936
    %3006 = vmatprep.subr.mxu0 0.0
    %3007 = vmatpush2.msra.mxu0 %v2935
    %3008 = vmatprep.subr.mxu0 0.0
    %3009 = vmatpush2.msra.mxu0 %v2934
    %3010 = vmatprep.subr.mxu0 0.0
    %3011 = vmatpush2.msra.mxu0 %v2933
    %3012 = vmatprep.subr.mxu0 0.0
    %3013 = vmatpush2.msra.mxu0 %v2932
    %3014 = vmatprep.subr.mxu0 0.0
    %3015 = vmatpush2.msra.mxu0 %v2931
    %3016 = vmatprep.subr.mxu0 0.0
    %3017 = vmatpush2.msra.mxu0 %v2930
    %3018 = vmatprep.subr.mxu0 0.0
    %3019 = vmatpush2.msra.mxu0 %v2929
    %3020 = vmatprep.subr.mxu0 0.0
    %3021 = vmatpush2.msra.mxu0 %v2928
    %3022 = vmatprep.subr.mxu0 0.0
    %3023 = vmatpush2.msra.mxu0 %v2927
    %3024 = vmatprep.subr.mxu0 0.0
    %3025 = vmatpush2.msra.mxu0 %v2926
    %3026 = vmatprep.subr.mxu0 0.0
    %3027 = vmatpush2.msra.mxu0 %v2925
    %3028 = vmatprep.mubr.f32.mxu0 %v2907
    %3029 = vmatmul.mubr.f32.gmra.mxu0 %v2906
    %v3030 = vpop.f32.mrf.mxu0
    %v3031 = vadd.f32 %v2962, %v3030
    %v3032 = vpop.f32.mrf.mxu0
    %3033 = vdwg.mxu0
    %3034 = vmatprep.subr.mxu0 0.0
    %3035 = vmatpush1.msra.mxu0 %v2956
    %3036 = vmatprep.subr.mxu0 0.0
    %3037 = vmatpush1.msra.mxu0 %v2955
    %3038 = vmatprep.subr.mxu0 0.0
    %3039 = vmatpush1.msra.mxu0 %v2954
    %3040 = vmatprep.subr.mxu0 0.0
    %3041 = vmatpush1.msra.mxu0 %v2953
    %3042 = vmatprep.subr.mxu0 0.0
    %3043 = vmatpush1.msra.mxu0 %v2952
    %3044 = vmatprep.subr.mxu0 0.0
    %3045 = vmatpush1.msra.mxu0 %v2951
    %3046 = vmatprep.subr.mxu0 0.0
    %3047 = vmatpush1.msra.mxu0 %v2950
    %3048 = vmatprep.subr.mxu0 0.0
    %3049 = vmatpush1.msra.mxu0 %v2949
    %3050 = vmatprep.subr.mxu0 0.0
    %3051 = vmatpush1.msra.mxu0 %v2948
    %3052 = vmatprep.subr.mxu0 0.0
    %3053 = vmatpush1.msra.mxu0 %v2947
    %3054 = vmatprep.subr.mxu0 0.0
    %3055 = vmatpush1.msra.mxu0 %v2946
    %3056 = vmatprep.subr.mxu0 0.0
    %3057 = vmatpush1.msra.mxu0 %v2945
    %3058 = vmatprep.subr.mxu0 0.0
    %3059 = vmatpush1.msra.mxu0 %v2944
    %3060 = vmatprep.subr.mxu0 0.0
    %3061 = vmatpush1.msra.mxu0 %v2943
    %3062 = vmatprep.subr.mxu0 0.0
    %3063 = vmatpush1.msra.mxu0 %v2942
    %3064 = vmatprep.subr.mxu0 0.0
    %3065 = vmatpush1.msra.mxu0 %v2941
    %3066 = vmatprep.subr.mxu0 0.0
    %3067 = vmatpush2.msra.mxu0 0.0
    %3068 = vmatprep.subr.mxu0 0.0
    %3069 = vmatpush2.msra.mxu0 0.0
    %3070 = vmatprep.subr.mxu0 0.0
    %3071 = vmatpush2.msra.mxu0 0.0
    %3072 = vmatprep.subr.mxu0 0.0
    %3073 = vmatpush2.msra.mxu0 0.0
    %3074 = vmatprep.subr.mxu0 0.0
    %3075 = vmatpush2.msra.mxu0 0.0
    %3076 = vmatprep.subr.mxu0 0.0
    %3077 = vmatpush2.msra.mxu0 0.0
    %3078 = vmatprep.subr.mxu0 0.0
    %3079 = vmatpush2.msra.mxu0 0.0
    %3080 = vmatprep.subr.mxu0 0.0
    %3081 = vmatpush2.msra.mxu0 0.0
    %3082 = vmatprep.subr.mxu0 0.0
    %3083 = vmatpush2.msra.mxu0 0.0
    %3084 = vmatprep.subr.mxu0 0.0
    %3085 = vmatpush2.msra.mxu0 0.0
    %3086 = vmatprep.subr.mxu0 0.0
    %3087 = vmatpush2.msra.mxu0 0.0
    %3088 = vmatprep.subr.mxu0 0.0
    %3089 = vmatpush2.msra.mxu0 0.0
    %3090 = vmatprep.subr.mxu0 0.0
    %3091 = vmatpush2.msra.mxu0 0.0
    %3092 = vmatprep.subr.mxu0 0.0
    %3093 = vmatpush2.msra.mxu0 0.0
    %3094 = vmatprep.subr.mxu0 0.0
    %3095 = vmatpush2.msra.mxu0 0.0
    %3096 = vmatprep.subr.mxu0 0.0
    %3097 = vmatpush2.msra.mxu0 0.0
    %3098 = vmatprep.mubr.f32.mxu0 0.0
    %3099 = vmatmul.mubr.f32.gmra.mxu0 %v2908
    %v3100 = vpop.f32.mrf.mxu0
    %v3101 = vadd.f32 %v3031, %v3100
    %v3102 = vpop.f32.mrf.mxu0
    %3103 = vdwg.mxu0
    %vm3104 = vcmask 7168
    %3105 = vst.msk [vmem:[%s17] sm:$0xff] %vm3104, %v3101
    // Predicated region
    $region98: #{tpu_custom_call.1} parent=1 // pred_check
      _
    $region99: #{tpu_custom_call.1} parent=1 // pred_check_branch
      %3107 = sbr.rel (0) target = $region101
    $region100: #{tpu_custom_call.1} parent=1 // pred_region
      _
    $region101: #{tpu_custom_call.1} parent=1 // pred_fallthru
      _
    // Predicated region
    $region102: #{tpu_custom_call.1} parent=1 // pred_check
      _
    $region103: #{tpu_custom_call.1} parent=1 // pred_check_branch
      %3109 = sbr.rel (0) target = $region105
    $region104: #{tpu_custom_call.1} parent=1 // pred_region
      _
    $region105: #{tpu_custom_call.1} parent=1 // pred_fallthru
      _
    %3110 = vsyncpa [#allocation7], 1
    %3111 = vsyncpa [#allocation9], 1
    %3112 = vsyncpa [#allocation12], 1
    %3113 = vsyncpa [#allocation15], 1

</llo_original>
